<compile_context>
chip_gen: v6e
topology: v6e:2x2x1
jax: 0.10.0
libtpu: 0.0.40
codegen_flags: <defaults>
</compile_context>

<pallas_src>
import functools

import numpy as np
import jax
import jax.numpy as jnp
from jax.experimental import pallas as pl
from jax.experimental.pallas import tpu as pltpu

MM_DTYPE = jnp.bfloat16   # MXU operand dtype (f32 accumulation) — perf review: bf16 on v6e/v7x
LN_EPS = 1e-5             # PyTorch nn.LayerNorm default


def _round_up(x, m):
    return (x + m - 1) // m * m


# erf via Abramowitz-Stegun 7.1.26 (|err| < 1.5e-7): only exp/div/select, so it lowers
# cleanly in Mosaic while matching PyTorch's exact (erf-based) nn.GELU to float precision.
def _erf(x):
    a1, a2, a3, a4, a5 = 0.254829592, -0.284496736, 1.421413741, -1.453152027, 1.061405429
    p = 0.3275911
    sgn = jnp.where(x >= 0.0, 1.0, -1.0)
    ax = jnp.abs(x)
    t = 1.0 / (1.0 + p * ax)
    poly = ((((a5 * t + a4) * t + a3) * t + a2) * t + a1) * t
    return sgn * (1.0 - poly * jnp.exp(-ax * ax))


def _gelu(x):
    return 0.5 * x * (1.0 + _erf(x * 0.7071067811865476))


# ----------------------------------------------------------------------------------
# Kernel 1: tiled matmul + bias + activation (none / gelu / prelu)
# ----------------------------------------------------------------------------------
def _mm_kernel(a_ref, w_ref, b_ref, alpha_ref, o_ref, acc_ref, *, act):
    k = pl.program_id(2)

    @pl.when(k == 0)
    def _():
        acc_ref[...] = jnp.zeros_like(acc_ref)

    acc_ref[...] += jnp.dot(a_ref[...], w_ref[...], preferred_element_type=jnp.float32)

    @pl.when(k == pl.num_programs(2) - 1)
    def _():
        y = acc_ref[...] + b_ref[...]          # bias broadcast once, in the epilogue
        if act == "gelu":
            y = _gelu(y)
        elif act == "prelu":
            y = jnp.where(y >= 0.0, y, alpha_ref[...] * y)
        o_ref[...] = y.astype(o_ref.dtype)


def pallas_linear(a, w, b=None, alpha=None, act="none"):
    """y = act(a @ w + b);  a:(M,K) f32, w:(K,N) f32, b/alpha:(N,) or None."""
    M, K = a.shape
    K2, N = w.shape
    assert K == K2
    TN = 128                                   # lane-dense output stores
    Kp = _round_up(K, 128)
    TK = next(t for t in (512, 256, 128) if Kp % t == 0)
    TM = 512 if M > 512 else _round_up(M, 8)   # small enough for v7x 32MiB scoped VMEM
    Mp = _round_up(M, TM)
    Np = _round_up(N, TN)

    a_p = jnp.pad(a, ((0, Mp - M), (0, Kp - K))).astype(MM_DTYPE)
    w_p = jnp.pad(w, ((0, Kp - K), (0, Np - N))).astype(MM_DTYPE)
    b_p = (jnp.zeros((1, Np), jnp.float32) if b is None else
           jnp.pad(b.astype(jnp.float32).reshape(1, N), ((0, 0), (0, Np - N))))
    al_p = (jnp.zeros((1, Np), jnp.float32) if alpha is None else
            jnp.pad(alpha.astype(jnp.float32).reshape(1, N), ((0, 0), (0, Np - N))))

    out = pl.pallas_call(
        functools.partial(_mm_kernel, act=act),
        out_shape=jax.ShapeDtypeStruct((Mp, Np), jnp.float32),
        grid_spec=pltpu.PrefetchScalarGridSpec(
            num_scalar_prefetch=0,
            grid=(Mp // TM, Np // TN, Kp // TK),
            in_specs=[
                pl.BlockSpec((TM, TK), lambda i, j, k: (i, k)),
                pl.BlockSpec((TK, TN), lambda i, j, k: (k, j)),
                pl.BlockSpec((1, TN), lambda i, j, k: (0, j)),
                pl.BlockSpec((1, TN), lambda i, j, k: (0, j)),
            ],
            out_specs=pl.BlockSpec((TM, TN), lambda i, j, k: (i, j)),
            scratch_shapes=[pltpu.VMEM((TM, TN), jnp.float32)],
        ),
        compiler_params=pltpu.CompilerParams(
            dimension_semantics=("parallel", "parallel", "arbitrary")),
    )(a_p, w_p, b_p, al_p)
    return out[:M, :N]


# ----------------------------------------------------------------------------------
# Kernel 2: LayerNorm over the channel (last) dim
# ----------------------------------------------------------------------------------
def _ln_kernel(x_ref, g_ref, b_ref, o_ref):
    x = x_ref[...].astype(jnp.float32)
    mu = jnp.mean(x, axis=-1, keepdims=True)
    xc = x - mu
    var = jnp.mean(xc * xc, axis=-1, keepdims=True)
    o_ref[...] = (xc * jax.lax.rsqrt(var + LN_EPS) * g_ref[...] + b_ref[...]).astype(o_ref.dtype)


def pallas_layernorm(x2d, gamma, beta):
    M, C = x2d.shape
    TM = 512 if M > 512 else _round_up(M, 8)
    Mp = _round_up(M, TM)
    x_p = jnp.pad(x2d, ((0, Mp - M), (0, 0)))
    out = pl.pallas_call(
        _ln_kernel,
        out_shape=jax.ShapeDtypeStruct((Mp, C), jnp.float32),
        grid_spec=pltpu.PrefetchScalarGridSpec(
            num_scalar_prefetch=0,
            grid=(Mp // TM,),
            in_specs=[pl.BlockSpec((TM, C), lambda i: (i, 0)),
                      pl.BlockSpec((1, C), lambda i: (0, 0)),
                      pl.BlockSpec((1, C), lambda i: (0, 0))],
            out_specs=pl.BlockSpec((TM, C), lambda i: (i, 0)),
        ),
        compiler_params=pltpu.CompilerParams(dimension_semantics=("parallel",)),
    )(x_p, gamma.reshape(1, C), beta.reshape(1, C))
    return out[:M]


# ----------------------------------------------------------------------------------
# Kernel 3: fused per-window attention (scores + rel-pos bias + shift mask + softmax + PV)
# ----------------------------------------------------------------------------------
def _attn_kernel(q_ref, k_ref, v_ref, rpb_ref, mask_ref, o_ref, *, scale):
    q = q_ref[0] * scale                      # (nH, N, hd)
    k = k_ref[0]
    v = v_ref[0]
    s = jnp.einsum('hnd,hmd->hnm', q, k, preferred_element_type=jnp.float32)
    s = s + rpb_ref[...] + mask_ref[...]      # (nH,N,N) + (nH,N,N) + (1,N,N)
    m = jnp.max(s, axis=-1, keepdims=True)
    p = jnp.exp(s - m)
    l = jnp.sum(p, axis=-1, keepdims=True)
    o = jnp.einsum('hnm,hmd->hnd', p, v, preferred_element_type=jnp.float32)
    o_ref[0] = (o / l).astype(o_ref.dtype)
    # TODO(synk): for real image sizes, batch several windows per grid step so the
    # lane dim is >=128 (head_dim here is tiny -> lane-sparse vregs).


def pallas_window_attention(q, k, v, rpb, mask, scale, batch, n_win):
    Bw, nH, N, hd = q.shape                   # Bw == batch * n_win
    return pl.pallas_call(
        functools.partial(_attn_kernel, scale=scale),
        out_shape=jax.ShapeDtypeStruct((Bw, nH, N, hd), jnp.float32),
        grid_spec=pltpu.PrefetchScalarGridSpec(
            num_scalar_prefetch=0,
            grid=(batch, n_win),
            in_specs=[
                pl.BlockSpec((1, nH, N, hd), lambda b, w: (b * n_win + w, 0, 0, 0)),
                pl.BlockSpec((1, nH, N, hd), lambda b, w: (b * n_win + w, 0, 0, 0)),
                pl.BlockSpec((1, nH, N, hd), lambda b, w: (b * n_win + w, 0, 0, 0)),
                pl.BlockSpec((nH, N, N), lambda b, w: (0, 0, 0)),
                pl.BlockSpec((1, N, N), lambda b, w: (w, 0, 0)),
            ],
            out_specs=pl.BlockSpec((1, nH, N, hd), lambda b, w: (b * n_win + w, 0, 0, 0)),
        ),
        compiler_params=pltpu.CompilerParams(
            dimension_semantics=("parallel", "parallel")),
    )(q, k, v, rpb, mask)


# ----------------------------------------------------------------------------------
# Plain-JAX reference ops (same math: bf16 MXU operands, f32 accumulation)
# ----------------------------------------------------------------------------------
def ref_linear(a, w, b=None, alpha=None, act="none"):
    y = jnp.dot(a.astype(MM_DTYPE), w.astype(MM_DTYPE), preferred_element_type=jnp.float32)
    if b is not None:
        y = y + b
    if act == "gelu":
        y = _gelu(y)
    elif act == "prelu":
        y = jnp.where(y >= 0.0, y, alpha * y)
    return y


def ref_layernorm(x2d, gamma, beta):
    x = x2d.astype(jnp.float32)
    mu = jnp.mean(x, axis=-1, keepdims=True)
    xc = x - mu
    var = jnp.mean(xc * xc, axis=-1, keepdims=True)
    return xc * jax.lax.rsqrt(var + LN_EPS) * gamma + beta


def ref_attn(q, k, v, rpb, mask, scale, batch, n_win):
    Bw, nH, N, hd = q.shape
    s = jnp.einsum('bhnd,bhmd->bhnm', q * scale, k, preferred_element_type=jnp.float32)
    s = s + rpb[None]
    s = s.reshape(batch, n_win, nH, N, N) + mask[None, :, None]
    s = s.reshape(Bw, nH, N, N)
    m = jnp.max(s, axis=-1, keepdims=True)
    p = jnp.exp(s - m)
    o = jnp.einsum('bhnm,bhmd->bhnd', p, v, preferred_element_type=jnp.float32)
    return o / jnp.sum(p, axis=-1, keepdims=True)


# ----------------------------------------------------------------------------------
# Window / mask plumbing (thin glue, identical to the PyTorch helpers)
# ----------------------------------------------------------------------------------
def get_window_size(x_size, window_size, shift_size=None):
    ws = list(window_size)
    ss = list(shift_size) if shift_size is not None else None
    for i in range(len(x_size)):
        if x_size[i] <= window_size[i]:
            ws[i] = x_size[i]
            if ss is not None:
                ss[i] = 0
    return tuple(ws) if ss is None else (tuple(ws), tuple(ss))


def window_partition(x, ws):
    B, H, W, C = x.shape
    x = x.reshape(B, H // ws[0], ws[0], W // ws[1], ws[1], C)
    return x.transpose(0, 1, 3, 2, 4, 5).reshape(-1, ws[0], ws[1], C)


def window_reverse(windows, ws, B, H, W):
    x = windows.reshape(B, H // ws[0], W // ws[1], ws[0], ws[1], -1)
    return x.transpose(0, 1, 3, 2, 4, 5).reshape(B, H, W, -1)


def relative_position_index(ws0, ws1):
    coords = np.stack(np.meshgrid(np.arange(ws0), np.arange(ws1), indexing='ij'))
    cf = coords.reshape(2, -1)
    rel = (cf[:, :, None] - cf[:, None, :]).transpose(1, 2, 0).astype(np.int64)
    rel[:, :, 0] += ws0 - 1
    rel[:, :, 1] += ws1 - 1
    rel[:, :, 0] *= 2 * ws1 - 1
    return rel.sum(-1)                               # (N, N)


def calculate_mask(h, w, window_size):
    shift = window_size // 2
    ws, ss = get_window_size((h, w), (window_size, window_size), (shift, shift))
    Hp = int(np.ceil(h / ws[0])) * ws[0]
    Wp = int(np.ceil(w / ws[1])) * ws[1]
    img_mask = np.zeros((1, Hp, Wp, 1), np.float32)
    h_slices = (slice(0, -ws[0]), slice(-ws[0], -ss[0]), slice(-ss[0], None))
    w_slices = (slice(0, -ws[1]), slice(-ws[1], -ss[1]), slice(-ss[1], None))
    cnt = 0
    for hs in h_slices:
        for wsl in w_slices:
            img_mask[:, hs, wsl, :] = cnt
            cnt += 1
    mw = window_partition(img_mask, (window_size, window_size)).reshape(-1, window_size * window_size)
    am = mw[:, None, :] - mw[:, :, None]
    return jnp.asarray(np.where(am != 0, -100.0, 0.0).astype(np.float32))   # (nW, N, N)


# ----------------------------------------------------------------------------------
# Decoder2 forward (NHWC internally; NCHW only at the module boundary)
# ----------------------------------------------------------------------------------
def swin_block(x, feat, bp, attn_mask, cfg, ops, shift_size):
    B, H, W, C = x.shape
    wsz = cfg['window_size']
    nH = cfg['num_heads']
    hd = C // nH
    scale = hd ** -0.5
    ws, ss = get_window_size((H, W), (wsz, wsz), (shift_size, shift_size))
    N = ws[0] * ws[1]

    shortcut = x
    pad_h = (ws[0] - H % ws[0]) % ws[0]
    pad_w = (ws[1] - W % ws[1]) % ws[1]
    xp = jnp.pad(x, ((0, 0), (0, pad_h), (0, pad_w), (0, 0)))
    fp = jnp.pad(feat, ((0, 0), (0, pad_h), (0, pad_w), (0, 0)))
    Hp, Wp = H + pad_h, W + pad_w
    nW = (Hp // ws[0]) * (Wp // ws[1])

    if ss[0] > 0 or ss[1] > 0:
        xp = jnp.roll(xp, shift=(-ss[0], -ss[1]), axis=(1, 2))
        fp = jnp.roll(fp, shift=(-ss[0], -ss[1]), axis=(1, 2))
        mask = attn_mask
    else:
        mask = jnp.zeros((nW, N, N), jnp.float32)

    xw = window_partition(xp, ws).reshape(-1, N, C)
    fw = window_partition(fp, ws).reshape(-1, N, C)
    Bw = xw.shape[0]

    # --- WindowAttention(q=x_windows, kv=feat_windows) ---
    q = ops['linear'](xw.reshape(Bw * N, C), bp['q_w'], bp['q_b'])
    kv = ops['linear'](fw.reshape(Bw * N, C), bp['kv_w'], bp['kv_b'])
    q = q.reshape(Bw, N, nH, hd).transpose(0, 2, 1, 3)
    kv = kv.reshape(Bw, N, 2, nH, hd).transpose(2, 0, 3, 1, 4)
    k, v = kv[0], kv[1]
    rpb = bp['rpb_table'][bp['rel_index'].reshape(-1)].reshape(N, N, nH).transpose(2, 0, 1)
    att = ops['attn'](q, k, v, rpb, mask, scale, B, nW)                  # (Bw, nH, N, hd)
    att = att.transpose(0, 2, 1, 3).reshape(Bw * N, C)
    att = ops['linear'](att, bp['proj_w'], bp['proj_b'])
    att = att.reshape(Bw, ws[0], ws[1], C)

    xr = window_reverse(att, ws, B, Hp, Wp)
    if ss[0] > 0 or ss[1] > 0:
        xr = jnp.roll(xr, shift=(ss[0], ss[1]), axis=(1, 2))
    xr = xr[:, :H, :W, :]

    t = ops['linear'](xr.reshape(B * H * W, C), bp['merge_w'], None)     # merge (no bias)
    t = ops['layernorm'](t, bp['n1_g'], bp['n1_b'])
    t = shortcut.reshape(B * H * W, C) + t
    m = ops['linear'](t, bp['fc1_w'], bp['fc1_b'], act='gelu')
    m = ops['linear'](m, bp['fc2_w'], bp['fc2_b'])
    t = t + ops['layernorm'](m, bp['n2_g'], bp['n2_b'])
    return t.reshape(B, H, W, C)


def mixer_conv(x_nhwc, conv_w, conv_b, alpha, ops):
    """3x3 conv (stride 1, pad 1) + PReLU, lowered to im2col + fused matmul kernel."""
    B, H, W, Cin = x_nhwc.shape
    Cout = conv_w.shape[0]
    xp = jnp.pad(x_nhwc, ((0, 0), (1, 1), (1, 1), (0, 0)))
    patches = [xp[:, kh:kh + H, kw:kw + W, :] for kh in range(3) for kw in range(3)]
    A = jnp.concatenate(patches, axis=-1).reshape(B * H * W, 9 * Cin)
    Wm = jnp.transpose(conv_w, (2, 3, 1, 0)).reshape(9 * Cin, Cout)
    # TODO(synk): at production resolutions replace the HBM im2col with in-kernel
    # shifted-window accumulation (direct conv) to cut input HBM traffic ~9x.
    y = ops['linear'](A, Wm, conv_b, alpha=alpha, act='prelu')
    return y.reshape(B, H, W, Cout)


def decoder2_forward(x_nchw, source_nchw, target_nchw, params, cfg, ops):
    B, C, H, W = x_nchw.shape
    x = jnp.transpose(x_nchw, (0, 2, 3, 1))
    src = jnp.transpose(source_nchw, (0, 2, 3, 1))
    tgt = jnp.transpose(target_nchw, (0, 2, 3, 1))
    attn_mask = calculate_mask(H, W, cfg['window_size'])
    for i, bp in enumerate(params['blocks']):
        shift = 0 if i % 2 == 0 else cfg['window_size'] // 2
        s_att = swin_block(x, src, bp, attn_mask, cfg, ops, shift)
        t_att = swin_block(x, tgt, bp, attn_mask, cfg, ops, shift)
        mix = params['mixers'][i]
        x = mixer_conv(jnp.concatenate([s_att, t_att], axis=-1),
                       mix['w'], mix['b'], mix['alpha'], ops)
    return jnp.transpose(x, (0, 3, 1, 2))


PALLAS_OPS = dict(linear=pallas_linear, layernorm=pallas_layernorm, attn=pallas_window_attention)
REF_OPS = dict(linear=ref_linear, layernorm=ref_layernorm, attn=ref_attn)


# ----------------------------------------------------------------------------------
# Parameters (deterministic, mirrors Decoder2._init_weights: Linear ~ trunc_normal(0.02),
# bias 0; LayerNorm weight 1 / bias 0; conv + PReLU at sane defaults)
# ----------------------------------------------------------------------------------
def make_params(key, dim, depth, num_heads, window_size, mlp_ratio):
    hidden = int(dim * mlp_ratio)
    rel_idx = jnp.asarray(relative_position_index(window_size, window_size), jnp.int32)

    def tn(k, shape):
        return 0.02 * jax.random.truncated_normal(k, -2.0, 2.0, shape, jnp.float32)

    blocks, mixers = [], []
    for _ in range(depth):
        keys = jax.random.split(key, 10)
        key = keys[0]
        blocks.append(dict(
            q_w=tn(keys[1], (dim, dim)), q_b=jnp.zeros((dim,), jnp.float32),
            kv_w=tn(keys[2], (dim, 2 * dim)), kv_b=jnp.zeros((2 * dim,), jnp.float32),
            proj_w=tn(keys[3], (dim, dim)), proj_b=jnp.zeros((dim,), jnp.float32),
            merge_w=tn(keys[4], (dim, dim)),
            n1_g=jnp.ones((dim,), jnp.float32), n1_b=jnp.zeros((dim,), jnp.float32),
            n2_g=jnp.ones((dim,), jnp.float32), n2_b=jnp.zeros((dim,), jnp.float32),
            fc1_w=tn(keys[5], (dim, hidden)), fc1_b=jnp.zeros((hidden,), jnp.float32),
            fc2_w=tn(keys[6], (hidden, dim)), fc2_b=jnp.zeros((dim,), jnp.float32),
            rpb_table=tn(keys[7], ((2 * window_size - 1) * (2 * window_size - 1), num_heads)),
            rel_index=rel_idx,
        ))
        fan_in = 2 * dim * 9
        mixers.append(dict(
            w=jax.random.normal(keys[8], (dim, 2 * dim, 3, 3), jnp.float32) * (1.0 / fan_in) ** 0.5,
            b=0.01 * jax.random.normal(keys[9], (dim,), jnp.float32),
            alpha=jnp.full((dim,), 0.25, jnp.float32),
        ))
    return dict(blocks=blocks, mixers=mixers)


if __name__ == "__main__":
    cfg = dict(dim=32, depth=2, num_heads=4, window_size=4, mlp_ratio=4.0)
    B, C, H, W = 2, cfg['dim'], 8, 8

    key = jax.random.PRNGKey(0)
    k1, k2, k3, kp = jax.random.split(key, 4)
    x = jax.random.normal(k1, (B, C, H, W), jnp.float32)
    source = jax.random.normal(k2, (B, C, H, W), jnp.float32)
    target = jax.random.normal(k3, (B, C, H, W), jnp.float32)
    params = make_params(kp, **cfg)

    fwd = jax.jit(lambda a, b, c: decoder2_forward(a, b, c, params, cfg, PALLAS_OPS))
    out = fwd(x, source, target)
    jax.block_until_ready(out)
    assert out.shape == (B, C, H, W), out.shape

    # correctness check against a plain-JAX reference with matched numerics
    ref = jax.jit(lambda a, b, c: decoder2_forward(a, b, c, params, cfg, REF_OPS))(x, source, target)
    jax.block_until_ready(ref)
    err = float(jnp.max(jnp.abs(out - ref)))
    assert err < 2e-2, f"max abs err {err}"

    print("KERNEL_OK")
</pallas_src>

<mosaic_0001>
module attributes {stable_mosaic.version = 11 : i64} {
  func.func @_mm_kernel(%arg0: i32, %arg1: i32, %arg2: i32, %arg3: memref<128x128xbf16, #tpu.memory_space<vmem>>, %arg4: memref<128x128xbf16, #tpu.memory_space<vmem>>, %arg5: memref<1x128xf32, #tpu.memory_space<vmem>>, %arg6: memref<1x128xf32, #tpu.memory_space<vmem>>, %arg7: memref<128x128xf32, #tpu.memory_space<vmem>>, %arg8: memref<128x128xf32, #tpu.memory_space<vmem>>) attributes {dimension_semantics = [#tpu.dimension_semantics<parallel>, #tpu.dimension_semantics<parallel>, #tpu.dimension_semantics<arbitrary>], iteration_bounds = array<i64: 1, 1, 1>, scalar_prefetch = 0 : i64, scratch_operands = 1 : i64, tpu.core_type = #tpu.core_type<tc>, window_params = [{transform_indices = @transform_0, window_bounds = array<i64: 128, 128>}, {transform_indices = @transform_1, window_bounds = array<i64: 128, 128>}, {transform_indices = @transform_2, window_bounds = array<i64: 1, 128>}, {transform_indices = @transform_3, window_bounds = array<i64: 1, 128>}, {transform_indices = @transform_4, window_bounds = array<i64: 128, 128>}]} {
    %c0_i32 = arith.constant 0 : i32
    %0 = arith.cmpi eq, %arg2, %c0_i32 : i32
    %1 = arith.extui %0 : i1 to i32
    %c0_i32_0 = arith.constant 0 : i32
    %2 = arith.cmpi ne, %1, %c0_i32_0 : i32
    scf.if %2 {
      %cst_10 = arith.constant 0.000000e+00 : f32
      %12 = vector.broadcast %cst_10 : f32 to vector<128x128xf32>
      %c0_11 = arith.constant 0 : index
      %c0_12 = arith.constant 0 : index
      %13 = vector.load %arg8[%c0_11, %c0_12] : memref<128x128xf32, #tpu.memory_space<vmem>>, vector<128x128xf32>
      tpu.vector_store %arg8[%c0_11, %c0_12], %12 {strides = array<i32>} : memref<128x128xf32, #tpu.memory_space<vmem>>, vector<128x128xf32>,
    } else {
    }
    %c0 = arith.constant 0 : index
    %c0_1 = arith.constant 0 : index
    %3 = vector.load %arg8[%c0, %c0_1] : memref<128x128xf32, #tpu.memory_space<vmem>>, vector<128x128xf32>
    %c0_2 = arith.constant 0 : index
    %c0_3 = arith.constant 0 : index
    %4 = vector.load %arg3[%c0_2, %c0_3] : memref<128x128xbf16, #tpu.memory_space<vmem>>, vector<128x128xbf16>
    %c0_4 = arith.constant 0 : index
    %c0_5 = arith.constant 0 : index
    %5 = vector.load %arg4[%c0_4, %c0_5] : memref<128x128xbf16, #tpu.memory_space<vmem>>, vector<128x128xbf16>
    %cst = arith.constant dense<0.000000e+00> : vector<128x128xf32>
    %6 = tpu.matmul %4, %5, %cst {dimension_numbers = #tpu.dot_dimension_numbers<[1], [0], [0], [1], [0, 0, 1, 1], [], []>} : vector<128x128xbf16>, vector<128x128xbf16>, vector<128x128xf32> -> vector<128x128xf32>
    %7 = arith.addf %3, %6 : vector<128x128xf32>
    %c0_6 = arith.constant 0 : index
    %c0_7 = arith.constant 0 : index
    %8 = vector.load %arg8[%c0_6, %c0_7] : memref<128x128xf32, #tpu.memory_space<vmem>>, vector<128x128xf32>
    tpu.vector_store %arg8[%c0_6, %c0_7], %7 {strides = array<i32>} : memref<128x128xf32, #tpu.memory_space<vmem>>, vector<128x128xf32>,
    %c0_i32_8 = arith.constant 0 : i32
    %9 = arith.cmpi eq, %arg2, %c0_i32_8 : i32
    %10 = arith.extui %9 : i1 to i32
    %c0_i32_9 = arith.constant 0 : i32
    %11 = arith.cmpi ne, %10, %c0_i32_9 : i32
    scf.if %11 {
      %c0_10 = arith.constant 0 : index
      %c0_11 = arith.constant 0 : index
      %12 = vector.load %arg8[%c0_10, %c0_11] : memref<128x128xf32, #tpu.memory_space<vmem>>, vector<128x128xf32>
      %c0_12 = arith.constant 0 : index
      %c0_13 = arith.constant 0 : index
      %13 = vector.load %arg5[%c0_12, %c0_13] : memref<1x128xf32, #tpu.memory_space<vmem>>, vector<1x128xf32>
      %14 = vector.broadcast %13 : vector<1x128xf32> to vector<128x128xf32>
      %15 = arith.addf %12, %14 : vector<128x128xf32>
      %c0_14 = arith.constant 0 : index
      %c0_15 = arith.constant 0 : index
      %16 = vector.load %arg7[%c0_14, %c0_15] : memref<128x128xf32, #tpu.memory_space<vmem>>, vector<128x128xf32>
      tpu.vector_store %arg7[%c0_14, %c0_15], %15 {strides = array<i32>} : memref<128x128xf32, #tpu.memory_space<vmem>>, vector<128x128xf32>,
    } else {
    }
    return
  }
  func.func @transform_0(%arg0: i32, %arg1: i32, %arg2: i32) -> (i32, i32) {
    %c0_i32 = arith.constant 0 : i32
    return %arg0, %arg2 : i32, i32
  }
  func.func @transform_1(%arg0: i32, %arg1: i32, %arg2: i32) -> (i32, i32) {
    %c0_i32 = arith.constant 0 : i32
    return %arg2, %arg1 : i32, i32
  }
  func.func @transform_2(%arg0: i32, %arg1: i32, %arg2: i32) -> (i32, i32) {
    %c0_i32 = arith.constant 0 : i32
    %c0_i32_0 = arith.constant 0 : i32
    return %c0_i32, %arg1 : i32, i32
  }
  func.func @transform_3(%arg0: i32, %arg1: i32, %arg2: i32) -> (i32, i32) {
    %c0_i32 = arith.constant 0 : i32
    %c0_i32_0 = arith.constant 0 : i32
    return %c0_i32, %arg1 : i32, i32
  }
  func.func @transform_4(%arg0: i32, %arg1: i32, %arg2: i32) -> (i32, i32) {
    %c0_i32 = arith.constant 0 : i32
    return %arg0, %arg1 : i32, i32
  }
}

module attributes {stable_mosaic.version = 11 : i64} {
  func.func @_attn_kernel(%arg0: i32, %arg1: i32, %arg2: memref<1x4x16x8xf32, #tpu.memory_space<vmem>>, %arg3: memref<1x4x16x8xf32, #tpu.memory_space<vmem>>, %arg4: memref<1x4x16x8xf32, #tpu.memory_space<vmem>>, %arg5: memref<4x16x16xf32, #tpu.memory_space<vmem>>, %arg6: memref<1x16x16xf32, #tpu.memory_space<vmem>>, %arg7: memref<1x4x16x8xf32, #tpu.memory_space<vmem>>) attributes {dimension_semantics = [#tpu.dimension_semantics<parallel>, #tpu.dimension_semantics<parallel>], iteration_bounds = array<i64: 2, 4>, scalar_prefetch = 0 : i64, scratch_operands = 0 : i64, tpu.core_type = #tpu.core_type<tc>, window_params = [{transform_indices = @transform_0, window_bounds = array<i64: 1, 4, 16, 8>}, {transform_indices = @transform_1, window_bounds = array<i64: 1, 4, 16, 8>}, {transform_indices = @transform_2, window_bounds = array<i64: 1, 4, 16, 8>}, {pipeline_mode = #tpu.pipeline_mode<synchronous>, transform_indices = @transform_3, window_bounds = array<i64: 4, 16, 16>}, {transform_indices = @transform_4, window_bounds = array<i64: 1, 16, 16>}, {transform_indices = @transform_5, window_bounds = array<i64: 1, 4, 16, 8>}]} {
    %c0 = arith.constant 0 : index
    %c0_0 = arith.constant 0 : index
    %c0_1 = arith.constant 0 : index
    %c0_2 = arith.constant 0 : index
    %0 = vector.load %arg2[%c0, %c0_0, %c0_1, %c0_2] : memref<1x4x16x8xf32, #tpu.memory_space<vmem>>, vector<1x4x16x8xf32>
    %1 = vector.shape_cast %0 : vector<1x4x16x8xf32> to vector<4x16x8xf32>
    %cst = arith.constant 0.353553385 : f32
    %2 = vector.broadcast %cst : f32 to vector<4x16x8xf32>
    %3 = arith.mulf %1, %2 : vector<4x16x8xf32>
    %c0_3 = arith.constant 0 : index
    %c0_4 = arith.constant 0 : index
    %c0_5 = arith.constant 0 : index
    %c0_6 = arith.constant 0 : index
    %4 = vector.load %arg3[%c0_3, %c0_4, %c0_5, %c0_6] : memref<1x4x16x8xf32, #tpu.memory_space<vmem>>, vector<1x4x16x8xf32>
    %5 = vector.shape_cast %4 : vector<1x4x16x8xf32> to vector<4x16x8xf32>
    %c0_7 = arith.constant 0 : index
    %c0_8 = arith.constant 0 : index
    %c0_9 = arith.constant 0 : index
    %c0_10 = arith.constant 0 : index
    %6 = vector.load %arg4[%c0_7, %c0_8, %c0_9, %c0_10] : memref<1x4x16x8xf32, #tpu.memory_space<vmem>>, vector<1x4x16x8xf32>
    %7 = vector.shape_cast %6 : vector<1x4x16x8xf32> to vector<4x16x8xf32>
    "tpu.trace_start"() <{level = 10 : i32, message = "hnd,hmd->hnm"}> : () -> ()
    %cst_11 = arith.constant dense<0.000000e+00> : vector<4x16x16xf32>
    %8 = tpu.matmul %3, %5, %cst_11 {dimension_numbers = #tpu.dot_dimension_numbers<[2], [2], [1], [1], [0, 0, 0, 1, 1, 1], [0], [0]>} : vector<4x16x8xf32>, vector<4x16x8xf32>, vector<4x16x16xf32> -> vector<4x16x16xf32>
    "tpu.trace_stop"() : () -> ()
    %c0_12 = arith.constant 0 : index
    %c0_13 = arith.constant 0 : index
    %c0_14 = arith.constant 0 : index
    %9 = vector.load %arg5[%c0_12, %c0_13, %c0_14] : memref<4x16x16xf32, #tpu.memory_space<vmem>>, vector<4x16x16xf32>
    %10 = arith.addf %8, %9 : vector<4x16x16xf32>
    %c0_15 = arith.constant 0 : index
    %c0_16 = arith.constant 0 : index
    %c0_17 = arith.constant 0 : index
    %11 = vector.load %arg6[%c0_15, %c0_16, %c0_17] : memref<1x16x16xf32, #tpu.memory_space<vmem>>, vector<1x16x16xf32>
    %12 = vector.broadcast %11 : vector<1x16x16xf32> to vector<4x16x16xf32>
    %13 = arith.addf %10, %12 : vector<4x16x16xf32>
    %cst_18 = arith.constant dense<0xFF800000> : vector<4x16xf32>
    %14 = vector.multi_reduction <maximumf>, %13, %cst_18 [2] : vector<4x16x16xf32> to vector<4x16xf32>
    %15 = vector.shape_cast %14 : vector<4x16xf32> to vector<4x16x1xf32>
    %16 = vector.broadcast %15 : vector<4x16x1xf32> to vector<4x16x16xf32>
    %17 = arith.subf %13, %16 : vector<4x16x16xf32>
    %18 = math.exp %17 : vector<4x16x16xf32>
    %cst_19 = arith.constant dense<0.000000e+00> : vector<4x16xf32>
    %19 = vector.multi_reduction <add>, %18, %cst_19 [2] : vector<4x16x16xf32> to vector<4x16xf32>
    %20 = vector.shape_cast %19 : vector<4x16xf32> to vector<4x16x1xf32>
    "tpu.trace_start"() <{level = 10 : i32, message = "hnm,hmd->hnd"}> : () -> ()
    %cst_20 = arith.constant dense<0.000000e+00> : vector<4x16x8xf32>
    %21 = tpu.matmul %18, %7, %cst_20 {dimension_numbers = #tpu.dot_dimension_numbers<[2], [1], [1], [2], [0, 0, 0, 1, 1, 2], [0], [0]>} : vector<4x16x16xf32>, vector<4x16x8xf32>, vector<4x16x8xf32> -> vector<4x16x8xf32>
    "tpu.trace_stop"() : () -> ()
    %22 = vector.broadcast %20 : vector<4x16x1xf32> to vector<4x16x8xf32>
    %23 = arith.divf %21, %22 : vector<4x16x8xf32>
    %c0_21 = arith.constant 0 : index
    %c0_22 = arith.constant 0 : index
    %c0_23 = arith.constant 0 : index
    %c0_24 = arith.constant 0 : index
    %24 = vector.load %arg7[%c0_21, %c0_22, %c0_23, %c0_24] : memref<1x4x16x8xf32, #tpu.memory_space<vmem>>, vector<1x4x16x8xf32>
    %25 = vector.shape_cast %24 : vector<1x4x16x8xf32> to vector<4x16x8xf32>
    %26 = vector.shape_cast %23 : vector<4x16x8xf32> to vector<1x4x16x8xf32>
    tpu.vector_store %arg7[%c0_21, %c0_22, %c0_23, %c0_24], %26 {strides = array<i32>} : memref<1x4x16x8xf32, #tpu.memory_space<vmem>>, vector<1x4x16x8xf32>,
    return
  }
  func.func @transform_0(%arg0: i32, %arg1: i32) -> (i32, i32, i32, i32) {
    %c4_i32 = arith.constant 4 : i32
    %0 = arith.muli %arg0, %c4_i32 : i32
    %1 = arith.addi %0, %arg1 : i32
    %c0_i32 = arith.constant 0 : i32
    %c0_i32_0 = arith.constant 0 : i32
    %c0_i32_1 = arith.constant 0 : i32
    %c0_i32_2 = arith.constant 0 : i32
    return %1, %c0_i32, %c0_i32_0, %c0_i32_1 : i32, i32, i32, i32
  }
  func.func @transform_1(%arg0: i32, %arg1: i32) -> (i32, i32, i32, i32) {
    %c4_i32 = arith.constant 4 : i32
    %0 = arith.muli %arg0, %c4_i32 : i32
    %1 = arith.addi %0, %arg1 : i32
    %c0_i32 = arith.constant 0 : i32
    %c0_i32_0 = arith.constant 0 : i32
    %c0_i32_1 = arith.constant 0 : i32
    %c0_i32_2 = arith.constant 0 : i32
    return %1, %c0_i32, %c0_i32_0, %c0_i32_1 : i32, i32, i32, i32
  }
  func.func @transform_2(%arg0: i32, %arg1: i32) -> (i32, i32, i32, i32) {
    %c4_i32 = arith.constant 4 : i32
    %0 = arith.muli %arg0, %c4_i32 : i32
    %1 = arith.addi %0, %arg1 : i32
    %c0_i32 = arith.constant 0 : i32
    %c0_i32_0 = arith.constant 0 : i32
    %c0_i32_1 = arith.constant 0 : i32
    %c0_i32_2 = arith.constant 0 : i32
    return %1, %c0_i32, %c0_i32_0, %c0_i32_1 : i32, i32, i32, i32
  }
  func.func @transform_3(%arg0: i32, %arg1: i32) -> (i32, i32, i32) {
    %c0_i32 = arith.constant 0 : i32
    %c0_i32_0 = arith.constant 0 : i32
    %c0_i32_1 = arith.constant 0 : i32
    %c0_i32_2 = arith.constant 0 : i32
    return %c0_i32, %c0_i32_0, %c0_i32_1 : i32, i32, i32
  }
  func.func @transform_4(%arg0: i32, %arg1: i32) -> (i32, i32, i32) {
    %c0_i32 = arith.constant 0 : i32
    %c0_i32_0 = arith.constant 0 : i32
    %c0_i32_1 = arith.constant 0 : i32
    return %arg1, %c0_i32, %c0_i32_0 : i32, i32, i32
  }
  func.func @transform_5(%arg0: i32, %arg1: i32) -> (i32, i32, i32, i32) {
    %c4_i32 = arith.constant 4 : i32
    %0 = arith.muli %arg0, %c4_i32 : i32
    %1 = arith.addi %0, %arg1 : i32
    %c0_i32 = arith.constant 0 : i32
    %c0_i32_0 = arith.constant 0 : i32
    %c0_i32_1 = arith.constant 0 : i32
    %c0_i32_2 = arith.constant 0 : i32
    return %1, %c0_i32, %c0_i32_0, %c0_i32_1 : i32, i32, i32, i32
  }
}

module attributes {stable_mosaic.version = 11 : i64} {
  func.func @_ln_kernel(%arg0: i32, %arg1: memref<128x32xf32, #tpu.memory_space<vmem>>, %arg2: memref<1x32xf32, #tpu.memory_space<vmem>>, %arg3: memref<1x32xf32, #tpu.memory_space<vmem>>, %arg4: memref<128x32xf32, #tpu.memory_space<vmem>>) attributes {dimension_semantics = [#tpu.dimension_semantics<parallel>], iteration_bounds = array<i64: 1>, scalar_prefetch = 0 : i64, scratch_operands = 0 : i64, tpu.core_type = #tpu.core_type<tc>, window_params = [{transform_indices = @transform_0, window_bounds = array<i64: 128, 32>}, {pipeline_mode = #tpu.pipeline_mode<synchronous>, transform_indices = @transform_1, window_bounds = array<i64: 1, 32>}, {pipeline_mode = #tpu.pipeline_mode<synchronous>, transform_indices = @transform_2, window_bounds = array<i64: 1, 32>}, {transform_indices = @transform_3, window_bounds = array<i64: 128, 32>}]} {
    %c0 = arith.constant 0 : index
    %c0_0 = arith.constant 0 : index
    %0 = vector.load %arg1[%c0, %c0_0] : memref<128x32xf32, #tpu.memory_space<vmem>>, vector<128x32xf32>
    %cst = arith.constant dense<0.000000e+00> : vector<128xf32>
    %1 = vector.multi_reduction <add>, %0, %cst [1] : vector<128x32xf32> to vector<128xf32>
    %2 = vector.shape_cast %1 : vector<128xf32> to vector<128x1xf32>
    %cst_1 = arith.constant 3.200000e+01 : f32
    %3 = vector.broadcast %cst_1 : f32 to vector<128x1xf32>
    %4 = arith.divf %2, %3 : vector<128x1xf32>
    %5 = vector.broadcast %4 : vector<128x1xf32> to vector<128x32xf32>
    %6 = arith.subf %0, %5 : vector<128x32xf32>
    %7 = arith.mulf %6, %6 : vector<128x32xf32>
    %cst_2 = arith.constant dense<0.000000e+00> : vector<128xf32>
    %8 = vector.multi_reduction <add>, %7, %cst_2 [1] : vector<128x32xf32> to vector<128xf32>
    %9 = vector.shape_cast %8 : vector<128xf32> to vector<128x1xf32>
    %cst_3 = arith.constant 3.200000e+01 : f32
    %10 = vector.broadcast %cst_3 : f32 to vector<128x1xf32>
    %11 = arith.divf %9, %10 : vector<128x1xf32>
    %cst_4 = arith.constant 9.99999974E-6 : f32
    %12 = vector.broadcast %cst_4 : f32 to vector<128x1xf32>
    %13 = arith.addf %11, %12 : vector<128x1xf32>
    %14 = math.rsqrt %13 : vector<128x1xf32>
    %15 = vector.broadcast %14 : vector<128x1xf32> to vector<128x32xf32>
    %16 = arith.mulf %6, %15 : vector<128x32xf32>
    %c0_5 = arith.constant 0 : index
    %c0_6 = arith.constant 0 : index
    %17 = vector.load %arg2[%c0_5, %c0_6] : memref<1x32xf32, #tpu.memory_space<vmem>>, vector<1x32xf32>
    %18 = vector.broadcast %17 : vector<1x32xf32> to vector<128x32xf32>
    %19 = arith.mulf %16, %18 : vector<128x32xf32>
    %c0_7 = arith.constant 0 : index
    %c0_8 = arith.constant 0 : index
    %20 = vector.load %arg3[%c0_7, %c0_8] : memref<1x32xf32, #tpu.memory_space<vmem>>, vector<1x32xf32>
    %21 = vector.broadcast %20 : vector<1x32xf32> to vector<128x32xf32>
    %22 = arith.addf %19, %21 : vector<128x32xf32>
    %c0_9 = arith.constant 0 : index
    %c0_10 = arith.constant 0 : index
    %23 = vector.load %arg4[%c0_9, %c0_10] : memref<128x32xf32, #tpu.memory_space<vmem>>, vector<128x32xf32>
    tpu.vector_store %arg4[%c0_9, %c0_10], %22 {strides = array<i32>} : memref<128x32xf32, #tpu.memory_space<vmem>>, vector<128x32xf32>,
    return
  }
  func.func @transform_0(%arg0: i32) -> (i32, i32) {
    %c0_i32 = arith.constant 0 : i32
    %c0_i32_0 = arith.constant 0 : i32
    return %arg0, %c0_i32 : i32, i32
  }
  func.func @transform_1(%arg0: i32) -> (i32, i32) {
    %c0_i32 = arith.constant 0 : i32
    %c0_i32_0 = arith.constant 0 : i32
    %c0_i32_1 = arith.constant 0 : i32
    return %c0_i32, %c0_i32_0 : i32, i32
  }
  func.func @transform_2(%arg0: i32) -> (i32, i32) {
    %c0_i32 = arith.constant 0 : i32
    %c0_i32_0 = arith.constant 0 : i32
    %c0_i32_1 = arith.constant 0 : i32
    return %c0_i32, %c0_i32_0 : i32, i32
  }
  func.func @transform_3(%arg0: i32) -> (i32, i32) {
    %c0_i32 = arith.constant 0 : i32
    %c0_i32_0 = arith.constant 0 : i32
    return %arg0, %c0_i32 : i32, i32
  }
}

module attributes {stable_mosaic.version = 11 : i64} {
  func.func @_mm_kernel(%arg0: i32, %arg1: i32, %arg2: i32, %arg3: memref<128x128xbf16, #tpu.memory_space<vmem>>, %arg4: memref<128x128xbf16, #tpu.memory_space<vmem>>, %arg5: memref<1x128xf32, #tpu.memory_space<vmem>>, %arg6: memref<1x128xf32, #tpu.memory_space<vmem>>, %arg7: memref<128x128xf32, #tpu.memory_space<vmem>>, %arg8: memref<128x128xf32, #tpu.memory_space<vmem>>) attributes {dimension_semantics = [#tpu.dimension_semantics<parallel>, #tpu.dimension_semantics<parallel>, #tpu.dimension_semantics<arbitrary>], iteration_bounds = array<i64: 1, 1, 1>, scalar_prefetch = 0 : i64, scratch_operands = 1 : i64, tpu.core_type = #tpu.core_type<tc>, window_params = [{transform_indices = @transform_0, window_bounds = array<i64: 128, 128>}, {transform_indices = @transform_1, window_bounds = array<i64: 128, 128>}, {transform_indices = @transform_2, window_bounds = array<i64: 1, 128>}, {transform_indices = @transform_3, window_bounds = array<i64: 1, 128>}, {transform_indices = @transform_4, window_bounds = array<i64: 128, 128>}]} {
    %c0_i32 = arith.constant 0 : i32
    %0 = arith.cmpi eq, %arg2, %c0_i32 : i32
    %1 = arith.extui %0 : i1 to i32
    %c0_i32_0 = arith.constant 0 : i32
    %2 = arith.cmpi ne, %1, %c0_i32_0 : i32
    scf.if %2 {
      %cst_10 = arith.constant 0.000000e+00 : f32
      %12 = vector.broadcast %cst_10 : f32 to vector<128x128xf32>
      %c0_11 = arith.constant 0 : index
      %c0_12 = arith.constant 0 : index
      %13 = vector.load %arg8[%c0_11, %c0_12] : memref<128x128xf32, #tpu.memory_space<vmem>>, vector<128x128xf32>
      tpu.vector_store %arg8[%c0_11, %c0_12], %12 {strides = array<i32>} : memref<128x128xf32, #tpu.memory_space<vmem>>, vector<128x128xf32>,
    } else {
    }
    %c0 = arith.constant 0 : index
    %c0_1 = arith.constant 0 : index
    %3 = vector.load %arg8[%c0, %c0_1] : memref<128x128xf32, #tpu.memory_space<vmem>>, vector<128x128xf32>
    %c0_2 = arith.constant 0 : index
    %c0_3 = arith.constant 0 : index
    %4 = vector.load %arg3[%c0_2, %c0_3] : memref<128x128xbf16, #tpu.memory_space<vmem>>, vector<128x128xbf16>
    %c0_4 = arith.constant 0 : index
    %c0_5 = arith.constant 0 : index
    %5 = vector.load %arg4[%c0_4, %c0_5] : memref<128x128xbf16, #tpu.memory_space<vmem>>, vector<128x128xbf16>
    %cst = arith.constant dense<0.000000e+00> : vector<128x128xf32>
    %6 = tpu.matmul %4, %5, %cst {dimension_numbers = #tpu.dot_dimension_numbers<[1], [0], [0], [1], [0, 0, 1, 1], [], []>} : vector<128x128xbf16>, vector<128x128xbf16>, vector<128x128xf32> -> vector<128x128xf32>
    %7 = arith.addf %3, %6 : vector<128x128xf32>
    %c0_6 = arith.constant 0 : index
    %c0_7 = arith.constant 0 : index
    %8 = vector.load %arg8[%c0_6, %c0_7] : memref<128x128xf32, #tpu.memory_space<vmem>>, vector<128x128xf32>
    tpu.vector_store %arg8[%c0_6, %c0_7], %7 {strides = array<i32>} : memref<128x128xf32, #tpu.memory_space<vmem>>, vector<128x128xf32>,
    %c0_i32_8 = arith.constant 0 : i32
    %9 = arith.cmpi eq, %arg2, %c0_i32_8 : i32
    %10 = arith.extui %9 : i1 to i32
    %c0_i32_9 = arith.constant 0 : i32
    %11 = arith.cmpi ne, %10, %c0_i32_9 : i32
    scf.if %11 {
      %c0_10 = arith.constant 0 : index
      %c0_11 = arith.constant 0 : index
      %12 = vector.load %arg8[%c0_10, %c0_11] : memref<128x128xf32, #tpu.memory_space<vmem>>, vector<128x128xf32>
      %c0_12 = arith.constant 0 : index
      %c0_13 = arith.constant 0 : index
      %13 = vector.load %arg5[%c0_12, %c0_13] : memref<1x128xf32, #tpu.memory_space<vmem>>, vector<1x128xf32>
      %14 = vector.broadcast %13 : vector<1x128xf32> to vector<128x128xf32>
      %15 = arith.addf %12, %14 : vector<128x128xf32>
      %cst_14 = arith.constant 5.000000e-01 : f32
      %16 = vector.broadcast %cst_14 : f32 to vector<128x128xf32>
      %17 = arith.mulf %16, %15 : vector<128x128xf32>
      %cst_15 = arith.constant 0.707106769 : f32
      %18 = vector.broadcast %cst_15 : f32 to vector<128x128xf32>
      %19 = arith.mulf %15, %18 : vector<128x128xf32>
      %cst_16 = arith.constant 0.000000e+00 : f32
      %20 = vector.broadcast %cst_16 : f32 to vector<128x128xf32>
      %21 = arith.cmpf oge, %19, %20 : vector<128x128xf32>
      %cst_17 = arith.constant 1.000000e+00 : f32
      %cst_18 = arith.constant -1.000000e+00 : f32
      %22 = vector.broadcast %cst_17 : f32 to vector<128x128xf32>
      %23 = vector.broadcast %cst_18 : f32 to vector<128x128xf32>
      %24 = arith.select %21, %22, %23 : vector<128x128xi1>, vector<128x128xf32>
      %25 = math.absf %19 : vector<128x128xf32>
      %cst_19 = arith.constant 0.327591091 : f32
      %26 = vector.broadcast %cst_19 : f32 to vector<128x128xf32>
      %27 = arith.mulf %26, %25 : vector<128x128xf32>
      %cst_20 = arith.constant 1.000000e+00 : f32
      %28 = vector.broadcast %cst_20 : f32 to vector<128x128xf32>
      %29 = arith.addf %28, %27 : vector<128x128xf32>
      %cst_21 = arith.constant 1.000000e+00 : f32
      %30 = vector.broadcast %cst_21 : f32 to vector<128x128xf32>
      %31 = arith.divf %30, %29 : vector<128x128xf32>
      %cst_22 = arith.constant 1.06140542 : f32
      %32 = vector.broadcast %cst_22 : f32 to vector<128x128xf32>
      %33 = arith.mulf %32, %31 : vector<128x128xf32>
      %cst_23 = arith.constant -1.45315206 : f32
      %34 = vector.broadcast %cst_23 : f32 to vector<128x128xf32>
      %35 = arith.addf %33, %34 : vector<128x128xf32>
      %36 = arith.mulf %35, %31 : vector<128x128xf32>
      %cst_24 = arith.constant 1.42141378 : f32
      %37 = vector.broadcast %cst_24 : f32 to vector<128x128xf32>
      %38 = arith.addf %36, %37 : vector<128x128xf32>
      %39 = arith.mulf %38, %31 : vector<128x128xf32>
      %cst_25 = arith.constant -0.284496725 : f32
      %40 = vector.broadcast %cst_25 : f32 to vector<128x128xf32>
      %41 = arith.addf %39, %40 : vector<128x128xf32>
      %42 = arith.mulf %41, %31 : vector<128x128xf32>
      %cst_26 = arith.constant 0.254829586 : f32
      %43 = vector.broadcast %cst_26 : f32 to vector<128x128xf32>
      %44 = arith.addf %42, %43 : vector<128x128xf32>
      %45 = arith.mulf %44, %31 : vector<128x128xf32>
      %cst_27 = arith.constant 0.000000e+00 : f32
      %46 = vector.broadcast %cst_27 : f32 to vector<128x128xf32>
      %47 = arith.subf %46, %25 : vector<128x128xf32>
      %48 = arith.mulf %47, %25 : vector<128x128xf32>
      %49 = math.exp %48 : vector<128x128xf32>
      %50 = arith.mulf %45, %49 : vector<128x128xf32>
      %cst_28 = arith.constant 1.000000e+00 : f32
      %51 = vector.broadcast %cst_28 : f32 to vector<128x128xf32>
      %52 = arith.subf %51, %50 : vector<128x128xf32>
      %53 = arith.mulf %24, %52 : vector<128x128xf32>
      %cst_29 = arith.constant 1.000000e+00 : f32
      %54 = vector.broadcast %cst_29 : f32 to vector<128x128xf32>
      %55 = arith.addf %54, %53 : vector<128x128xf32>
      %56 = arith.mulf %17, %55 : vector<128x128xf32>
      %c0_30 = arith.constant 0 : index
      %c0_31 = arith.constant 0 : index
      %57 = vector.load %arg7[%c0_30, %c0_31] : memref<128x128xf32, #tpu.memory_space<vmem>>, vector<128x128xf32>
      tpu.vector_store %arg7[%c0_30, %c0_31], %56 {strides = array<i32>} : memref<128x128xf32, #tpu.memory_space<vmem>>, vector<128x128xf32>,
    } else {
    }
    return
  }
  func.func @transform_0(%arg0: i32, %arg1: i32, %arg2: i32) -> (i32, i32) {
    %c0_i32 = arith.constant 0 : i32
    return %arg0, %arg2 : i32, i32
  }
  func.func @transform_1(%arg0: i32, %arg1: i32, %arg2: i32) -> (i32, i32) {
    %c0_i32 = arith.constant 0 : i32
    return %arg2, %arg1 : i32, i32
  }
  func.func @transform_2(%arg0: i32, %arg1: i32, %arg2: i32) -> (i32, i32) {
    %c0_i32 = arith.constant 0 : i32
    %c0_i32_0 = arith.constant 0 : i32
    return %c0_i32, %arg1 : i32, i32
  }
  func.func @transform_3(%arg0: i32, %arg1: i32, %arg2: i32) -> (i32, i32) {
    %c0_i32 = arith.constant 0 : i32
    %c0_i32_0 = arith.constant 0 : i32
    return %c0_i32, %arg1 : i32, i32
  }
  func.func @transform_4(%arg0: i32, %arg1: i32, %arg2: i32) -> (i32, i32) {
    %c0_i32 = arith.constant 0 : i32
    return %arg0, %arg1 : i32, i32
  }
}

module attributes {stable_mosaic.version = 11 : i64} {
  func.func @_mm_kernel(%arg0: i32, %arg1: i32, %arg2: i32, %arg3: memref<128x128xbf16, #tpu.memory_space<vmem>>, %arg4: memref<128x128xbf16, #tpu.memory_space<vmem>>, %arg5: memref<1x128xf32, #tpu.memory_space<vmem>>, %arg6: memref<1x128xf32, #tpu.memory_space<vmem>>, %arg7: memref<128x128xf32, #tpu.memory_space<vmem>>, %arg8: memref<128x128xf32, #tpu.memory_space<vmem>>) attributes {dimension_semantics = [#tpu.dimension_semantics<parallel>, #tpu.dimension_semantics<parallel>, #tpu.dimension_semantics<arbitrary>], iteration_bounds = array<i64: 1, 1, 5>, scalar_prefetch = 0 : i64, scratch_operands = 1 : i64, tpu.core_type = #tpu.core_type<tc>, window_params = [{transform_indices = @transform_0, window_bounds = array<i64: 128, 128>}, {transform_indices = @transform_1, window_bounds = array<i64: 128, 128>}, {transform_indices = @transform_2, window_bounds = array<i64: 1, 128>}, {transform_indices = @transform_3, window_bounds = array<i64: 1, 128>}, {transform_indices = @transform_4, window_bounds = array<i64: 128, 128>}]} {
    %c0_i32 = arith.constant 0 : i32
    %0 = arith.cmpi eq, %arg2, %c0_i32 : i32
    %1 = arith.extui %0 : i1 to i32
    %c0_i32_0 = arith.constant 0 : i32
    %2 = arith.cmpi ne, %1, %c0_i32_0 : i32
    scf.if %2 {
      %cst_9 = arith.constant 0.000000e+00 : f32
      %12 = vector.broadcast %cst_9 : f32 to vector<128x128xf32>
      %c0_10 = arith.constant 0 : index
      %c0_11 = arith.constant 0 : index
      %13 = vector.load %arg8[%c0_10, %c0_11] : memref<128x128xf32, #tpu.memory_space<vmem>>, vector<128x128xf32>
      tpu.vector_store %arg8[%c0_10, %c0_11], %12 {strides = array<i32>} : memref<128x128xf32, #tpu.memory_space<vmem>>, vector<128x128xf32>,
    } else {
    }
    %c0 = arith.constant 0 : index
    %c0_1 = arith.constant 0 : index
    %3 = vector.load %arg8[%c0, %c0_1] : memref<128x128xf32, #tpu.memory_space<vmem>>, vector<128x128xf32>
    %c0_2 = arith.constant 0 : index
    %c0_3 = arith.constant 0 : index
    %4 = vector.load %arg3[%c0_2, %c0_3] : memref<128x128xbf16, #tpu.memory_space<vmem>>, vector<128x128xbf16>
    %c0_4 = arith.constant 0 : index
    %c0_5 = arith.constant 0 : index
    %5 = vector.load %arg4[%c0_4, %c0_5] : memref<128x128xbf16, #tpu.memory_space<vmem>>, vector<128x128xbf16>
    %cst = arith.constant dense<0.000000e+00> : vector<128x128xf32>
    %6 = tpu.matmul %4, %5, %cst {dimension_numbers = #tpu.dot_dimension_numbers<[1], [0], [0], [1], [0, 0, 1, 1], [], []>} : vector<128x128xbf16>, vector<128x128xbf16>, vector<128x128xf32> -> vector<128x128xf32>
    %7 = arith.addf %3, %6 : vector<128x128xf32>
    %c0_6 = arith.constant 0 : index
    %c0_7 = arith.constant 0 : index
    %8 = vector.load %arg8[%c0_6, %c0_7] : memref<128x128xf32, #tpu.memory_space<vmem>>, vector<128x128xf32>
    tpu.vector_store %arg8[%c0_6, %c0_7], %7 {strides = array<i32>} : memref<128x128xf32, #tpu.memory_space<vmem>>, vector<128x128xf32>,
    %c4_i32 = arith.constant 4 : i32
    %9 = arith.cmpi eq, %arg2, %c4_i32 : i32
    %10 = arith.extui %9 : i1 to i32
    %c0_i32_8 = arith.constant 0 : i32
    %11 = arith.cmpi ne, %10, %c0_i32_8 : i32
    scf.if %11 {
      %c0_9 = arith.constant 0 : index
      %c0_10 = arith.constant 0 : index
      %12 = vector.load %arg8[%c0_9, %c0_10] : memref<128x128xf32, #tpu.memory_space<vmem>>, vector<128x128xf32>
      %c0_11 = arith.constant 0 : index
      %c0_12 = arith.constant 0 : index
      %13 = vector.load %arg5[%c0_11, %c0_12] : memref<1x128xf32, #tpu.memory_space<vmem>>, vector<1x128xf32>
      %14 = vector.broadcast %13 : vector<1x128xf32> to vector<128x128xf32>
      %15 = arith.addf %12, %14 : vector<128x128xf32>
      %cst_13 = arith.constant 0.000000e+00 : f32
      %16 = vector.broadcast %cst_13 : f32 to vector<128x128xf32>
      %17 = arith.cmpf oge, %15, %16 : vector<128x128xf32>
      %c0_14 = arith.constant 0 : index
      %c0_15 = arith.constant 0 : index
      %18 = vector.load %arg6[%c0_14, %c0_15] : memref<1x128xf32, #tpu.memory_space<vmem>>, vector<1x128xf32>
      %19 = vector.broadcast %18 : vector<1x128xf32> to vector<128x128xf32>
      %20 = arith.mulf %19, %15 : vector<128x128xf32>
      %21 = arith.select %17, %15, %20 : vector<128x128xi1>, vector<128x128xf32>
      %c0_16 = arith.constant 0 : index
      %c0_17 = arith.constant 0 : index
      %22 = vector.load %arg7[%c0_16, %c0_17] : memref<128x128xf32, #tpu.memory_space<vmem>>, vector<128x128xf32>
      tpu.vector_store %arg7[%c0_16, %c0_17], %21 {strides = array<i32>} : memref<128x128xf32, #tpu.memory_space<vmem>>, vector<128x128xf32>,
    } else {
    }
    return
  }
  func.func @transform_0(%arg0: i32, %arg1: i32, %arg2: i32) -> (i32, i32) {
    %c0_i32 = arith.constant 0 : i32
    return %arg0, %arg2 : i32, i32
  }
  func.func @transform_1(%arg0: i32, %arg1: i32, %arg2: i32) -> (i32, i32) {
    %c0_i32 = arith.constant 0 : i32
    return %arg2, %arg1 : i32, i32
  }
  func.func @transform_2(%arg0: i32, %arg1: i32, %arg2: i32) -> (i32, i32) {
    %c0_i32 = arith.constant 0 : i32
    %c0_i32_0 = arith.constant 0 : i32
    return %c0_i32, %arg1 : i32, i32
  }
  func.func @transform_3(%arg0: i32, %arg1: i32, %arg2: i32) -> (i32, i32) {
    %c0_i32 = arith.constant 0 : i32
    %c0_i32_0 = arith.constant 0 : i32
    return %c0_i32, %arg1 : i32, i32
  }
  func.func @transform_4(%arg0: i32, %arg1: i32, %arg2: i32) -> (i32, i32) {
    %c0_i32 = arith.constant 0 : i32
    return %arg0, %arg1 : i32, i32
  }
}

module attributes {stable_mosaic.version = 11 : i64} {
  func.func @_mm_kernel(%arg0: i32, %arg1: i32, %arg2: i32, %arg3: memref<128x128xbf16, #tpu.memory_space<vmem>>, %arg4: memref<128x128xbf16, #tpu.memory_space<vmem>>, %arg5: memref<1x128xf32, #tpu.memory_space<vmem>>, %arg6: memref<1x128xf32, #tpu.memory_space<vmem>>, %arg7: memref<128x128xf32, #tpu.memory_space<vmem>>, %arg8: memref<128x128xf32, #tpu.memory_space<vmem>>) attributes {dimension_semantics = [#tpu.dimension_semantics<parallel>, #tpu.dimension_semantics<parallel>, #tpu.dimension_semantics<arbitrary>], iteration_bounds = array<i64: 1, 1, 5>, scalar_prefetch = 0 : i64, scratch_operands = 1 : i64, tpu.core_type = #tpu.core_type<tc>, window_params = [{transform_indices = @transform_0, window_bounds = array<i64: 128, 128>}, {transform_indices = @transform_1, window_bounds = array<i64: 128, 128>}, {transform_indices = @transform_2, window_bounds = array<i64: 1, 128>}, {transform_indices = @transform_3, window_bounds = array<i64: 1, 128>}, {transform_indices = @transform_4, window_bounds = array<i64: 128, 128>}]} {
    %c0_i32 = arith.constant 0 : i32
    %0 = arith.cmpi eq, %arg2, %c0_i32 : i32
    %1 = arith.extui %0 : i1 to i32
    %c0_i32_0 = arith.constant 0 : i32
    %2 = arith.cmpi ne, %1, %c0_i32_0 : i32
    scf.if %2 {
      %cst_9 = arith.constant 0.000000e+00 : f32
      %12 = vector.broadcast %cst_9 : f32 to vector<128x128xf32>
      %c0_10 = arith.constant 0 : index
      %c0_11 = arith.constant 0 : index
      %13 = vector.load %arg8[%c0_10, %c0_11] : memref<128x128xf32, #tpu.memory_space<vmem>>, vector<128x128xf32>
      tpu.vector_store %arg8[%c0_10, %c0_11], %12 {strides = array<i32>} : memref<128x128xf32, #tpu.memory_space<vmem>>, vector<128x128xf32>,
    } else {
    }
    %c0 = arith.constant 0 : index
    %c0_1 = arith.constant 0 : index
    %3 = vector.load %arg8[%c0, %c0_1] : memref<128x128xf32, #tpu.memory_space<vmem>>, vector<128x128xf32>
    %c0_2 = arith.constant 0 : index
    %c0_3 = arith.constant 0 : index
    %4 = vector.load %arg3[%c0_2, %c0_3] : memref<128x128xbf16, #tpu.memory_space<vmem>>, vector<128x128xbf16>
    %c0_4 = arith.constant 0 : index
    %c0_5 = arith.constant 0 : index
    %5 = vector.load %arg4[%c0_4, %c0_5] : memref<128x128xbf16, #tpu.memory_space<vmem>>, vector<128x128xbf16>
    %cst = arith.constant dense<0.000000e+00> : vector<128x128xf32>
    %6 = tpu.matmul %4, %5, %cst {dimension_numbers = #tpu.dot_dimension_numbers<[1], [0], [0], [1], [0, 0, 1, 1], [], []>} : vector<128x128xbf16>, vector<128x128xbf16>, vector<128x128xf32> -> vector<128x128xf32>
    %7 = arith.addf %3, %6 : vector<128x128xf32>
    %c0_6 = arith.constant 0 : index
    %c0_7 = arith.constant 0 : index
    %8 = vector.load %arg8[%c0_6, %c0_7] : memref<128x128xf32, #tpu.memory_space<vmem>>, vector<128x128xf32>
    tpu.vector_store %arg8[%c0_6, %c0_7], %7 {strides = array<i32>} : memref<128x128xf32, #tpu.memory_space<vmem>>, vector<128x128xf32>,
    %c4_i32 = arith.constant 4 : i32
    %9 = arith.cmpi eq, %arg2, %c4_i32 : i32
    %10 = arith.extui %9 : i1 to i32
    %c0_i32_8 = arith.constant 0 : i32
    %11 = arith.cmpi ne, %10, %c0_i32_8 : i32
    scf.if %11 {
      %c0_9 = arith.constant 0 : index
      %c0_10 = arith.constant 0 : index
      %12 = vector.load %arg8[%c0_9, %c0_10] : memref<128x128xf32, #tpu.memory_space<vmem>>, vector<128x128xf32>
      %c0_11 = arith.constant 0 : index
      %c0_12 = arith.constant 0 : index
      %13 = vector.load %arg5[%c0_11, %c0_12] : memref<1x128xf32, #tpu.memory_space<vmem>>, vector<1x128xf32>
      %14 = vector.broadcast %13 : vector<1x128xf32> to vector<128x128xf32>
      %15 = arith.addf %12, %14 : vector<128x128xf32>
      %cst_13 = arith.constant 0.000000e+00 : f32
      %16 = vector.broadcast %cst_13 : f32 to vector<128x128xf32>
      %17 = arith.cmpf oge, %15, %16 : vector<128x128xf32>
      %c0_14 = arith.constant 0 : index
      %c0_15 = arith.constant 0 : index
      %18 = vector.load %arg6[%c0_14, %c0_15] : memref<1x128xf32, #tpu.memory_space<vmem>>, vector<1x128xf32>
      %19 = vector.broadcast %18 : vector<1x128xf32> to vector<128x128xf32>
      %20 = arith.mulf %19, %15 : vector<128x128xf32>
      %21 = arith.select %17, %15, %20 : vector<128x128xi1>, vector<128x128xf32>
      %c0_16 = arith.constant 0 : index
      %c0_17 = arith.constant 0 : index
      %22 = vector.load %arg7[%c0_16, %c0_17] : memref<128x128xf32, #tpu.memory_space<vmem>>, vector<128x128xf32>
      tpu.vector_store %arg7[%c0_16, %c0_17], %21 {strides = array<i32>} : memref<128x128xf32, #tpu.memory_space<vmem>>, vector<128x128xf32>,
    } else {
    }
    return
  }
  func.func @transform_0(%arg0: i32, %arg1: i32, %arg2: i32) -> (i32, i32) {
    %c0_i32 = arith.constant 0 : i32
    return %arg0, %arg2 : i32, i32
  }
  func.func @transform_1(%arg0: i32, %arg1: i32, %arg2: i32) -> (i32, i32) {
    %c0_i32 = arith.constant 0 : i32
    return %arg2, %arg1 : i32, i32
  }
  func.func @transform_2(%arg0: i32, %arg1: i32, %arg2: i32) -> (i32, i32) {
    %c0_i32 = arith.constant 0 : i32
    %c0_i32_0 = arith.constant 0 : i32
    return %c0_i32, %arg1 : i32, i32
  }
  func.func @transform_3(%arg0: i32, %arg1: i32, %arg2: i32) -> (i32, i32) {
    %c0_i32 = arith.constant 0 : i32
    %c0_i32_0 = arith.constant 0 : i32
    return %c0_i32, %arg1 : i32, i32
  }
  func.func @transform_4(%arg0: i32, %arg1: i32, %arg2: i32) -> (i32, i32) {
    %c0_i32 = arith.constant 0 : i32
    return %arg0, %arg1 : i32, i32
  }
}

</mosaic_0001>

<llo_original>
// kernel: _lambda_.38
$region0: #{_lambda_.38}
  #allocation0 [shape = 'u32[]', space=smem, size = 0x4, offset = 0x4, fixed_abs, tag = 'smem constant byte address 0x4 - core index']
  #allocation1 [shape = 'u32[144,128]{1,0:T(1,128)}', space=vmem, size = 0x12000, scoped, tag = 'internal scratch']
  #allocation2 [shape = 'f32[128,128]{1,0:T(8,128)}', space=vmem, size = 0x10000, scoped, tag = 'scratch operand']
  %s0 = inlined_call_operand.vmem [shape: bf16[128,128], index: 0, kind: input, shape index: {}]
  %s1 = inlined_call_operand.vmem [shape: bf16[128,128], index: 1, kind: input, shape index: {}]
  %s2 = inlined_call_operand.vmem [shape: f32[1,128], index: 2, kind: input, shape index: {}, may-alias: {2,3}]
  %s3 = inlined_call_operand.vmem [shape: f32[1,128], index: 3, kind: input, shape index: {}, may-alias: {2,3}]
  %s4 = inlined_call_operand.vmem [shape: f32[128,128], index: 4, kind: output, shape index: {}]
  %s5 = sld [smem:[#allocation0]]
  $region34: #{_lambda_.38} parent=0
    _
  %s7 = ssub.s32 1, %s5
  %s8 = scalar_select 0, %s7, %s5
  // Predicated region
  $region2: #{_lambda_.38} parent=0 // pred_check
    _
  $region3: #{_lambda_.38} parent=0 // pred_check_branch
    %10 = sbr.rel (0) target = $region5
  $region4: #{_lambda_.38} parent=0 // pred_region
    _
  $region5: #{_lambda_.38} parent=0 // pred_fallthru
    _
  // Predicated region
  $region6: #{_lambda_.38} parent=0 // pred_check
    _
  $region7: #{_lambda_.38} parent=0 // pred_check_branch
    %12 = sbr.rel (0) target = $region9
  $region8: #{_lambda_.38} parent=0 // pred_region
    _
  $region9: #{_lambda_.38} parent=0 // pred_fallthru
    _
  // Predicated region
  $region10: #{_lambda_.38} parent=0 // pred_check
    _
  $region11: #{_lambda_.38} parent=0 // pred_check_branch
    %14 = sbr.rel (0) target = $region13
  $region12: #{_lambda_.38} parent=0 // pred_region
    _
  $region13: #{_lambda_.38} parent=0 // pred_fallthru
    _
  // Predicated region
  $region14: #{_lambda_.38} parent=0 // pred_check
    _
  $region15: #{_lambda_.38} parent=0 // pred_check_branch
    %16 = sbr.rel (0) target = $region17
  $region16: #{_lambda_.38} parent=0 // pred_region
    _
  $region17: #{_lambda_.38} parent=0 // pred_fallthru
    _
  %p18 = scmp.eq.s32.totalorder 0, 0
  // Predicated region
  $region18: #{_lambda_.38} parent=0 // pred_check
    %p19 = pneg %p18
  $region19: #{_lambda_.38} parent=0 // pred_check_branch
    %21 = sbr.rel (%p19) target = $region21
  $region20: #{_lambda_.38} parent=0 // pred_region
    %22 = vst [vmem:[#allocation2] sm:$0xff] 0.0
    %23 = vst [vmem:[#allocation2 + $0x8] sm:$0xff] 0.0
    %24 = vst [vmem:[#allocation2 + $0x10] sm:$0xff] 0.0
    %25 = vst [vmem:[#allocation2 + $0x18] sm:$0xff] 0.0
    %26 = vst [vmem:[#allocation2 + $0x20] sm:$0xff] 0.0
    %27 = vst [vmem:[#allocation2 + $0x28] sm:$0xff] 0.0
    %28 = vst [vmem:[#allocation2 + $0x30] sm:$0xff] 0.0
    %29 = vst [vmem:[#allocation2 + $0x38] sm:$0xff] 0.0
    %30 = vst [vmem:[#allocation2 + $0x40] sm:$0xff] 0.0
    %31 = vst [vmem:[#allocation2 + $0x48] sm:$0xff] 0.0
    %32 = vst [vmem:[#allocation2 + $0x50] sm:$0xff] 0.0
    %33 = vst [vmem:[#allocation2 + $0x58] sm:$0xff] 0.0
    %34 = vst [vmem:[#allocation2 + $0x60] sm:$0xff] 0.0
    %35 = vst [vmem:[#allocation2 + $0x68] sm:$0xff] 0.0
    %36 = vst [vmem:[#allocation2 + $0x70] sm:$0xff] 0.0
    %37 = vst [vmem:[#allocation2 + $0x78] sm:$0xff] 0.0
  $region21: #{_lambda_.38} parent=0 // pred_fallthru
    _
  %v38 = vld [vmem:[#allocation2] sm:$0xff]
  %v39 = vld [vmem:[#allocation2 + $0x8] sm:$0xff]
  %v40 = vld [vmem:[#allocation2 + $0x10] sm:$0xff]
  %v41 = vld [vmem:[#allocation2 + $0x18] sm:$0xff]
  %v42 = vld [vmem:[#allocation2 + $0x20] sm:$0xff]
  %v43 = vld [vmem:[#allocation2 + $0x28] sm:$0xff]
  %v44 = vld [vmem:[#allocation2 + $0x30] sm:$0xff]
  %v45 = vld [vmem:[#allocation2 + $0x38] sm:$0xff]
  %v46 = vld [vmem:[#allocation2 + $0x40] sm:$0xff]
  %v47 = vld [vmem:[#allocation2 + $0x48] sm:$0xff]
  %v48 = vld [vmem:[#allocation2 + $0x50] sm:$0xff]
  %v49 = vld [vmem:[#allocation2 + $0x58] sm:$0xff]
  %v50 = vld [vmem:[#allocation2 + $0x60] sm:$0xff]
  %v51 = vld [vmem:[#allocation2 + $0x68] sm:$0xff]
  %v52 = vld [vmem:[#allocation2 + $0x70] sm:$0xff]
  %v53 = vld [vmem:[#allocation2 + $0x78] sm:$0xff]
  %v54 = vld [vmem:[%s0] sm:$0xf]
  %v55 = vld [vmem:[%s0 + $0x4] sm:$0xf]
  %v56 = vld [vmem:[%s0 + $0x8] sm:$0xf]
  %v57 = vld [vmem:[%s0 + $0xc] sm:$0xf]
  %v58 = vld [vmem:[%s0 + $0x10] sm:$0xf]
  %v59 = vld [vmem:[%s0 + $0x14] sm:$0xf]
  %v60 = vld [vmem:[%s0 + $0x18] sm:$0xf]
  %v61 = vld [vmem:[%s0 + $0x1c] sm:$0xf]
  %v62 = vld [vmem:[%s0 + $0x20] sm:$0xf]
  %v63 = vld [vmem:[%s0 + $0x24] sm:$0xf]
  %v64 = vld [vmem:[%s0 + $0x28] sm:$0xf]
  %v65 = vld [vmem:[%s0 + $0x2c] sm:$0xf]
  %v66 = vld [vmem:[%s0 + $0x30] sm:$0xf]
  %v67 = vld [vmem:[%s0 + $0x34] sm:$0xf]
  %v68 = vld [vmem:[%s0 + $0x38] sm:$0xf]
  %v69 = vld [vmem:[%s0 + $0x3c] sm:$0xf]
  %v70 = vld [vmem:[%s1] sm:$0xf]
  %v71 = vld [vmem:[%s1 + $0x4] sm:$0xf]
  %v72 = vld [vmem:[%s1 + $0x8] sm:$0xf]
  %v73 = vld [vmem:[%s1 + $0xc] sm:$0xf]
  %v74 = vld [vmem:[%s1 + $0x10] sm:$0xf]
  %v75 = vld [vmem:[%s1 + $0x14] sm:$0xf]
  %v76 = vld [vmem:[%s1 + $0x18] sm:$0xf]
  %v77 = vld [vmem:[%s1 + $0x1c] sm:$0xf]
  %v78 = vld [vmem:[%s1 + $0x20] sm:$0xf]
  %v79 = vld [vmem:[%s1 + $0x24] sm:$0xf]
  %v80 = vld [vmem:[%s1 + $0x28] sm:$0xf]
  %v81 = vld [vmem:[%s1 + $0x2c] sm:$0xf]
  %v82 = vld [vmem:[%s1 + $0x30] sm:$0xf]
  %v83 = vld [vmem:[%s1 + $0x34] sm:$0xf]
  %v84 = vld [vmem:[%s1 + $0x38] sm:$0xf]
  %v85 = vld [vmem:[%s1 + $0x3c] sm:$0xf]
  %v102 = vunpack.c.l.b16 %v54
  %v103 = vunpack.c.l.b16 %v55
  %v104 = vunpack.c.l.b16 %v56
  %v105 = vunpack.c.l.b16 %v57
  %v106 = vunpack.c.l.b16 %v58
  %v107 = vunpack.c.l.b16 %v59
  %v108 = vunpack.c.l.b16 %v60
  %v109 = vunpack.c.l.b16 %v61
  %v110 = vunpack.c.l.b16 %v62
  %v111 = vunpack.c.l.b16 %v63
  %v112 = vunpack.c.l.b16 %v64
  %v113 = vunpack.c.l.b16 %v65
  %v114 = vunpack.c.l.b16 %v66
  %v115 = vunpack.c.l.b16 %v67
  %v116 = vunpack.c.l.b16 %v68
  %v117 = vunpack.c.l.b16 %v69
  %v118 = vpack.c.b16 %v103, %v102
  %v119 = vpack.c.b16 %v105, %v104
  %v120 = vpack.c.b16 %v107, %v106
  %v121 = vpack.c.b16 %v109, %v108
  %v122 = vpack.c.b16 %v111, %v110
  %v123 = vpack.c.b16 %v113, %v112
  %v124 = vpack.c.b16 %v115, %v114
  %v125 = vpack.c.b16 %v117, %v116
  %v150 = vunpack.c.l.b16 %v70
  %v151 = vunpack.c.l.b16 %v71
  %v152 = vunpack.c.l.b16 %v72
  %v153 = vunpack.c.l.b16 %v73
  %v154 = vunpack.c.l.b16 %v74
  %v155 = vunpack.c.l.b16 %v75
  %v156 = vunpack.c.l.b16 %v76
  %v157 = vunpack.c.l.b16 %v77
  %v158 = vunpack.c.l.b16 %v78
  %v159 = vunpack.c.l.b16 %v79
  %v160 = vunpack.c.l.b16 %v80
  %v161 = vunpack.c.l.b16 %v81
  %v162 = vunpack.c.l.b16 %v82
  %v163 = vunpack.c.l.b16 %v83
  %v164 = vunpack.c.l.b16 %v84
  %v165 = vunpack.c.l.b16 %v85
  %v166 = vpack.c.b16 %v151, %v150
  %v167 = vpack.c.b16 %v153, %v152
  %v168 = vpack.c.b16 %v155, %v154
  %v169 = vpack.c.b16 %v157, %v156
  %v170 = vpack.c.b16 %v159, %v158
  %v171 = vpack.c.b16 %v161, %v160
  %v172 = vpack.c.b16 %v163, %v162
  %v173 = vpack.c.b16 %v165, %v164
  %182 = vmatprep.subr.bf16.mxu0 0
  %183 = vmatpush1.bf16.msra.mxu0 %v173
  %184 = vmatprep.subr.bf16.mxu0 0
  %185 = vmatpush1.bf16.msra.mxu0 %v172
  %186 = vmatprep.subr.bf16.mxu0 0
  %187 = vmatpush1.bf16.msra.mxu0 %v171
  %188 = vmatprep.subr.bf16.mxu0 0
  %189 = vmatpush1.bf16.msra.mxu0 %v170
  %190 = vmatprep.subr.bf16.mxu0 0
  %191 = vmatpush1.bf16.msra.mxu0 %v169
  %192 = vmatprep.subr.bf16.mxu0 0
  %193 = vmatpush1.bf16.msra.mxu0 %v168
  %194 = vmatprep.subr.bf16.mxu0 0
  %195 = vmatpush1.bf16.msra.mxu0 %v167
  %196 = vmatprep.subr.bf16.mxu0 0
  %197 = vmatpush1.bf16.msra.mxu0 %v166
  %198 = vmatprep.subr.bf16.mxu0 0
  %199 = vmatpush2.bf16.msra.mxu0 0
  %200 = vmatprep.subr.bf16.mxu0 0
  %201 = vmatpush2.bf16.msra.mxu0 0
  %202 = vmatprep.subr.bf16.mxu0 0
  %203 = vmatpush2.bf16.msra.mxu0 0
  %204 = vmatprep.subr.bf16.mxu0 0
  %205 = vmatpush2.bf16.msra.mxu0 0
  %206 = vmatprep.subr.bf16.mxu0 0
  %207 = vmatpush2.bf16.msra.mxu0 0
  %208 = vmatprep.subr.bf16.mxu0 0
  %209 = vmatpush2.bf16.msra.mxu0 0
  %210 = vmatprep.subr.bf16.mxu0 0
  %211 = vmatpush2.bf16.msra.mxu0 0
  %212 = vmatprep.subr.bf16.mxu0 0
  %213 = vmatpush2.bf16.msra.mxu0 0
  %214 = vmatprep.mubr.bf16.mxu0 0
  %215 = vmatmul.mubr.bf16.gmra.mxu0 %v118
  %v216 = vpop.f32.mrf.mxu0
  %v217 = vadd.f32 0.0, %v216
  %v218 = vpop.f32.mrf.mxu0
  %v219 = vpop.f32.mrf.mxu0
  %v220 = vadd.f32 0.0, %v219
  %v221 = vpop.f32.mrf.mxu0
  %222 = vmatprep.mubr.bf16.mxu0 0
  %223 = vmatmul.mubr.bf16.gmra.mxu0 %v119
  %v224 = vpop.f32.mrf.mxu0
  %v225 = vadd.f32 0.0, %v224
  %v226 = vpop.f32.mrf.mxu0
  %v227 = vpop.f32.mrf.mxu0
  %v228 = vadd.f32 0.0, %v227
  %v229 = vpop.f32.mrf.mxu0
  %230 = vmatprep.mubr.bf16.mxu0 0
  %231 = vmatmul.mubr.bf16.gmra.mxu0 %v120
  %v232 = vpop.f32.mrf.mxu0
  %v233 = vadd.f32 0.0, %v232
  %v234 = vpop.f32.mrf.mxu0
  %v235 = vpop.f32.mrf.mxu0
  %v236 = vadd.f32 0.0, %v235
  %v237 = vpop.f32.mrf.mxu0
  %238 = vmatprep.mubr.bf16.mxu0 0
  %239 = vmatmul.mubr.bf16.gmra.mxu0 %v121
  %v240 = vpop.f32.mrf.mxu0
  %v241 = vadd.f32 0.0, %v240
  %v242 = vpop.f32.mrf.mxu0
  %v243 = vpop.f32.mrf.mxu0
  %v244 = vadd.f32 0.0, %v243
  %v245 = vpop.f32.mrf.mxu0
  %246 = vmatprep.mubr.bf16.mxu0 0
  %247 = vmatmul.mubr.bf16.gmra.mxu0 %v122
  %v248 = vpop.f32.mrf.mxu0
  %v249 = vadd.f32 0.0, %v248
  %v250 = vpop.f32.mrf.mxu0
  %v251 = vpop.f32.mrf.mxu0
  %v252 = vadd.f32 0.0, %v251
  %v253 = vpop.f32.mrf.mxu0
  %254 = vmatprep.mubr.bf16.mxu0 0
  %255 = vmatmul.mubr.bf16.gmra.mxu0 %v123
  %v256 = vpop.f32.mrf.mxu0
  %v257 = vadd.f32 0.0, %v256
  %v258 = vpop.f32.mrf.mxu0
  %v259 = vpop.f32.mrf.mxu0
  %v260 = vadd.f32 0.0, %v259
  %v261 = vpop.f32.mrf.mxu0
  %262 = vmatprep.mubr.bf16.mxu0 0
  %263 = vmatmul.mubr.bf16.gmra.mxu0 %v124
  %v264 = vpop.f32.mrf.mxu0
  %v265 = vadd.f32 0.0, %v264
  %v266 = vpop.f32.mrf.mxu0
  %v267 = vpop.f32.mrf.mxu0
  %v268 = vadd.f32 0.0, %v267
  %v269 = vpop.f32.mrf.mxu0
  %270 = vmatprep.mubr.bf16.mxu0 0
  %271 = vmatmul.mubr.bf16.gmra.mxu0 %v125
  %v272 = vpop.f32.mrf.mxu0
  %v273 = vadd.f32 0.0, %v272
  %v274 = vpop.f32.mrf.mxu0
  %v275 = vpop.f32.mrf.mxu0
  %v276 = vadd.f32 0.0, %v275
  %v277 = vpop.f32.mrf.mxu0
  %278 = vdwg.mxu0
  %v279 = vadd.f32 %v38, %v217
  %v280 = vadd.f32 %v39, %v220
  %v281 = vadd.f32 %v40, %v225
  %v282 = vadd.f32 %v41, %v228
  %v283 = vadd.f32 %v42, %v233
  %v284 = vadd.f32 %v43, %v236
  %v285 = vadd.f32 %v44, %v241
  %v286 = vadd.f32 %v45, %v244
  %v287 = vadd.f32 %v46, %v249
  %v288 = vadd.f32 %v47, %v252
  %v289 = vadd.f32 %v48, %v257
  %v290 = vadd.f32 %v49, %v260
  %v291 = vadd.f32 %v50, %v265
  %v292 = vadd.f32 %v51, %v268
  %v293 = vadd.f32 %v52, %v273
  %v294 = vadd.f32 %v53, %v276
  %295 = vst [vmem:[#allocation2] sm:$0xff] %v279
  %296 = vst [vmem:[#allocation2 + $0x8] sm:$0xff] %v280
  %297 = vst [vmem:[#allocation2 + $0x10] sm:$0xff] %v281
  %298 = vst [vmem:[#allocation2 + $0x18] sm:$0xff] %v282
  %299 = vst [vmem:[#allocation2 + $0x20] sm:$0xff] %v283
  %300 = vst [vmem:[#allocation2 + $0x28] sm:$0xff] %v284
  %301 = vst [vmem:[#allocation2 + $0x30] sm:$0xff] %v285
  %302 = vst [vmem:[#allocation2 + $0x38] sm:$0xff] %v286
  %303 = vst [vmem:[#allocation2 + $0x40] sm:$0xff] %v287
  %304 = vst [vmem:[#allocation2 + $0x48] sm:$0xff] %v288
  %305 = vst [vmem:[#allocation2 + $0x50] sm:$0xff] %v289
  %306 = vst [vmem:[#allocation2 + $0x58] sm:$0xff] %v290
  %307 = vst [vmem:[#allocation2 + $0x60] sm:$0xff] %v291
  %308 = vst [vmem:[#allocation2 + $0x68] sm:$0xff] %v292
  %309 = vst [vmem:[#allocation2 + $0x70] sm:$0xff] %v293
  %310 = vst [vmem:[#allocation2 + $0x78] sm:$0xff] %v294
  // Predicated region
  $region22: #{_lambda_.38} parent=0 // pred_check
    %p311 = pneg %p18
  $region23: #{_lambda_.38} parent=0 // pred_check_branch
    %313 = sbr.rel (%p311) target = $region25
  $region24: #{_lambda_.38} parent=0 // pred_region
    %v314 = vld [vmem:[#allocation2] sm:$0xff]
    %v315 = vld [vmem:[#allocation2 + $0x8] sm:$0xff]
    %v316 = vld [vmem:[#allocation2 + $0x10] sm:$0xff]
    %v317 = vld [vmem:[#allocation2 + $0x18] sm:$0xff]
    %v318 = vld [vmem:[#allocation2 + $0x20] sm:$0xff]
    %v319 = vld [vmem:[#allocation2 + $0x28] sm:$0xff]
    %v320 = vld [vmem:[#allocation2 + $0x30] sm:$0xff]
    %v321 = vld [vmem:[#allocation2 + $0x38] sm:$0xff]
    %v322 = vld [vmem:[#allocation2 + $0x40] sm:$0xff]
    %v323 = vld [vmem:[#allocation2 + $0x48] sm:$0xff]
    %v324 = vld [vmem:[#allocation2 + $0x50] sm:$0xff]
    %v325 = vld [vmem:[#allocation2 + $0x58] sm:$0xff]
    %v326 = vld [vmem:[#allocation2 + $0x60] sm:$0xff]
    %v327 = vld [vmem:[#allocation2 + $0x68] sm:$0xff]
    %v328 = vld [vmem:[#allocation2 + $0x70] sm:$0xff]
    %v329 = vld [vmem:[#allocation2 + $0x78] sm:$0xff]
    %v330 = vld [vmem:[%s2] sm:$0x1]
    %v332 = vlaneseq
    %v333 = vshrl.u32 %v332, 7
    %v334 = vsub.s32 0, %v333
    %v335 = vrot.slane %v330, %v334
    %v337 = vadd.f32 %v314, %v335
    %v338 = vadd.f32 %v315, %v335
    %v339 = vadd.f32 %v316, %v335
    %v340 = vadd.f32 %v317, %v335
    %v341 = vadd.f32 %v318, %v335
    %v342 = vadd.f32 %v319, %v335
    %v343 = vadd.f32 %v320, %v335
    %v344 = vadd.f32 %v321, %v335
    %v345 = vadd.f32 %v322, %v335
    %v346 = vadd.f32 %v323, %v335
    %v347 = vadd.f32 %v324, %v335
    %v348 = vadd.f32 %v325, %v335
    %v349 = vadd.f32 %v326, %v335
    %v350 = vadd.f32 %v327, %v335
    %v351 = vadd.f32 %v328, %v335
    %v352 = vadd.f32 %v329, %v335
    %353 = vst [vmem:[%s4] sm:$0xff] %v337
    %354 = vst [vmem:[%s4 + $0x8] sm:$0xff] %v338
    %355 = vst [vmem:[%s4 + $0x10] sm:$0xff] %v339
    %356 = vst [vmem:[%s4 + $0x18] sm:$0xff] %v340
    %357 = vst [vmem:[%s4 + $0x20] sm:$0xff] %v341
    %358 = vst [vmem:[%s4 + $0x28] sm:$0xff] %v342
    %359 = vst [vmem:[%s4 + $0x30] sm:$0xff] %v343
    %360 = vst [vmem:[%s4 + $0x38] sm:$0xff] %v344
    %361 = vst [vmem:[%s4 + $0x40] sm:$0xff] %v345
    %362 = vst [vmem:[%s4 + $0x48] sm:$0xff] %v346
    %363 = vst [vmem:[%s4 + $0x50] sm:$0xff] %v347
    %364 = vst [vmem:[%s4 + $0x58] sm:$0xff] %v348
    %365 = vst [vmem:[%s4 + $0x60] sm:$0xff] %v349
    %366 = vst [vmem:[%s4 + $0x68] sm:$0xff] %v350
    %367 = vst [vmem:[%s4 + $0x70] sm:$0xff] %v351
    %368 = vst [vmem:[%s4 + $0x78] sm:$0xff] %v352
  $region25: #{_lambda_.38} parent=0 // pred_fallthru
    _
  // Predicated region
  $region26: #{_lambda_.38} parent=0 // pred_check
    _
  $region27: #{_lambda_.38} parent=0 // pred_check_branch
    %370 = sbr.rel (0) target = $region29
  $region28: #{_lambda_.38} parent=0 // pred_region
    _
  $region29: #{_lambda_.38} parent=0 // pred_fallthru
    _
  // Predicated region
  $region30: #{_lambda_.38} parent=0 // pred_check
    _
  $region31: #{_lambda_.38} parent=0 // pred_check_branch
    %372 = sbr.rel (0) target = $region33
  $region32: #{_lambda_.38} parent=0 // pred_region
    _
  $region33: #{_lambda_.38} parent=0 // pred_fallthru
    _

// kernel: _lambda_.48
$region0: #{_lambda_.48}
  #allocation0 [shape = 'u32[]', space=smem, size = 0x4, offset = 0x4, fixed_abs, tag = 'smem constant byte address 0x4 - core index']
  #allocation1 [shape = 'u32[144,128]{1,0:T(1,128)}', space=vmem, size = 0x12000, scoped, tag = 'internal scratch']
  %s0 = inlined_call_operand.vmem [shape: f32[8,4,16,8], index: 0, kind: input, shape index: {}]
  %s1 = inlined_call_operand.vmem [shape: f32[8,4,16,8], index: 1, kind: input, shape index: {}]
  %s2 = inlined_call_operand.vmem [shape: f32[8,4,16,8], index: 2, kind: input, shape index: {}]
  %s3 = inlined_call_operand.vmem [shape: f32[4,16,16], index: 3, kind: input, shape index: {}]
  %s4 = inlined_call_operand.vmem [shape: f32[4,16,16], index: 4, kind: input, shape index: {}]
  %s5 = inlined_call_operand.vmem [shape: f32[8,4,16,8], index: 5, kind: output, shape index: {}]
  %s6 = sld [smem:[#allocation0]]
  $region53: #{_lambda_.48} parent=0
    _
  %s8 = ssub.s32 1, %s6
  %s9 = scalar_select 0, %s8, %s6
  loop: start=0, step=1, limit=10
  $region2: #{_lambda_.48} parent=0 // loop_pre_header
    _
  $region3: #{_lambda_.48} parent=0 // loop_header
    %s11 = sphi 0, %s15
    %p12 = scmp.ge.s32.totalorder %s11, 10
    %s18 = sphi 0, %s30
    %s19 = sphi 0, %s26
    %s20 = sphi 0, %s18
    %s21 = sphi 0, %s19
    %s22 = sphi 0, %s20
    %s23 = sphi 0, %s21
    %s37 = sphi 0, %s39
    %s40 = sphi 0, %s37
    %s41 = sphi 0, %s40
    %s57 = sphi 0, %s41
    %s67 = sphi 0, %s69
    %s70 = sphi 0, %s67
    %s71 = sphi 0, %s70
    %s87 = sphi 0, %s71
    %s97 = sphi 0, %s99
    %s100 = sphi 0, %s97
    %s101 = sphi 0, %s100
    %s117 = sphi 0, %s101
    %s121 = sphi 0, %s121
    %s123 = sphi 0, %s121
    %s124 = sphi 0, %s123
    %s138 = sphi 0, %s124
    %s144 = sphi 0, %s146
    %s147 = sphi 0, %s144
    %s148 = sphi 0, %s147
    %s164 = sphi 0, %s148
    %s174 = sphi 0, %s176
    %s177 = sphi 0, %s174
    %s178 = sphi 0, %s177
    %s194 = sphi 0, %s178
  $region4: #{_lambda_.48} parent=0 // loop_header_branch
    %14 = sbr.rel (%p12) target = $region8
  $region5: #{_lambda_.48} parent=0 // loop_body
    %s16 = ssub.s32 %s11, 1
    %s17 = ssub.s32 %s11, 2
    %s24 = sadd.s32 1, %s19
    %p25 = scmp.ge.s32.totalorder %s24, 4
    %s26 = scalar_select %p25, 0, %s24
    %s27 = sadd.s32 1, %s18
    %s28 = scalar_select %p25, %s27, %s18
    %p29 = scmp.ge.s32.totalorder %s28, 2
    %s30 = scalar_select %p29, 0, %s28
    %s31 = smul.u32 %s18, 4
    %s32 = sadd.s32 %s31, %s19
    %s33 = smul.u32 %s30, 4
    %s34 = sadd.s32 %s33, %s26
    %s35 = ssub.s32 %s32, %s34
    %p36 = scmp.eq.s32.totalorder %s35, 0
    %s38 = sadd.s32 %s37, 1
    %s39 = scalar_select %p36, %s37, %s38
    %p42 = pneg %p36
    %p43 = scmp.eq.s32.totalorder %s11, 7
    %p44 = por %p42, %p43
    %p45 = scmp.ne.s32.totalorder %s37, %s40
    %p46 = scmp.eq.s32.totalorder %s11, 0
    %p47 = por %p45, %p46
    %p48 = scmp.ne.s32.totalorder %s37, %s40
    %p49 = scmp.eq.s32.totalorder %s16, 7
    %p50 = por %p48, %p49
    %p51 = scmp.ne.s32.totalorder %s40, %s41
    %p52 = scmp.eq.s32.totalorder %s16, 0
    %p53 = por %p51, %p52
    %p54 = scmp.ne.s32.totalorder %s40, %s41
    %p55 = scmp.eq.s32.totalorder %s17, 7
    %p56 = por %p54, %p55
    %p58 = scmp.ne.s32.totalorder %s41, %s57
    %p59 = scmp.eq.s32.totalorder %s17, 0
    %p60 = por %p58, %p59
    %s61 = smul.u32 %s18, 4
    %s62 = sadd.s32 %s61, %s19
    %s63 = smul.u32 %s30, 4
    %s64 = sadd.s32 %s63, %s26
    %s65 = ssub.s32 %s62, %s64
    %p66 = scmp.eq.s32.totalorder %s65, 0
    %s68 = sadd.s32 %s67, 1
    %s69 = scalar_select %p66, %s67, %s68
    %p72 = pneg %p66
    %p73 = scmp.eq.s32.totalorder %s11, 7
    %p74 = por %p72, %p73
    %p75 = scmp.ne.s32.totalorder %s67, %s70
    %p76 = scmp.eq.s32.totalorder %s11, 0
    %p77 = por %p75, %p76
    %p78 = scmp.ne.s32.totalorder %s67, %s70
    %p79 = scmp.eq.s32.totalorder %s16, 7
    %p80 = por %p78, %p79
    %p81 = scmp.ne.s32.totalorder %s70, %s71
    %p82 = scmp.eq.s32.totalorder %s16, 0
    %p83 = por %p81, %p82
    %p84 = scmp.ne.s32.totalorder %s70, %s71
    %p85 = scmp.eq.s32.totalorder %s17, 7
    %p86 = por %p84, %p85
    %p88 = scmp.ne.s32.totalorder %s71, %s87
    %p89 = scmp.eq.s32.totalorder %s17, 0
    %p90 = por %p88, %p89
    %s91 = smul.u32 %s18, 4
    %s92 = sadd.s32 %s91, %s19
    %s93 = smul.u32 %s30, 4
    %s94 = sadd.s32 %s93, %s26
    %s95 = ssub.s32 %s92, %s94
    %p96 = scmp.eq.s32.totalorder %s95, 0
    %s98 = sadd.s32 %s97, 1
    %s99 = scalar_select %p96, %s97, %s98
    %p102 = pneg %p96
    %p103 = scmp.eq.s32.totalorder %s11, 7
    %p104 = por %p102, %p103
    %p105 = scmp.ne.s32.totalorder %s97, %s100
    %p106 = scmp.eq.s32.totalorder %s11, 0
    %p107 = por %p105, %p106
    %p108 = scmp.ne.s32.totalorder %s97, %s100
    %p109 = scmp.eq.s32.totalorder %s16, 7
    %p110 = por %p108, %p109
    %p111 = scmp.ne.s32.totalorder %s100, %s101
    %p112 = scmp.eq.s32.totalorder %s16, 0
    %p113 = por %p111, %p112
    %p114 = scmp.ne.s32.totalorder %s100, %s101
    %p115 = scmp.eq.s32.totalorder %s17, 7
    %p116 = por %p114, %p115
    %p118 = scmp.ne.s32.totalorder %s101, %s117
    %p119 = scmp.eq.s32.totalorder %s17, 0
    %p120 = por %p118, %p119
    %s122 = sadd.s32 %s121, 1
    %p125 = scmp.eq.s32.totalorder %s11, 7
    %p126 = scmp.ne.s32.totalorder %s121, %s123
    %p127 = scmp.eq.s32.totalorder %s11, 0
    %p128 = por %p126, %p127
    %p129 = scmp.ne.s32.totalorder %s121, %s123
    %p130 = scmp.eq.s32.totalorder %s16, 7
    %p131 = por %p129, %p130
    %p132 = scmp.ne.s32.totalorder %s123, %s124
    %p133 = scmp.eq.s32.totalorder %s16, 0
    %p134 = por %p132, %p133
    %p135 = scmp.ne.s32.totalorder %s123, %s124
    %p136 = scmp.eq.s32.totalorder %s17, 7
    %p137 = por %p135, %p136
    %p139 = scmp.ne.s32.totalorder %s124, %s138
    %p140 = scmp.eq.s32.totalorder %s17, 0
    %p141 = por %p139, %p140
    %s142 = ssub.s32 %s19, %s26
    %p143 = scmp.eq.s32.totalorder %s142, 0
    %s145 = sadd.s32 %s144, 1
    %s146 = scalar_select %p143, %s144, %s145
    %p149 = pneg %p143
    %p150 = scmp.eq.s32.totalorder %s11, 7
    %p151 = por %p149, %p150
    %p152 = scmp.ne.s32.totalorder %s144, %s147
    %p153 = scmp.eq.s32.totalorder %s11, 0
    %p154 = por %p152, %p153
    %p155 = scmp.ne.s32.totalorder %s144, %s147
    %p156 = scmp.eq.s32.totalorder %s16, 7
    %p157 = por %p155, %p156
    %p158 = scmp.ne.s32.totalorder %s147, %s148
    %p159 = scmp.eq.s32.totalorder %s16, 0
    %p160 = por %p158, %p159
    %p161 = scmp.ne.s32.totalorder %s147, %s148
    %p162 = scmp.eq.s32.totalorder %s17, 7
    %p163 = por %p161, %p162
    %p165 = scmp.ne.s32.totalorder %s148, %s164
    %p166 = scmp.eq.s32.totalorder %s17, 0
    %p167 = por %p165, %p166
    %s168 = smul.u32 %s18, 4
    %s169 = sadd.s32 %s168, %s19
    %s170 = smul.u32 %s30, 4
    %s171 = sadd.s32 %s170, %s26
    %s172 = ssub.s32 %s169, %s171
    %p173 = scmp.eq.s32.totalorder %s172, 0
    %s175 = sadd.s32 %s174, 1
    %s176 = scalar_select %p173, %s174, %s175
    %p179 = pneg %p173
    %p180 = scmp.eq.s32.totalorder %s11, 7
    %p181 = por %p179, %p180
    %p182 = scmp.ne.s32.totalorder %s174, %s177
    %p183 = scmp.eq.s32.totalorder %s11, 0
    %p184 = por %p182, %p183
    %p185 = scmp.ne.s32.totalorder %s174, %s177
    %p186 = scmp.eq.s32.totalorder %s16, 7
    %p187 = por %p185, %p186
    %p188 = scmp.ne.s32.totalorder %s177, %s178
    %p189 = scmp.eq.s32.totalorder %s16, 0
    %p190 = por %p188, %p189
    %p191 = scmp.ne.s32.totalorder %s177, %s178
    %p192 = scmp.eq.s32.totalorder %s17, 7
    %p193 = por %p191, %p192
    %p195 = scmp.ne.s32.totalorder %s178, %s194
    %p196 = scmp.eq.s32.totalorder %s17, 0
    %p197 = por %p195, %p196
    %p198 = scmp.le.s32.totalorder 1, %s11
    %p199 = scmp.lt.s32.totalorder %s11, 9
    %p200 = pnand %p198, %p199
    %p201 = pneg %p200
    // Predicated region
    $region9: #{_lambda_.48} parent=5 // pred_check
      _
    $region10: #{_lambda_.48} parent=5 // pred_check_branch
      %203 = sbr.rel (%p200) target = $region12
    $region11: #{_lambda_.48} parent=5 // pred_region
      %s204 = ssub.s32 %s11, 1
      // Predicated region
      $region13: #{_lambda_.48} parent=11 // pred_check
        %p205 = pneg %p134
      $region14: #{_lambda_.48} parent=11 // pred_check_branch
        %207 = sbr.rel (%p205) target = $region16
      $region15: #{_lambda_.48} parent=11 // pred_region
        _
      $region16: #{_lambda_.48} parent=11 // pred_fallthru
        _
    $region12: #{_lambda_.48} parent=5 // pred_fallthru
      _
    %p208 = scmp.lt.s32.totalorder %s11, 8
    // Predicated region
    $region17: #{_lambda_.48} parent=5 // pred_check
      %p209 = pneg %p208
    $region18: #{_lambda_.48} parent=5 // pred_check_branch
      %211 = sbr.rel (%p209) target = $region20
    $region19: #{_lambda_.48} parent=5 // pred_region
      // Predicated region
      $region21: #{_lambda_.48} parent=19 // pred_check
        %p212 = pneg %p47
      $region22: #{_lambda_.48} parent=19 // pred_check_branch
        %214 = sbr.rel (%p212) target = $region24
      $region23: #{_lambda_.48} parent=19 // pred_region
        %s215 = smul.u32 %s18, 4
        %s216 = sadd.s32 %s215, %s19
        %p217 = scmp.lt.s32.totalorder %s216, 7
        %s218 = scalar_select %p217, %s216, 7
        %s219 = smul.addr %s218, 8
        %s220 = smul.addr %s219, 8
        %s221 = scalar_lea.vmem %s0, %s220
        %s222 = smul.u32 %s18, 4
        %s223 = sadd.s32 %s222, %s19
      $region24: #{_lambda_.48} parent=19 // pred_fallthru
        _
      // Predicated region
      $region25: #{_lambda_.48} parent=19 // pred_check
        %p224 = pneg %p77
      $region26: #{_lambda_.48} parent=19 // pred_check_branch
        %226 = sbr.rel (%p224) target = $region28
      $region27: #{_lambda_.48} parent=19 // pred_region
        %s227 = smul.u32 %s18, 4
        %s228 = sadd.s32 %s227, %s19
        %p229 = scmp.lt.s32.totalorder %s228, 7
        %s230 = scalar_select %p229, %s228, 7
        %s231 = smul.addr %s230, 8
        %s232 = smul.addr %s231, 8
        %s233 = scalar_lea.vmem %s1, %s232
        %s234 = smul.u32 %s18, 4
        %s235 = sadd.s32 %s234, %s19
      $region28: #{_lambda_.48} parent=19 // pred_fallthru
        _
      // Predicated region
      $region29: #{_lambda_.48} parent=19 // pred_check
        %p236 = pneg %p107
      $region30: #{_lambda_.48} parent=19 // pred_check_branch
        %238 = sbr.rel (%p236) target = $region32
      $region31: #{_lambda_.48} parent=19 // pred_region
        %s239 = smul.u32 %s18, 4
        %s240 = sadd.s32 %s239, %s19
        %p241 = scmp.lt.s32.totalorder %s240, 7
        %s242 = scalar_select %p241, %s240, 7
        %s243 = smul.addr %s242, 8
        %s244 = smul.addr %s243, 8
        %s245 = scalar_lea.vmem %s2, %s244
        %s246 = smul.u32 %s18, 4
        %s247 = sadd.s32 %s246, %s19
      $region32: #{_lambda_.48} parent=19 // pred_fallthru
        _
      // Predicated region
      $region33: #{_lambda_.48} parent=19 // pred_check
        %p248 = pneg %p154
      $region34: #{_lambda_.48} parent=19 // pred_check_branch
        %250 = sbr.rel (%p248) target = $region36
      $region35: #{_lambda_.48} parent=19 // pred_region
        %p251 = scmp.lt.s32.totalorder %s19, 3
        %s252 = scalar_select %p251, %s19, 3
        %s253 = smul.addr %s252, 2
        %s254 = smul.addr %s253, 8
        %s255 = scalar_lea.vmem %s4, %s254
      $region36: #{_lambda_.48} parent=19 // pred_fallthru
        _
    $region20: #{_lambda_.48} parent=5 // pred_fallthru
      _
    %p256 = scmp.le.s32.totalorder 1, %s11
    %p257 = scmp.lt.s32.totalorder %s11, 9
    %p258 = pnand %p256, %p257
    %p259 = pneg %p258
    // Predicated region
    $region37: #{_lambda_.48} parent=5 // pred_check
      _
    $region38: #{_lambda_.48} parent=5 // pred_check_branch
      %261 = sbr.rel (%p258) target = $region40
    $region39: #{_lambda_.48} parent=5 // pred_region
      %s262 = ssub.s32 %s11, 1
      %s263 = smul.u32 %s20, 4
      %s264 = sadd.s32 %s263, %s21
      %p265 = scmp.lt.s32.totalorder %s264, 7
      %s266 = scalar_select %p265, %s264, 7
      %s267 = smul.addr %s266, 8
      %s268 = smul.addr %s267, 8
      %s269 = scalar_lea.vmem %s0, %s268
      %p270 = pneg %p53
      %p271 = pneg %p50
      %s272 = smul.u32 %s20, 4
      %s273 = sadd.s32 %s272, %s21
      %p274 = scmp.lt.s32.totalorder %s273, 7
      %s275 = scalar_select %p274, %s273, 7
      %s276 = smul.addr %s275, 8
      %s277 = smul.addr %s276, 8
      %s278 = scalar_lea.vmem %s1, %s277
      %p279 = pneg %p83
      %p280 = pneg %p80
      %s281 = smul.u32 %s20, 4
      %s282 = sadd.s32 %s281, %s21
      %p283 = scmp.lt.s32.totalorder %s282, 7
      %s284 = scalar_select %p283, %s282, 7
      %s285 = smul.addr %s284, 8
      %s286 = smul.addr %s285, 8
      %s287 = scalar_lea.vmem %s2, %s286
      %p288 = pneg %p113
      %p289 = pneg %p110
      %p290 = pneg %p134
      %p291 = pneg %p131
      %p292 = scmp.lt.s32.totalorder %s21, 3
      %s293 = scalar_select %p292, %s21, 3
      %s294 = smul.addr %s293, 2
      %s295 = smul.addr %s294, 8
      %s296 = scalar_lea.vmem %s4, %s295
      %p297 = pneg %p160
      %p298 = pneg %p157
      %p299 = pneg %p190
      %p300 = pneg %p187
      %s301 = smul.u32 %s20, 4
      %s302 = sadd.s32 %s301, %s21
      %p303 = scmp.lt.s32.totalorder %s302, 7
      %s304 = scalar_select %p303, %s302, 7
      %s305 = smul.addr %s304, 8
      %s306 = smul.addr %s305, 8
      %s307 = scalar_lea.vmem %s5, %s306
      %s308 = smul.u32 %s20, 4
      %s309 = sadd.s32 %s308, %s21
      %p310 = scmp.lt.s32.totalorder %s309, 7
      %s311 = scalar_select %p310, %s309, 7
      %s312 = smul.addr %s311, 8
      %s313 = smul.addr %s312, 8
      %s314 = scalar_lea.vmem %s0, %s313
      %s315 = smul.u32 %s20, 4
      %s316 = sadd.s32 %s315, %s21
      %s317 = smul.u32 %s20, 4
      %s318 = sadd.s32 %s317, %s21
      %p319 = scmp.lt.s32.totalorder %s318, 7
      %s320 = scalar_select %p319, %s318, 7
      %s321 = smul.addr %s320, 8
      %s322 = smul.addr %s321, 8
      %s323 = scalar_lea.vmem %s1, %s322
      %s324 = smul.u32 %s20, 4
      %s325 = sadd.s32 %s324, %s21
      %s326 = smul.u32 %s20, 4
      %s327 = sadd.s32 %s326, %s21
      %p328 = scmp.lt.s32.totalorder %s327, 7
      %s329 = scalar_select %p328, %s327, 7
      %s330 = smul.addr %s329, 8
      %s331 = smul.addr %s330, 8
      %s332 = scalar_lea.vmem %s2, %s331
      %s333 = smul.u32 %s20, 4
      %s334 = sadd.s32 %s333, %s21
      %p335 = scmp.lt.s32.totalorder %s21, 3
      %s336 = scalar_select %p335, %s21, 3
      %s337 = smul.addr %s336, 2
      %s338 = smul.addr %s337, 8
      %s339 = scalar_lea.vmem %s4, %s338
      %s340 = smul.u32 %s20, 4
      %s341 = sadd.s32 %s340, %s21
      %p342 = scmp.lt.s32.totalorder %s341, 7
      %s343 = scalar_select %p342, %s341, 7
      %s344 = smul.addr %s343, 8
      %s345 = smul.addr %s344, 8
      %s346 = scalar_lea.vmem %s5, %s345
      %s347 = smul.u32 %s20, 4
      %s348 = sadd.s32 %s347, %s21
      %v349 = vld [vmem:[%s314] sm:$0xff]
      %v350 = vld [vmem:[%s314 + $0x8] sm:$0xff]
      %v351 = vld [vmem:[%s314 + $0x10] sm:$0xff]
      %v352 = vld [vmem:[%s314 + $0x18] sm:$0xff]
      %v353 = vld [vmem:[%s314 + $0x20] sm:$0xff]
      %v354 = vld [vmem:[%s314 + $0x28] sm:$0xff]
      %v355 = vld [vmem:[%s314 + $0x30] sm:$0xff]
      %v356 = vld [vmem:[%s314 + $0x38] sm:$0xff]
      %v357 = vmul.f32 %v349, 0.35355338
      %v358 = vmul.f32 %v350, 0.35355338
      %v359 = vmul.f32 %v351, 0.35355338
      %v360 = vmul.f32 %v352, 0.35355338
      %v361 = vmul.f32 %v353, 0.35355338
      %v362 = vmul.f32 %v354, 0.35355338
      %v363 = vmul.f32 %v355, 0.35355338
      %v364 = vmul.f32 %v356, 0.35355338
      %v365 = vld [vmem:[%s323] sm:$0xff]
      %v366 = vld [vmem:[%s323 + $0x8] sm:$0xff]
      %v367 = vld [vmem:[%s323 + $0x10] sm:$0xff]
      %v368 = vld [vmem:[%s323 + $0x18] sm:$0xff]
      %v369 = vld [vmem:[%s323 + $0x20] sm:$0xff]
      %v370 = vld [vmem:[%s323 + $0x28] sm:$0xff]
      %v371 = vld [vmem:[%s323 + $0x30] sm:$0xff]
      %v372 = vld [vmem:[%s323 + $0x38] sm:$0xff]
      %v373 = vld [vmem:[%s332] sm:$0xff]
      %v374 = vld [vmem:[%s332 + $0x8] sm:$0xff]
      %v375 = vld [vmem:[%s332 + $0x10] sm:$0xff]
      %v376 = vld [vmem:[%s332 + $0x18] sm:$0xff]
      %v377 = vld [vmem:[%s332 + $0x20] sm:$0xff]
      %v378 = vld [vmem:[%s332 + $0x28] sm:$0xff]
      %v379 = vld [vmem:[%s332 + $0x30] sm:$0xff]
      %v380 = vld [vmem:[%s332 + $0x38] sm:$0xff]
      %v381 = vld [vmem:[%s3] sm:$0xff]
      %v382 = vld [vmem:[%s3 + $0x8] sm:$0xff]
      %v383 = vld [vmem:[%s3 + $0x10] sm:$0xff]
      %v384 = vld [vmem:[%s3 + $0x18] sm:$0xff]
      %v385 = vld [vmem:[%s3 + $0x20] sm:$0xff]
      %v386 = vld [vmem:[%s3 + $0x28] sm:$0xff]
      %v387 = vld [vmem:[%s3 + $0x30] sm:$0xff]
      %v388 = vld [vmem:[%s3 + $0x38] sm:$0xff]
      %vm389 = vcmask 64512
      %v391 = vsel %vm389, %v357, 0
      %v394 = vsel %vm389, %v358, 0
      %v397 = vsel %vm389, %v365, 0
      %v400 = vsel %vm389, %v366, 0
      %402 = vmatprep.subr.mxu0 0.0
      %403 = vmatpush1.xpose.msra.mxu0 0.0
      %404 = vmatprep.subr.mxu0 0.0
      %405 = vmatpush1.xpose.msra.mxu0 0.0
      %406 = vmatprep.subr.mxu0 0.0
      %407 = vmatpush1.xpose.msra.mxu0 0.0
      %408 = vmatprep.subr.mxu0 0.0
      %409 = vmatpush1.xpose.msra.mxu0 0.0
      %410 = vmatprep.subr.mxu0 0.0
      %411 = vmatpush1.xpose.msra.mxu0 0.0
      %412 = vmatprep.subr.mxu0 0.0
      %413 = vmatpush1.xpose.msra.mxu0 0.0
      %414 = vmatprep.subr.mxu0 0.0
      %415 = vmatpush1.xpose.msra.mxu0 0.0
      %416 = vmatprep.subr.mxu0 0.0
      %417 = vmatpush1.xpose.msra.mxu0 0.0
      %418 = vmatprep.subr.mxu0 0.0
      %419 = vmatpush1.xpose.msra.mxu0 0.0
      %420 = vmatprep.subr.mxu0 0.0
      %421 = vmatpush1.xpose.msra.mxu0 0.0
      %422 = vmatprep.subr.mxu0 0.0
      %423 = vmatpush1.xpose.msra.mxu0 0.0
      %424 = vmatprep.subr.mxu0 0.0
      %425 = vmatpush1.xpose.msra.mxu0 0.0
      %426 = vmatprep.subr.mxu0 0.0
      %427 = vmatpush1.xpose.msra.mxu0 0.0
      %428 = vmatprep.subr.mxu0 0.0
      %429 = vmatpush1.xpose.msra.mxu0 0.0
      %430 = vmatprep.subr.mxu0 0.0
      %431 = vmatpush1.xpose.msra.mxu0 %v400
      %432 = vmatprep.subr.mxu0 0.0
      %433 = vmatpush1.xpose.msra.mxu0 %v397
      %434 = vmatprep.subr.mxu0 0.0
      %435 = vmatpush2.xpose.msra.mxu0 0.0
      %436 = vmatprep.subr.mxu0 0.0
      %437 = vmatpush2.xpose.msra.mxu0 0.0
      %438 = vmatprep.subr.mxu0 0.0
      %439 = vmatpush2.xpose.msra.mxu0 0.0
      %440 = vmatprep.subr.mxu0 0.0
      %441 = vmatpush2.xpose.msra.mxu0 0.0
      %442 = vmatprep.subr.mxu0 0.0
      %443 = vmatpush2.xpose.msra.mxu0 0.0
      %444 = vmatprep.subr.mxu0 0.0
      %445 = vmatpush2.xpose.msra.mxu0 0.0
      %446 = vmatprep.subr.mxu0 0.0
      %447 = vmatpush2.xpose.msra.mxu0 0.0
      %448 = vmatprep.subr.mxu0 0.0
      %449 = vmatpush2.xpose.msra.mxu0 0.0
      %450 = vmatprep.subr.mxu0 0.0
      %451 = vmatpush2.xpose.msra.mxu0 0.0
      %452 = vmatprep.subr.mxu0 0.0
      %453 = vmatpush2.xpose.msra.mxu0 0.0
      %454 = vmatprep.subr.mxu0 0.0
      %455 = vmatpush2.xpose.msra.mxu0 0.0
      %456 = vmatprep.subr.mxu0 0.0
      %457 = vmatpush2.xpose.msra.mxu0 0.0
      %458 = vmatprep.subr.mxu0 0.0
      %459 = vmatpush2.xpose.msra.mxu0 0.0
      %460 = vmatprep.subr.mxu0 0.0
      %461 = vmatpush2.xpose.msra.mxu0 0.0
      %462 = vmatprep.subr.mxu0 0.0
      %463 = vmatpush2.xpose.msra.mxu0 0.0
      %464 = vmatprep.subr.mxu0 0.0
      %465 = vmatpush2.xpose.msra.mxu0 0.0
      %466 = vmatprep.mubr.f32.mxu0 0.0
      %467 = vmatmul.mubr.f32.gmra.mxu0 %v391
      %v468 = vpop.f32.mrf.mxu0
      %v469 = vadd.f32 %v381, %v468
      %v470 = vpop.f32.mrf.mxu0
      %471 = vmatprep.mubr.f32.mxu0 0.0
      %472 = vmatmul.mubr.f32.gmra.mxu0 %v394
      %v473 = vpop.f32.mrf.mxu0
      %v474 = vadd.f32 %v382, %v473
      %v475 = vpop.f32.mrf.mxu0
      %476 = vdwg.mxu0
      %v478 = vsel %vm389, %v359, 0
      %v481 = vsel %vm389, %v360, 0
      %v484 = vsel %vm389, %v367, 0
      %v487 = vsel %vm389, %v368, 0
      %489 = vmatprep.subr.mxu0 0.0
      %490 = vmatpush1.xpose.msra.mxu0 0.0
      %491 = vmatprep.subr.mxu0 0.0
      %492 = vmatpush1.xpose.msra.mxu0 0.0
      %493 = vmatprep.subr.mxu0 0.0
      %494 = vmatpush1.xpose.msra.mxu0 0.0
      %495 = vmatprep.subr.mxu0 0.0
      %496 = vmatpush1.xpose.msra.mxu0 0.0
      %497 = vmatprep.subr.mxu0 0.0
      %498 = vmatpush1.xpose.msra.mxu0 0.0
      %499 = vmatprep.subr.mxu0 0.0
      %500 = vmatpush1.xpose.msra.mxu0 0.0
      %501 = vmatprep.subr.mxu0 0.0
      %502 = vmatpush1.xpose.msra.mxu0 0.0
      %503 = vmatprep.subr.mxu0 0.0
      %504 = vmatpush1.xpose.msra.mxu0 0.0
      %505 = vmatprep.subr.mxu0 0.0
      %506 = vmatpush1.xpose.msra.mxu0 0.0
      %507 = vmatprep.subr.mxu0 0.0
      %508 = vmatpush1.xpose.msra.mxu0 0.0
      %509 = vmatprep.subr.mxu0 0.0
      %510 = vmatpush1.xpose.msra.mxu0 0.0
      %511 = vmatprep.subr.mxu0 0.0
      %512 = vmatpush1.xpose.msra.mxu0 0.0
      %513 = vmatprep.subr.mxu0 0.0
      %514 = vmatpush1.xpose.msra.mxu0 0.0
      %515 = vmatprep.subr.mxu0 0.0
      %516 = vmatpush1.xpose.msra.mxu0 0.0
      %517 = vmatprep.subr.mxu0 0.0
      %518 = vmatpush1.xpose.msra.mxu0 %v487
      %519 = vmatprep.subr.mxu0 0.0
      %520 = vmatpush1.xpose.msra.mxu0 %v484
      %521 = vmatprep.subr.mxu0 0.0
      %522 = vmatpush2.xpose.msra.mxu0 0.0
      %523 = vmatprep.subr.mxu0 0.0
      %524 = vmatpush2.xpose.msra.mxu0 0.0
      %525 = vmatprep.subr.mxu0 0.0
      %526 = vmatpush2.xpose.msra.mxu0 0.0
      %527 = vmatprep.subr.mxu0 0.0
      %528 = vmatpush2.xpose.msra.mxu0 0.0
      %529 = vmatprep.subr.mxu0 0.0
      %530 = vmatpush2.xpose.msra.mxu0 0.0
      %531 = vmatprep.subr.mxu0 0.0
      %532 = vmatpush2.xpose.msra.mxu0 0.0
      %533 = vmatprep.subr.mxu0 0.0
      %534 = vmatpush2.xpose.msra.mxu0 0.0
      %535 = vmatprep.subr.mxu0 0.0
      %536 = vmatpush2.xpose.msra.mxu0 0.0
      %537 = vmatprep.subr.mxu0 0.0
      %538 = vmatpush2.xpose.msra.mxu0 0.0
      %539 = vmatprep.subr.mxu0 0.0
      %540 = vmatpush2.xpose.msra.mxu0 0.0
      %541 = vmatprep.subr.mxu0 0.0
      %542 = vmatpush2.xpose.msra.mxu0 0.0
      %543 = vmatprep.subr.mxu0 0.0
      %544 = vmatpush2.xpose.msra.mxu0 0.0
      %545 = vmatprep.subr.mxu0 0.0
      %546 = vmatpush2.xpose.msra.mxu0 0.0
      %547 = vmatprep.subr.mxu0 0.0
      %548 = vmatpush2.xpose.msra.mxu0 0.0
      %549 = vmatprep.subr.mxu0 0.0
      %550 = vmatpush2.xpose.msra.mxu0 0.0
      %551 = vmatprep.subr.mxu0 0.0
      %552 = vmatpush2.xpose.msra.mxu0 0.0
      %553 = vmatprep.mubr.f32.mxu0 0.0
      %554 = vmatmul.mubr.f32.gmra.mxu0 %v478
      %v555 = vpop.f32.mrf.mxu0
      %v556 = vadd.f32 %v383, %v555
      %v557 = vpop.f32.mrf.mxu0
      %558 = vmatprep.mubr.f32.mxu0 0.0
      %559 = vmatmul.mubr.f32.gmra.mxu0 %v481
      %v560 = vpop.f32.mrf.mxu0
      %v561 = vadd.f32 %v384, %v560
      %v562 = vpop.f32.mrf.mxu0
      %563 = vdwg.mxu0
      %v565 = vsel %vm389, %v361, 0
      %v568 = vsel %vm389, %v362, 0
      %v571 = vsel %vm389, %v369, 0
      %v574 = vsel %vm389, %v370, 0
      %576 = vmatprep.subr.mxu0 0.0
      %577 = vmatpush1.xpose.msra.mxu0 0.0
      %578 = vmatprep.subr.mxu0 0.0
      %579 = vmatpush1.xpose.msra.mxu0 0.0
      %580 = vmatprep.subr.mxu0 0.0
      %581 = vmatpush1.xpose.msra.mxu0 0.0
      %582 = vmatprep.subr.mxu0 0.0
      %583 = vmatpush1.xpose.msra.mxu0 0.0
      %584 = vmatprep.subr.mxu0 0.0
      %585 = vmatpush1.xpose.msra.mxu0 0.0
      %586 = vmatprep.subr.mxu0 0.0
      %587 = vmatpush1.xpose.msra.mxu0 0.0
      %588 = vmatprep.subr.mxu0 0.0
      %589 = vmatpush1.xpose.msra.mxu0 0.0
      %590 = vmatprep.subr.mxu0 0.0
      %591 = vmatpush1.xpose.msra.mxu0 0.0
      %592 = vmatprep.subr.mxu0 0.0
      %593 = vmatpush1.xpose.msra.mxu0 0.0
      %594 = vmatprep.subr.mxu0 0.0
      %595 = vmatpush1.xpose.msra.mxu0 0.0
      %596 = vmatprep.subr.mxu0 0.0
      %597 = vmatpush1.xpose.msra.mxu0 0.0
      %598 = vmatprep.subr.mxu0 0.0
      %599 = vmatpush1.xpose.msra.mxu0 0.0
      %600 = vmatprep.subr.mxu0 0.0
      %601 = vmatpush1.xpose.msra.mxu0 0.0
      %602 = vmatprep.subr.mxu0 0.0
      %603 = vmatpush1.xpose.msra.mxu0 0.0
      %604 = vmatprep.subr.mxu0 0.0
      %605 = vmatpush1.xpose.msra.mxu0 %v574
      %606 = vmatprep.subr.mxu0 0.0
      %607 = vmatpush1.xpose.msra.mxu0 %v571
      %608 = vmatprep.subr.mxu0 0.0
      %609 = vmatpush2.xpose.msra.mxu0 0.0
      %610 = vmatprep.subr.mxu0 0.0
      %611 = vmatpush2.xpose.msra.mxu0 0.0
      %612 = vmatprep.subr.mxu0 0.0
      %613 = vmatpush2.xpose.msra.mxu0 0.0
      %614 = vmatprep.subr.mxu0 0.0
      %615 = vmatpush2.xpose.msra.mxu0 0.0
      %616 = vmatprep.subr.mxu0 0.0
      %617 = vmatpush2.xpose.msra.mxu0 0.0
      %618 = vmatprep.subr.mxu0 0.0
      %619 = vmatpush2.xpose.msra.mxu0 0.0
      %620 = vmatprep.subr.mxu0 0.0
      %621 = vmatpush2.xpose.msra.mxu0 0.0
      %622 = vmatprep.subr.mxu0 0.0
      %623 = vmatpush2.xpose.msra.mxu0 0.0
      %624 = vmatprep.subr.mxu0 0.0
      %625 = vmatpush2.xpose.msra.mxu0 0.0
      %626 = vmatprep.subr.mxu0 0.0
      %627 = vmatpush2.xpose.msra.mxu0 0.0
      %628 = vmatprep.subr.mxu0 0.0
      %629 = vmatpush2.xpose.msra.mxu0 0.0
      %630 = vmatprep.subr.mxu0 0.0
      %631 = vmatpush2.xpose.msra.mxu0 0.0
      %632 = vmatprep.subr.mxu0 0.0
      %633 = vmatpush2.xpose.msra.mxu0 0.0
      %634 = vmatprep.subr.mxu0 0.0
      %635 = vmatpush2.xpose.msra.mxu0 0.0
      %636 = vmatprep.subr.mxu0 0.0
      %637 = vmatpush2.xpose.msra.mxu0 0.0
      %638 = vmatprep.subr.mxu0 0.0
      %639 = vmatpush2.xpose.msra.mxu0 0.0
      %640 = vmatprep.mubr.f32.mxu0 0.0
      %641 = vmatmul.mubr.f32.gmra.mxu0 %v565
      %v642 = vpop.f32.mrf.mxu0
      %v643 = vadd.f32 %v385, %v642
      %v644 = vpop.f32.mrf.mxu0
      %645 = vmatprep.mubr.f32.mxu0 0.0
      %646 = vmatmul.mubr.f32.gmra.mxu0 %v568
      %v647 = vpop.f32.mrf.mxu0
      %v648 = vadd.f32 %v386, %v647
      %v649 = vpop.f32.mrf.mxu0
      %650 = vdwg.mxu0
      %v652 = vsel %vm389, %v363, 0
      %v655 = vsel %vm389, %v364, 0
      %v658 = vsel %vm389, %v371, 0
      %v661 = vsel %vm389, %v372, 0
      %663 = vmatprep.subr.mxu0 0.0
      %664 = vmatpush1.xpose.msra.mxu0 0.0
      %665 = vmatprep.subr.mxu0 0.0
      %666 = vmatpush1.xpose.msra.mxu0 0.0
      %667 = vmatprep.subr.mxu0 0.0
      %668 = vmatpush1.xpose.msra.mxu0 0.0
      %669 = vmatprep.subr.mxu0 0.0
      %670 = vmatpush1.xpose.msra.mxu0 0.0
      %671 = vmatprep.subr.mxu0 0.0
      %672 = vmatpush1.xpose.msra.mxu0 0.0
      %673 = vmatprep.subr.mxu0 0.0
      %674 = vmatpush1.xpose.msra.mxu0 0.0
      %675 = vmatprep.subr.mxu0 0.0
      %676 = vmatpush1.xpose.msra.mxu0 0.0
      %677 = vmatprep.subr.mxu0 0.0
      %678 = vmatpush1.xpose.msra.mxu0 0.0
      %679 = vmatprep.subr.mxu0 0.0
      %680 = vmatpush1.xpose.msra.mxu0 0.0
      %681 = vmatprep.subr.mxu0 0.0
      %682 = vmatpush1.xpose.msra.mxu0 0.0
      %683 = vmatprep.subr.mxu0 0.0
      %684 = vmatpush1.xpose.msra.mxu0 0.0
      %685 = vmatprep.subr.mxu0 0.0
      %686 = vmatpush1.xpose.msra.mxu0 0.0
      %687 = vmatprep.subr.mxu0 0.0
      %688 = vmatpush1.xpose.msra.mxu0 0.0
      %689 = vmatprep.subr.mxu0 0.0
      %690 = vmatpush1.xpose.msra.mxu0 0.0
      %691 = vmatprep.subr.mxu0 0.0
      %692 = vmatpush1.xpose.msra.mxu0 %v661
      %693 = vmatprep.subr.mxu0 0.0
      %694 = vmatpush1.xpose.msra.mxu0 %v658
      %695 = vmatprep.subr.mxu0 0.0
      %696 = vmatpush2.xpose.msra.mxu0 0.0
      %697 = vmatprep.subr.mxu0 0.0
      %698 = vmatpush2.xpose.msra.mxu0 0.0
      %699 = vmatprep.subr.mxu0 0.0
      %700 = vmatpush2.xpose.msra.mxu0 0.0
      %701 = vmatprep.subr.mxu0 0.0
      %702 = vmatpush2.xpose.msra.mxu0 0.0
      %703 = vmatprep.subr.mxu0 0.0
      %704 = vmatpush2.xpose.msra.mxu0 0.0
      %705 = vmatprep.subr.mxu0 0.0
      %706 = vmatpush2.xpose.msra.mxu0 0.0
      %707 = vmatprep.subr.mxu0 0.0
      %708 = vmatpush2.xpose.msra.mxu0 0.0
      %709 = vmatprep.subr.mxu0 0.0
      %710 = vmatpush2.xpose.msra.mxu0 0.0
      %711 = vmatprep.subr.mxu0 0.0
      %712 = vmatpush2.xpose.msra.mxu0 0.0
      %713 = vmatprep.subr.mxu0 0.0
      %714 = vmatpush2.xpose.msra.mxu0 0.0
      %715 = vmatprep.subr.mxu0 0.0
      %716 = vmatpush2.xpose.msra.mxu0 0.0
      %717 = vmatprep.subr.mxu0 0.0
      %718 = vmatpush2.xpose.msra.mxu0 0.0
      %719 = vmatprep.subr.mxu0 0.0
      %720 = vmatpush2.xpose.msra.mxu0 0.0
      %721 = vmatprep.subr.mxu0 0.0
      %722 = vmatpush2.xpose.msra.mxu0 0.0
      %723 = vmatprep.subr.mxu0 0.0
      %724 = vmatpush2.xpose.msra.mxu0 0.0
      %725 = vmatprep.subr.mxu0 0.0
      %726 = vmatpush2.xpose.msra.mxu0 0.0
      %727 = vmatprep.mubr.f32.mxu0 0.0
      %728 = vmatmul.mubr.f32.gmra.mxu0 %v652
      %v729 = vpop.f32.mrf.mxu0
      %v730 = vadd.f32 %v387, %v729
      %v731 = vpop.f32.mrf.mxu0
      %732 = vmatprep.mubr.f32.mxu0 0.0
      %733 = vmatmul.mubr.f32.gmra.mxu0 %v655
      %v734 = vpop.f32.mrf.mxu0
      %v735 = vadd.f32 %v388, %v734
      %v736 = vpop.f32.mrf.mxu0
      %737 = vdwg.mxu0
      %v738 = vld [vmem:[%s339] sm:$0xff]
      %v739 = vld [vmem:[%s339 + $0x8] sm:$0xff]
      %v740 = vadd.f32 %v469, %v738
      %v741 = vadd.f32 %v474, %v739
      %v742 = vadd.f32 %v556, %v738
      %v743 = vadd.f32 %v561, %v739
      %v744 = vadd.f32 %v643, %v738
      %v745 = vadd.f32 %v648, %v739
      %v746 = vadd.f32 %v730, %v738
      %v747 = vadd.f32 %v735, %v739
      %vm748 = vcmask 130048
      %v749 = vsel %vm748, %v740, -inf
      %750 = vmax.xlane.f32.xlu0 %v749
      %v751 = vpop.xlane.xlu0 %750
      %v752 = vsel %vm748, %v741, -inf
      %753 = vmax.xlane.f32.xlu0 %v752
      %v754 = vpop.xlane.xlu0 %753
      %v755 = vsel %vm748, %v742, -inf
      %756 = vmax.xlane.f32.xlu0 %v755
      %v757 = vpop.xlane.xlu0 %756
      %v758 = vsel %vm748, %v743, -inf
      %759 = vmax.xlane.f32.xlu0 %v758
      %v760 = vpop.xlane.xlu0 %759
      %v761 = vsel %vm748, %v744, -inf
      %762 = vmax.xlane.f32.xlu0 %v761
      %v763 = vpop.xlane.xlu0 %762
      %v764 = vsel %vm748, %v745, -inf
      %765 = vmax.xlane.f32.xlu0 %v764
      %v766 = vpop.xlane.xlu0 %765
      %v767 = vsel %vm748, %v746, -inf
      %768 = vmax.xlane.f32.xlu0 %v767
      %v769 = vpop.xlane.xlu0 %768
      %v770 = vsel %vm748, %v747, -inf
      %771 = vmax.xlane.f32.xlu0 %v770
      %v772 = vpop.xlane.xlu0 %771
      %v773 = vsub.f32 %v740, %v751
      %v774 = vsub.f32 %v741, %v754
      %v775 = vsub.f32 %v742, %v757
      %v776 = vsub.f32 %v743, %v760
      %v777 = vsub.f32 %v744, %v763
      %v778 = vsub.f32 %v745, %v766
      %v779 = vsub.f32 %v746, %v769
      %v780 = vsub.f32 %v747, %v772
      %v781 = vmul.f32 %v773, 1.442695
      %v782 = vpow.pop %v781
      %v783 = vmul.f32 %v774, 1.442695
      %v784 = vpow.pop %v783
      %v785 = vmul.f32 %v775, 1.442695
      %v786 = vpow.pop %v785
      %v787 = vmul.f32 %v776, 1.442695
      %v788 = vpow.pop %v787
      %v789 = vmul.f32 %v777, 1.442695
      %v790 = vpow.pop %v789
      %v791 = vmul.f32 %v778, 1.442695
      %v792 = vpow.pop %v791
      %v793 = vmul.f32 %v779, 1.442695
      %v794 = vpow.pop %v793
      %v795 = vmul.f32 %v780, 1.442695
      %v796 = vpow.pop %v795
      %v797 = vsel %vm748, %v782, 0.0
      %798 = vadd.xlane.f32.xlu0 %v797
      %v799 = vpop.xlane.xlu0 %798
      %v800 = vsel %vm748, %v784, 0.0
      %801 = vadd.xlane.f32.xlu0 %v800
      %v802 = vpop.xlane.xlu0 %801
      %v803 = vsel %vm748, %v786, 0.0
      %804 = vadd.xlane.f32.xlu0 %v803
      %v805 = vpop.xlane.xlu0 %804
      %v806 = vsel %vm748, %v788, 0.0
      %807 = vadd.xlane.f32.xlu0 %v806
      %v808 = vpop.xlane.xlu0 %807
      %v809 = vsel %vm748, %v790, 0.0
      %810 = vadd.xlane.f32.xlu0 %v809
      %v811 = vpop.xlane.xlu0 %810
      %v812 = vsel %vm748, %v792, 0.0
      %813 = vadd.xlane.f32.xlu0 %v812
      %v814 = vpop.xlane.xlu0 %813
      %v815 = vsel %vm748, %v794, 0.0
      %816 = vadd.xlane.f32.xlu0 %v815
      %v817 = vpop.xlane.xlu0 %816
      %v818 = vsel %vm748, %v796, 0.0
      %819 = vadd.xlane.f32.xlu0 %v818
      %v820 = vpop.xlane.xlu0 %819
      %v822 = vsel %vm748, %v782, 0
      %v825 = vsel %vm748, %v784, 0
      %827 = vmatprep.subr.mxu0 0.0
      %828 = vmatpush1.msra.mxu0 0.0
      %829 = vmatprep.subr.mxu0 0.0
      %830 = vmatpush1.msra.mxu0 0.0
      %831 = vmatprep.subr.mxu0 0.0
      %832 = vmatpush1.msra.mxu0 0.0
      %833 = vmatprep.subr.mxu0 0.0
      %834 = vmatpush1.msra.mxu0 0.0
      %835 = vmatprep.subr.mxu0 0.0
      %836 = vmatpush1.msra.mxu0 0.0
      %837 = vmatprep.subr.mxu0 0.0
      %838 = vmatpush1.msra.mxu0 0.0
      %839 = vmatprep.subr.mxu0 0.0
      %840 = vmatpush1.msra.mxu0 0.0
      %841 = vmatprep.subr.mxu0 0.0
      %842 = vmatpush1.msra.mxu0 0.0
      %843 = vmatprep.subr.mxu0 0.0
      %844 = vmatpush1.msra.mxu0 0.0
      %845 = vmatprep.subr.mxu0 0.0
      %846 = vmatpush1.msra.mxu0 0.0
      %847 = vmatprep.subr.mxu0 0.0
      %848 = vmatpush1.msra.mxu0 0.0
      %849 = vmatprep.subr.mxu0 0.0
      %850 = vmatpush1.msra.mxu0 0.0
      %851 = vmatprep.subr.mxu0 0.0
      %852 = vmatpush1.msra.mxu0 0.0
      %853 = vmatprep.subr.mxu0 0.0
      %854 = vmatpush1.msra.mxu0 0.0
      %855 = vmatprep.subr.mxu0 0.0
      %856 = vmatpush1.msra.mxu0 %v374
      %857 = vmatprep.subr.mxu0 0.0
      %858 = vmatpush1.msra.mxu0 %v373
      %859 = vmatprep.subr.mxu0 0.0
      %860 = vmatpush2.msra.mxu0 0.0
      %861 = vmatprep.subr.mxu0 0.0
      %862 = vmatpush2.msra.mxu0 0.0
      %863 = vmatprep.subr.mxu0 0.0
      %864 = vmatpush2.msra.mxu0 0.0
      %865 = vmatprep.subr.mxu0 0.0
      %866 = vmatpush2.msra.mxu0 0.0
      %867 = vmatprep.subr.mxu0 0.0
      %868 = vmatpush2.msra.mxu0 0.0
      %869 = vmatprep.subr.mxu0 0.0
      %870 = vmatpush2.msra.mxu0 0.0
      %871 = vmatprep.subr.mxu0 0.0
      %872 = vmatpush2.msra.mxu0 0.0
      %873 = vmatprep.subr.mxu0 0.0
      %874 = vmatpush2.msra.mxu0 0.0
      %875 = vmatprep.subr.mxu0 0.0
      %876 = vmatpush2.msra.mxu0 0.0
      %877 = vmatprep.subr.mxu0 0.0
      %878 = vmatpush2.msra.mxu0 0.0
      %879 = vmatprep.subr.mxu0 0.0
      %880 = vmatpush2.msra.mxu0 0.0
      %881 = vmatprep.subr.mxu0 0.0
      %882 = vmatpush2.msra.mxu0 0.0
      %883 = vmatprep.subr.mxu0 0.0
      %884 = vmatpush2.msra.mxu0 0.0
      %885 = vmatprep.subr.mxu0 0.0
      %886 = vmatpush2.msra.mxu0 0.0
      %887 = vmatprep.subr.mxu0 0.0
      %888 = vmatpush2.msra.mxu0 0.0
      %889 = vmatprep.subr.mxu0 0.0
      %890 = vmatpush2.msra.mxu0 0.0
      %891 = vmatprep.mubr.f32.mxu0 0.0
      %892 = vmatmul.mubr.f32.gmra.mxu0 %v822
      %v893 = vpop.f32.mrf.mxu0
      %v894 = vadd.f32 0.0, %v893
      %v895 = vpop.f32.mrf.mxu0
      %896 = vmatprep.mubr.f32.mxu0 0.0
      %897 = vmatmul.mubr.f32.gmra.mxu0 %v825
      %v898 = vpop.f32.mrf.mxu0
      %v899 = vadd.f32 0.0, %v898
      %v900 = vpop.f32.mrf.mxu0
      %901 = vdwg.mxu0
      %v903 = vsel %vm748, %v786, 0
      %v906 = vsel %vm748, %v788, 0
      %908 = vmatprep.subr.mxu0 0.0
      %909 = vmatpush1.msra.mxu0 0.0
      %910 = vmatprep.subr.mxu0 0.0
      %911 = vmatpush1.msra.mxu0 0.0
      %912 = vmatprep.subr.mxu0 0.0
      %913 = vmatpush1.msra.mxu0 0.0
      %914 = vmatprep.subr.mxu0 0.0
      %915 = vmatpush1.msra.mxu0 0.0
      %916 = vmatprep.subr.mxu0 0.0
      %917 = vmatpush1.msra.mxu0 0.0
      %918 = vmatprep.subr.mxu0 0.0
      %919 = vmatpush1.msra.mxu0 0.0
      %920 = vmatprep.subr.mxu0 0.0
      %921 = vmatpush1.msra.mxu0 0.0
      %922 = vmatprep.subr.mxu0 0.0
      %923 = vmatpush1.msra.mxu0 0.0
      %924 = vmatprep.subr.mxu0 0.0
      %925 = vmatpush1.msra.mxu0 0.0
      %926 = vmatprep.subr.mxu0 0.0
      %927 = vmatpush1.msra.mxu0 0.0
      %928 = vmatprep.subr.mxu0 0.0
      %929 = vmatpush1.msra.mxu0 0.0
      %930 = vmatprep.subr.mxu0 0.0
      %931 = vmatpush1.msra.mxu0 0.0
      %932 = vmatprep.subr.mxu0 0.0
      %933 = vmatpush1.msra.mxu0 0.0
      %934 = vmatprep.subr.mxu0 0.0
      %935 = vmatpush1.msra.mxu0 0.0
      %936 = vmatprep.subr.mxu0 0.0
      %937 = vmatpush1.msra.mxu0 %v376
      %938 = vmatprep.subr.mxu0 0.0
      %939 = vmatpush1.msra.mxu0 %v375
      %940 = vmatprep.subr.mxu0 0.0
      %941 = vmatpush2.msra.mxu0 0.0
      %942 = vmatprep.subr.mxu0 0.0
      %943 = vmatpush2.msra.mxu0 0.0
      %944 = vmatprep.subr.mxu0 0.0
      %945 = vmatpush2.msra.mxu0 0.0
      %946 = vmatprep.subr.mxu0 0.0
      %947 = vmatpush2.msra.mxu0 0.0
      %948 = vmatprep.subr.mxu0 0.0
      %949 = vmatpush2.msra.mxu0 0.0
      %950 = vmatprep.subr.mxu0 0.0
      %951 = vmatpush2.msra.mxu0 0.0
      %952 = vmatprep.subr.mxu0 0.0
      %953 = vmatpush2.msra.mxu0 0.0
      %954 = vmatprep.subr.mxu0 0.0
      %955 = vmatpush2.msra.mxu0 0.0
      %956 = vmatprep.subr.mxu0 0.0
      %957 = vmatpush2.msra.mxu0 0.0
      %958 = vmatprep.subr.mxu0 0.0
      %959 = vmatpush2.msra.mxu0 0.0
      %960 = vmatprep.subr.mxu0 0.0
      %961 = vmatpush2.msra.mxu0 0.0
      %962 = vmatprep.subr.mxu0 0.0
      %963 = vmatpush2.msra.mxu0 0.0
      %964 = vmatprep.subr.mxu0 0.0
      %965 = vmatpush2.msra.mxu0 0.0
      %966 = vmatprep.subr.mxu0 0.0
      %967 = vmatpush2.msra.mxu0 0.0
      %968 = vmatprep.subr.mxu0 0.0
      %969 = vmatpush2.msra.mxu0 0.0
      %970 = vmatprep.subr.mxu0 0.0
      %971 = vmatpush2.msra.mxu0 0.0
      %972 = vmatprep.mubr.f32.mxu0 0.0
      %973 = vmatmul.mubr.f32.gmra.mxu0 %v903
      %v974 = vpop.f32.mrf.mxu0
      %v975 = vadd.f32 0.0, %v974
      %v976 = vpop.f32.mrf.mxu0
      %977 = vmatprep.mubr.f32.mxu0 0.0
      %978 = vmatmul.mubr.f32.gmra.mxu0 %v906
      %v979 = vpop.f32.mrf.mxu0
      %v980 = vadd.f32 0.0, %v979
      %v981 = vpop.f32.mrf.mxu0
      %982 = vdwg.mxu0
      %v984 = vsel %vm748, %v790, 0
      %v987 = vsel %vm748, %v792, 0
      %989 = vmatprep.subr.mxu0 0.0
      %990 = vmatpush1.msra.mxu0 0.0
      %991 = vmatprep.subr.mxu0 0.0
      %992 = vmatpush1.msra.mxu0 0.0
      %993 = vmatprep.subr.mxu0 0.0
      %994 = vmatpush1.msra.mxu0 0.0
      %995 = vmatprep.subr.mxu0 0.0
      %996 = vmatpush1.msra.mxu0 0.0
      %997 = vmatprep.subr.mxu0 0.0
      %998 = vmatpush1.msra.mxu0 0.0
      %999 = vmatprep.subr.mxu0 0.0
      %1000 = vmatpush1.msra.mxu0 0.0
      %1001 = vmatprep.subr.mxu0 0.0
      %1002 = vmatpush1.msra.mxu0 0.0
      %1003 = vmatprep.subr.mxu0 0.0
      %1004 = vmatpush1.msra.mxu0 0.0
      %1005 = vmatprep.subr.mxu0 0.0
      %1006 = vmatpush1.msra.mxu0 0.0
      %1007 = vmatprep.subr.mxu0 0.0
      %1008 = vmatpush1.msra.mxu0 0.0
      %1009 = vmatprep.subr.mxu0 0.0
      %1010 = vmatpush1.msra.mxu0 0.0
      %1011 = vmatprep.subr.mxu0 0.0
      %1012 = vmatpush1.msra.mxu0 0.0
      %1013 = vmatprep.subr.mxu0 0.0
      %1014 = vmatpush1.msra.mxu0 0.0
      %1015 = vmatprep.subr.mxu0 0.0
      %1016 = vmatpush1.msra.mxu0 0.0
      %1017 = vmatprep.subr.mxu0 0.0
      %1018 = vmatpush1.msra.mxu0 %v378
      %1019 = vmatprep.subr.mxu0 0.0
      %1020 = vmatpush1.msra.mxu0 %v377
      %1021 = vmatprep.subr.mxu0 0.0
      %1022 = vmatpush2.msra.mxu0 0.0
      %1023 = vmatprep.subr.mxu0 0.0
      %1024 = vmatpush2.msra.mxu0 0.0
      %1025 = vmatprep.subr.mxu0 0.0
      %1026 = vmatpush2.msra.mxu0 0.0
      %1027 = vmatprep.subr.mxu0 0.0
      %1028 = vmatpush2.msra.mxu0 0.0
      %1029 = vmatprep.subr.mxu0 0.0
      %1030 = vmatpush2.msra.mxu0 0.0
      %1031 = vmatprep.subr.mxu0 0.0
      %1032 = vmatpush2.msra.mxu0 0.0
      %1033 = vmatprep.subr.mxu0 0.0
      %1034 = vmatpush2.msra.mxu0 0.0
      %1035 = vmatprep.subr.mxu0 0.0
      %1036 = vmatpush2.msra.mxu0 0.0
      %1037 = vmatprep.subr.mxu0 0.0
      %1038 = vmatpush2.msra.mxu0 0.0
      %1039 = vmatprep.subr.mxu0 0.0
      %1040 = vmatpush2.msra.mxu0 0.0
      %1041 = vmatprep.subr.mxu0 0.0
      %1042 = vmatpush2.msra.mxu0 0.0
      %1043 = vmatprep.subr.mxu0 0.0
      %1044 = vmatpush2.msra.mxu0 0.0
      %1045 = vmatprep.subr.mxu0 0.0
      %1046 = vmatpush2.msra.mxu0 0.0
      %1047 = vmatprep.subr.mxu0 0.0
      %1048 = vmatpush2.msra.mxu0 0.0
      %1049 = vmatprep.subr.mxu0 0.0
      %1050 = vmatpush2.msra.mxu0 0.0
      %1051 = vmatprep.subr.mxu0 0.0
      %1052 = vmatpush2.msra.mxu0 0.0
      %1053 = vmatprep.mubr.f32.mxu0 0.0
      %1054 = vmatmul.mubr.f32.gmra.mxu0 %v984
      %v1055 = vpop.f32.mrf.mxu0
      %v1056 = vadd.f32 0.0, %v1055
      %v1057 = vpop.f32.mrf.mxu0
      %1058 = vmatprep.mubr.f32.mxu0 0.0
      %1059 = vmatmul.mubr.f32.gmra.mxu0 %v987
      %v1060 = vpop.f32.mrf.mxu0
      %v1061 = vadd.f32 0.0, %v1060
      %v1062 = vpop.f32.mrf.mxu0
      %1063 = vdwg.mxu0
      %v1065 = vsel %vm748, %v794, 0
      %v1068 = vsel %vm748, %v796, 0
      %1070 = vmatprep.subr.mxu0 0.0
      %1071 = vmatpush1.msra.mxu0 0.0
      %1072 = vmatprep.subr.mxu0 0.0
      %1073 = vmatpush1.msra.mxu0 0.0
      %1074 = vmatprep.subr.mxu0 0.0
      %1075 = vmatpush1.msra.mxu0 0.0
      %1076 = vmatprep.subr.mxu0 0.0
      %1077 = vmatpush1.msra.mxu0 0.0
      %1078 = vmatprep.subr.mxu0 0.0
      %1079 = vmatpush1.msra.mxu0 0.0
      %1080 = vmatprep.subr.mxu0 0.0
      %1081 = vmatpush1.msra.mxu0 0.0
      %1082 = vmatprep.subr.mxu0 0.0
      %1083 = vmatpush1.msra.mxu0 0.0
      %1084 = vmatprep.subr.mxu0 0.0
      %1085 = vmatpush1.msra.mxu0 0.0
      %1086 = vmatprep.subr.mxu0 0.0
      %1087 = vmatpush1.msra.mxu0 0.0
      %1088 = vmatprep.subr.mxu0 0.0
      %1089 = vmatpush1.msra.mxu0 0.0
      %1090 = vmatprep.subr.mxu0 0.0
      %1091 = vmatpush1.msra.mxu0 0.0
      %1092 = vmatprep.subr.mxu0 0.0
      %1093 = vmatpush1.msra.mxu0 0.0
      %1094 = vmatprep.subr.mxu0 0.0
      %1095 = vmatpush1.msra.mxu0 0.0
      %1096 = vmatprep.subr.mxu0 0.0
      %1097 = vmatpush1.msra.mxu0 0.0
      %1098 = vmatprep.subr.mxu0 0.0
      %1099 = vmatpush1.msra.mxu0 %v380
      %1100 = vmatprep.subr.mxu0 0.0
      %1101 = vmatpush1.msra.mxu0 %v379
      %1102 = vmatprep.subr.mxu0 0.0
      %1103 = vmatpush2.msra.mxu0 0.0
      %1104 = vmatprep.subr.mxu0 0.0
      %1105 = vmatpush2.msra.mxu0 0.0
      %1106 = vmatprep.subr.mxu0 0.0
      %1107 = vmatpush2.msra.mxu0 0.0
      %1108 = vmatprep.subr.mxu0 0.0
      %1109 = vmatpush2.msra.mxu0 0.0
      %1110 = vmatprep.subr.mxu0 0.0
      %1111 = vmatpush2.msra.mxu0 0.0
      %1112 = vmatprep.subr.mxu0 0.0
      %1113 = vmatpush2.msra.mxu0 0.0
      %1114 = vmatprep.subr.mxu0 0.0
      %1115 = vmatpush2.msra.mxu0 0.0
      %1116 = vmatprep.subr.mxu0 0.0
      %1117 = vmatpush2.msra.mxu0 0.0
      %1118 = vmatprep.subr.mxu0 0.0
      %1119 = vmatpush2.msra.mxu0 0.0
      %1120 = vmatprep.subr.mxu0 0.0
      %1121 = vmatpush2.msra.mxu0 0.0
      %1122 = vmatprep.subr.mxu0 0.0
      %1123 = vmatpush2.msra.mxu0 0.0
      %1124 = vmatprep.subr.mxu0 0.0
      %1125 = vmatpush2.msra.mxu0 0.0
      %1126 = vmatprep.subr.mxu0 0.0
      %1127 = vmatpush2.msra.mxu0 0.0
      %1128 = vmatprep.subr.mxu0 0.0
      %1129 = vmatpush2.msra.mxu0 0.0
      %1130 = vmatprep.subr.mxu0 0.0
      %1131 = vmatpush2.msra.mxu0 0.0
      %1132 = vmatprep.subr.mxu0 0.0
      %1133 = vmatpush2.msra.mxu0 0.0
      %1134 = vmatprep.mubr.f32.mxu0 0.0
      %1135 = vmatmul.mubr.f32.gmra.mxu0 %v1065
      %v1136 = vpop.f32.mrf.mxu0
      %v1137 = vadd.f32 0.0, %v1136
      %v1138 = vpop.f32.mrf.mxu0
      %1139 = vmatprep.mubr.f32.mxu0 0.0
      %1140 = vmatmul.mubr.f32.gmra.mxu0 %v1068
      %v1141 = vpop.f32.mrf.mxu0
      %v1142 = vadd.f32 0.0, %v1141
      %v1143 = vpop.f32.mrf.mxu0
      %1144 = vdwg.mxu0
      %v1145 = vrcp.pop %v799
      %v1146 = vmul.f32 %v894, %v1145
      %v1147 = vrcp.pop %v802
      %v1148 = vmul.f32 %v899, %v1147
      %v1149 = vrcp.pop %v805
      %v1150 = vmul.f32 %v975, %v1149
      %v1151 = vrcp.pop %v808
      %v1152 = vmul.f32 %v980, %v1151
      %v1153 = vrcp.pop %v811
      %v1154 = vmul.f32 %v1056, %v1153
      %v1155 = vrcp.pop %v814
      %v1156 = vmul.f32 %v1061, %v1155
      %v1157 = vrcp.pop %v817
      %v1158 = vmul.f32 %v1137, %v1157
      %v1159 = vrcp.pop %v820
      %v1160 = vmul.f32 %v1142, %v1159
      %1161 = vst.msk [vmem:[%s346] sm:$0xff] %vm389, %v1146
      %1162 = vst.msk [vmem:[%s346 + $0x8] sm:$0xff] %vm389, %v1148
      %1163 = vst.msk [vmem:[%s346 + $0x10] sm:$0xff] %vm389, %v1150
      %1164 = vst.msk [vmem:[%s346 + $0x18] sm:$0xff] %vm389, %v1152
      %1165 = vst.msk [vmem:[%s346 + $0x20] sm:$0xff] %vm389, %v1154
      %1166 = vst.msk [vmem:[%s346 + $0x28] sm:$0xff] %vm389, %v1156
      %1167 = vst.msk [vmem:[%s346 + $0x30] sm:$0xff] %vm389, %v1158
      %1168 = vst.msk [vmem:[%s346 + $0x38] sm:$0xff] %vm389, %v1160
      %s1169 = smul.u32 %s20, 4
      %s1170 = sadd.s32 %s1169, %s21
      %p1171 = scmp.lt.s32.totalorder %s1170, 7
      %s1172 = scalar_select %p1171, %s1170, 7
      %s1173 = smul.addr %s1172, 8
      %s1174 = smul.addr %s1173, 8
      %s1175 = scalar_lea.vmem %s5, %s1174
      // Predicated region
      $region41: #{_lambda_.48} parent=39 // pred_check
        %p1176 = pneg %p187
      $region42: #{_lambda_.48} parent=39 // pred_check_branch
        %1178 = sbr.rel (%p1176) target = $region44
      $region43: #{_lambda_.48} parent=39 // pred_region
        %s1179 = smul.u32 %s20, 4
        %s1180 = sadd.s32 %s1179, %s21
      $region44: #{_lambda_.48} parent=39 // pred_fallthru
        _
    $region40: #{_lambda_.48} parent=5 // pred_fallthru
      _
    %p1181 = scmp.le.s32.totalorder 2, %s11
    // Predicated region
    $region45: #{_lambda_.48} parent=5 // pred_check
      %p1182 = pneg %p1181
    $region46: #{_lambda_.48} parent=5 // pred_check_branch
      %1184 = sbr.rel (%p1182) target = $region48
    $region47: #{_lambda_.48} parent=5 // pred_region
      %s1185 = ssub.s32 %s11, 2
      // Predicated region
      $region49: #{_lambda_.48} parent=47 // pred_check
        %p1186 = pneg %p193
      $region50: #{_lambda_.48} parent=47 // pred_check_branch
        %1188 = sbr.rel (%p1186) target = $region52
      $region51: #{_lambda_.48} parent=47 // pred_region
        %s1189 = smul.u32 %s22, 4
        %s1190 = sadd.s32 %s1189, %s23
        %p1191 = scmp.lt.s32.totalorder %s1190, 7
        %s1192 = scalar_select %p1191, %s1190, 7
        %s1193 = smul.addr %s1192, 8
        %s1194 = smul.addr %s1193, 8
        %s1195 = scalar_lea.vmem %s5, %s1194
      $region52: #{_lambda_.48} parent=47 // pred_fallthru
        _
    $region48: #{_lambda_.48} parent=5 // pred_fallthru
      _
  $region6: #{_lambda_.48} parent=0 // loop_footer
    %s15 = sadd.s32 1, %s11
  $region7: #{_lambda_.48} parent=0 // loop_footer_branch
    %10 = sbr.rel target = $region3
  $region8: #{_lambda_.48} parent=0 // loop_exit
    _

// kernel: _lambda_.51
$region0: #{_lambda_.51}
  #allocation0 [shape = 'u32[]', space=smem, size = 0x4, offset = 0x4, fixed_abs, tag = 'smem constant byte address 0x4 - core index']
  #allocation1 [shape = 'u32[144,128]{1,0:T(1,128)}', space=vmem, size = 0x12000, scoped, tag = 'internal scratch']
  %s0 = inlined_call_operand.vmem [shape: f32[128,32], index: 0, kind: input, shape index: {}]
  %s1 = inlined_call_operand.vmem [shape: f32[1,32], index: 1, kind: input, shape index: {}]
  %s2 = inlined_call_operand.vmem [shape: f32[1,32], index: 2, kind: input, shape index: {}]
  %s3 = inlined_call_operand.vmem [shape: f32[128,32], index: 3, kind: output, shape index: {}]
  %s4 = sld [smem:[#allocation0]]
  $region22: #{_lambda_.51} parent=0
    _
  %s6 = ssub.s32 1, %s4
  %s7 = scalar_select 0, %s6, %s4
  // Predicated region
  $region2: #{_lambda_.51} parent=0 // pred_check
    _
  $region3: #{_lambda_.51} parent=0 // pred_check_branch
    %9 = sbr.rel (0) target = $region5
  $region4: #{_lambda_.51} parent=0 // pred_region
    _
  $region5: #{_lambda_.51} parent=0 // pred_fallthru
    _
  // Predicated region
  $region6: #{_lambda_.51} parent=0 // pred_check
    _
  $region7: #{_lambda_.51} parent=0 // pred_check_branch
    %11 = sbr.rel (0) target = $region9
  $region8: #{_lambda_.51} parent=0 // pred_region
    _
  $region9: #{_lambda_.51} parent=0 // pred_fallthru
    _
  // Predicated region
  $region10: #{_lambda_.51} parent=0 // pred_check
    _
  $region11: #{_lambda_.51} parent=0 // pred_check_branch
    %13 = sbr.rel (0) target = $region13
  $region12: #{_lambda_.51} parent=0 // pred_region
    _
  $region13: #{_lambda_.51} parent=0 // pred_fallthru
    _
  %v14 = vld [vmem:[%s0] sm:$0xff]
  %v15 = vld [vmem:[%s0 + $0x8] sm:$0xff]
  %v16 = vld [vmem:[%s0 + $0x10] sm:$0xff]
  %v17 = vld [vmem:[%s0 + $0x18] sm:$0xff]
  %v18 = vld [vmem:[%s0 + $0x20] sm:$0xff]
  %v19 = vld [vmem:[%s0 + $0x28] sm:$0xff]
  %v20 = vld [vmem:[%s0 + $0x30] sm:$0xff]
  %v21 = vld [vmem:[%s0 + $0x38] sm:$0xff]
  %v22 = vld [vmem:[%s0 + $0x40] sm:$0xff]
  %v23 = vld [vmem:[%s0 + $0x48] sm:$0xff]
  %v24 = vld [vmem:[%s0 + $0x50] sm:$0xff]
  %v25 = vld [vmem:[%s0 + $0x58] sm:$0xff]
  %v26 = vld [vmem:[%s0 + $0x60] sm:$0xff]
  %v27 = vld [vmem:[%s0 + $0x68] sm:$0xff]
  %v28 = vld [vmem:[%s0 + $0x70] sm:$0xff]
  %v29 = vld [vmem:[%s0 + $0x78] sm:$0xff]
  %vm30 = vcmask 261120
  %v31 = vsel %vm30, %v14, 0.0
  %32 = vadd.xlane.f32.xlu0 %v31
  %v33 = vpop.xlane.xlu0 %32
  %v34 = vsel %vm30, %v15, 0.0
  %35 = vadd.xlane.f32.xlu0 %v34
  %v36 = vpop.xlane.xlu0 %35
  %v37 = vsel %vm30, %v16, 0.0
  %38 = vadd.xlane.f32.xlu0 %v37
  %v39 = vpop.xlane.xlu0 %38
  %v40 = vsel %vm30, %v17, 0.0
  %41 = vadd.xlane.f32.xlu0 %v40
  %v42 = vpop.xlane.xlu0 %41
  %v43 = vsel %vm30, %v18, 0.0
  %44 = vadd.xlane.f32.xlu0 %v43
  %v45 = vpop.xlane.xlu0 %44
  %v46 = vsel %vm30, %v19, 0.0
  %47 = vadd.xlane.f32.xlu0 %v46
  %v48 = vpop.xlane.xlu0 %47
  %v49 = vsel %vm30, %v20, 0.0
  %50 = vadd.xlane.f32.xlu0 %v49
  %v51 = vpop.xlane.xlu0 %50
  %v52 = vsel %vm30, %v21, 0.0
  %53 = vadd.xlane.f32.xlu0 %v52
  %v54 = vpop.xlane.xlu0 %53
  %v55 = vsel %vm30, %v22, 0.0
  %56 = vadd.xlane.f32.xlu0 %v55
  %v57 = vpop.xlane.xlu0 %56
  %v58 = vsel %vm30, %v23, 0.0
  %59 = vadd.xlane.f32.xlu0 %v58
  %v60 = vpop.xlane.xlu0 %59
  %v61 = vsel %vm30, %v24, 0.0
  %62 = vadd.xlane.f32.xlu0 %v61
  %v63 = vpop.xlane.xlu0 %62
  %v64 = vsel %vm30, %v25, 0.0
  %65 = vadd.xlane.f32.xlu0 %v64
  %v66 = vpop.xlane.xlu0 %65
  %v67 = vsel %vm30, %v26, 0.0
  %68 = vadd.xlane.f32.xlu0 %v67
  %v69 = vpop.xlane.xlu0 %68
  %v70 = vsel %vm30, %v27, 0.0
  %71 = vadd.xlane.f32.xlu0 %v70
  %v72 = vpop.xlane.xlu0 %71
  %v73 = vsel %vm30, %v28, 0.0
  %74 = vadd.xlane.f32.xlu0 %v73
  %v75 = vpop.xlane.xlu0 %74
  %v76 = vsel %vm30, %v29, 0.0
  %77 = vadd.xlane.f32.xlu0 %v76
  %v78 = vpop.xlane.xlu0 %77
  %v79 = vrcp.pop 32.0
  %v80 = vmul.f32 %v33, %v79
  %v81 = vmul.f32 %v36, %v79
  %v82 = vmul.f32 %v39, %v79
  %v83 = vmul.f32 %v42, %v79
  %v84 = vmul.f32 %v45, %v79
  %v85 = vmul.f32 %v48, %v79
  %v86 = vmul.f32 %v51, %v79
  %v87 = vmul.f32 %v54, %v79
  %v88 = vmul.f32 %v57, %v79
  %v89 = vmul.f32 %v60, %v79
  %v90 = vmul.f32 %v63, %v79
  %v91 = vmul.f32 %v66, %v79
  %v92 = vmul.f32 %v69, %v79
  %v93 = vmul.f32 %v72, %v79
  %v94 = vmul.f32 %v75, %v79
  %v95 = vmul.f32 %v78, %v79
  %v96 = vsub.f32 %v14, %v80
  %v97 = vsub.f32 %v15, %v81
  %v98 = vsub.f32 %v16, %v82
  %v99 = vsub.f32 %v17, %v83
  %v100 = vsub.f32 %v18, %v84
  %v101 = vsub.f32 %v19, %v85
  %v102 = vsub.f32 %v20, %v86
  %v103 = vsub.f32 %v21, %v87
  %v104 = vsub.f32 %v22, %v88
  %v105 = vsub.f32 %v23, %v89
  %v106 = vsub.f32 %v24, %v90
  %v107 = vsub.f32 %v25, %v91
  %v108 = vsub.f32 %v26, %v92
  %v109 = vsub.f32 %v27, %v93
  %v110 = vsub.f32 %v28, %v94
  %v111 = vsub.f32 %v29, %v95
  %v112 = vmul.f32 %v96, %v96
  %v113 = vmul.f32 %v97, %v97
  %v114 = vmul.f32 %v98, %v98
  %v115 = vmul.f32 %v99, %v99
  %v116 = vmul.f32 %v100, %v100
  %v117 = vmul.f32 %v101, %v101
  %v118 = vmul.f32 %v102, %v102
  %v119 = vmul.f32 %v103, %v103
  %v120 = vmul.f32 %v104, %v104
  %v121 = vmul.f32 %v105, %v105
  %v122 = vmul.f32 %v106, %v106
  %v123 = vmul.f32 %v107, %v107
  %v124 = vmul.f32 %v108, %v108
  %v125 = vmul.f32 %v109, %v109
  %v126 = vmul.f32 %v110, %v110
  %v127 = vmul.f32 %v111, %v111
  %v128 = vsel %vm30, %v112, 0.0
  %129 = vadd.xlane.f32.xlu0 %v128
  %v130 = vpop.xlane.xlu0 %129
  %v131 = vsel %vm30, %v113, 0.0
  %132 = vadd.xlane.f32.xlu0 %v131
  %v133 = vpop.xlane.xlu0 %132
  %v134 = vsel %vm30, %v114, 0.0
  %135 = vadd.xlane.f32.xlu0 %v134
  %v136 = vpop.xlane.xlu0 %135
  %v137 = vsel %vm30, %v115, 0.0
  %138 = vadd.xlane.f32.xlu0 %v137
  %v139 = vpop.xlane.xlu0 %138
  %v140 = vsel %vm30, %v116, 0.0
  %141 = vadd.xlane.f32.xlu0 %v140
  %v142 = vpop.xlane.xlu0 %141
  %v143 = vsel %vm30, %v117, 0.0
  %144 = vadd.xlane.f32.xlu0 %v143
  %v145 = vpop.xlane.xlu0 %144
  %v146 = vsel %vm30, %v118, 0.0
  %147 = vadd.xlane.f32.xlu0 %v146
  %v148 = vpop.xlane.xlu0 %147
  %v149 = vsel %vm30, %v119, 0.0
  %150 = vadd.xlane.f32.xlu0 %v149
  %v151 = vpop.xlane.xlu0 %150
  %v152 = vsel %vm30, %v120, 0.0
  %153 = vadd.xlane.f32.xlu0 %v152
  %v154 = vpop.xlane.xlu0 %153
  %v155 = vsel %vm30, %v121, 0.0
  %156 = vadd.xlane.f32.xlu0 %v155
  %v157 = vpop.xlane.xlu0 %156
  %v158 = vsel %vm30, %v122, 0.0
  %159 = vadd.xlane.f32.xlu0 %v158
  %v160 = vpop.xlane.xlu0 %159
  %v161 = vsel %vm30, %v123, 0.0
  %162 = vadd.xlane.f32.xlu0 %v161
  %v163 = vpop.xlane.xlu0 %162
  %v164 = vsel %vm30, %v124, 0.0
  %165 = vadd.xlane.f32.xlu0 %v164
  %v166 = vpop.xlane.xlu0 %165
  %v167 = vsel %vm30, %v125, 0.0
  %168 = vadd.xlane.f32.xlu0 %v167
  %v169 = vpop.xlane.xlu0 %168
  %v170 = vsel %vm30, %v126, 0.0
  %171 = vadd.xlane.f32.xlu0 %v170
  %v172 = vpop.xlane.xlu0 %171
  %v173 = vsel %vm30, %v127, 0.0
  %174 = vadd.xlane.f32.xlu0 %v173
  %v175 = vpop.xlane.xlu0 %174
  %v176 = vmul.f32 %v130, %v79
  %v177 = vmul.f32 %v133, %v79
  %v178 = vmul.f32 %v136, %v79
  %v179 = vmul.f32 %v139, %v79
  %v180 = vmul.f32 %v142, %v79
  %v181 = vmul.f32 %v145, %v79
  %v182 = vmul.f32 %v148, %v79
  %v183 = vmul.f32 %v151, %v79
  %v184 = vmul.f32 %v154, %v79
  %v185 = vmul.f32 %v157, %v79
  %v186 = vmul.f32 %v160, %v79
  %v187 = vmul.f32 %v163, %v79
  %v188 = vmul.f32 %v166, %v79
  %v189 = vmul.f32 %v169, %v79
  %v190 = vmul.f32 %v172, %v79
  %v191 = vmul.f32 %v175, %v79
  %v192 = vadd.f32 %v176, 1e-05
  %v193 = vadd.f32 %v177, 1e-05
  %v194 = vadd.f32 %v178, 1e-05
  %v195 = vadd.f32 %v179, 1e-05
  %v196 = vadd.f32 %v180, 1e-05
  %v197 = vadd.f32 %v181, 1e-05
  %v198 = vadd.f32 %v182, 1e-05
  %v199 = vadd.f32 %v183, 1e-05
  %v200 = vadd.f32 %v184, 1e-05
  %v201 = vadd.f32 %v185, 1e-05
  %v202 = vadd.f32 %v186, 1e-05
  %v203 = vadd.f32 %v187, 1e-05
  %v204 = vadd.f32 %v188, 1e-05
  %v205 = vadd.f32 %v189, 1e-05
  %v206 = vadd.f32 %v190, 1e-05
  %v207 = vadd.f32 %v191, 1e-05
  %v208 = vrsqrt.pop %v192
  %v209 = vrsqrt.pop %v193
  %v210 = vrsqrt.pop %v194
  %v211 = vrsqrt.pop %v195
  %v212 = vrsqrt.pop %v196
  %v213 = vrsqrt.pop %v197
  %v214 = vrsqrt.pop %v198
  %v215 = vrsqrt.pop %v199
  %v216 = vrsqrt.pop %v200
  %v217 = vrsqrt.pop %v201
  %v218 = vrsqrt.pop %v202
  %v219 = vrsqrt.pop %v203
  %v220 = vrsqrt.pop %v204
  %v221 = vrsqrt.pop %v205
  %v222 = vrsqrt.pop %v206
  %v223 = vrsqrt.pop %v207
  %v224 = vmul.f32 %v96, %v208
  %v225 = vmul.f32 %v97, %v209
  %v226 = vmul.f32 %v98, %v210
  %v227 = vmul.f32 %v99, %v211
  %v228 = vmul.f32 %v100, %v212
  %v229 = vmul.f32 %v101, %v213
  %v230 = vmul.f32 %v102, %v214
  %v231 = vmul.f32 %v103, %v215
  %v232 = vmul.f32 %v104, %v216
  %v233 = vmul.f32 %v105, %v217
  %v234 = vmul.f32 %v106, %v218
  %v235 = vmul.f32 %v107, %v219
  %v236 = vmul.f32 %v108, %v220
  %v237 = vmul.f32 %v109, %v221
  %v238 = vmul.f32 %v110, %v222
  %v239 = vmul.f32 %v111, %v223
  %v240 = vld [vmem:[%s1] sm:$0x1]
  %v242 = vlaneseq
  %v243 = vshrl.u32 %v242, 7
  %v244 = vsub.s32 0, %v243
  %v245 = vrot.slane %v240, %v244
  %v247 = vmul.f32 %v224, %v245
  %v248 = vmul.f32 %v225, %v245
  %v249 = vmul.f32 %v226, %v245
  %v250 = vmul.f32 %v227, %v245
  %v251 = vmul.f32 %v228, %v245
  %v252 = vmul.f32 %v229, %v245
  %v253 = vmul.f32 %v230, %v245
  %v254 = vmul.f32 %v231, %v245
  %v255 = vmul.f32 %v232, %v245
  %v256 = vmul.f32 %v233, %v245
  %v257 = vmul.f32 %v234, %v245
  %v258 = vmul.f32 %v235, %v245
  %v259 = vmul.f32 %v236, %v245
  %v260 = vmul.f32 %v237, %v245
  %v261 = vmul.f32 %v238, %v245
  %v262 = vmul.f32 %v239, %v245
  %v263 = vld [vmem:[%s2] sm:$0x1]
  %v265 = vlaneseq
  %v266 = vshrl.u32 %v265, 7
  %v267 = vsub.s32 0, %v266
  %v268 = vrot.slane %v263, %v267
  %v270 = vadd.f32 %v247, %v268
  %v271 = vadd.f32 %v248, %v268
  %v272 = vadd.f32 %v249, %v268
  %v273 = vadd.f32 %v250, %v268
  %v274 = vadd.f32 %v251, %v268
  %v275 = vadd.f32 %v252, %v268
  %v276 = vadd.f32 %v253, %v268
  %v277 = vadd.f32 %v254, %v268
  %v278 = vadd.f32 %v255, %v268
  %v279 = vadd.f32 %v256, %v268
  %v280 = vadd.f32 %v257, %v268
  %v281 = vadd.f32 %v258, %v268
  %v282 = vadd.f32 %v259, %v268
  %v283 = vadd.f32 %v260, %v268
  %v284 = vadd.f32 %v261, %v268
  %v285 = vadd.f32 %v262, %v268
  %286 = vst.msk [vmem:[%s3] sm:$0xff] %vm30, %v270
  %287 = vst.msk [vmem:[%s3 + $0x8] sm:$0xff] %vm30, %v271
  %288 = vst.msk [vmem:[%s3 + $0x10] sm:$0xff] %vm30, %v272
  %289 = vst.msk [vmem:[%s3 + $0x18] sm:$0xff] %vm30, %v273
  %290 = vst.msk [vmem:[%s3 + $0x20] sm:$0xff] %vm30, %v274
  %291 = vst.msk [vmem:[%s3 + $0x28] sm:$0xff] %vm30, %v275
  %292 = vst.msk [vmem:[%s3 + $0x30] sm:$0xff] %vm30, %v276
  %293 = vst.msk [vmem:[%s3 + $0x38] sm:$0xff] %vm30, %v277
  %294 = vst.msk [vmem:[%s3 + $0x40] sm:$0xff] %vm30, %v278
  %295 = vst.msk [vmem:[%s3 + $0x48] sm:$0xff] %vm30, %v279
  %296 = vst.msk [vmem:[%s3 + $0x50] sm:$0xff] %vm30, %v280
  %297 = vst.msk [vmem:[%s3 + $0x58] sm:$0xff] %vm30, %v281
  %298 = vst.msk [vmem:[%s3 + $0x60] sm:$0xff] %vm30, %v282
  %299 = vst.msk [vmem:[%s3 + $0x68] sm:$0xff] %vm30, %v283
  %300 = vst.msk [vmem:[%s3 + $0x70] sm:$0xff] %vm30, %v284
  %301 = vst.msk [vmem:[%s3 + $0x78] sm:$0xff] %vm30, %v285
  // Predicated region
  $region14: #{_lambda_.51} parent=0 // pred_check
    _
  $region15: #{_lambda_.51} parent=0 // pred_check_branch
    %303 = sbr.rel (0) target = $region17
  $region16: #{_lambda_.51} parent=0 // pred_region
    _
  $region17: #{_lambda_.51} parent=0 // pred_fallthru
    _
  // Predicated region
  $region18: #{_lambda_.51} parent=0 // pred_check
    _
  $region19: #{_lambda_.51} parent=0 // pred_check_branch
    %305 = sbr.rel (0) target = $region21
  $region20: #{_lambda_.51} parent=0 // pred_region
    _
  $region21: #{_lambda_.51} parent=0 // pred_fallthru
    _

// kernel: _lambda_.44
$region0: #{_lambda_.44}
  #allocation0 [shape = 'u32[]', space=smem, size = 0x4, offset = 0x4, fixed_abs, tag = 'smem constant byte address 0x4 - core index']
  #allocation1 [shape = 'u32[144,128]{1,0:T(1,128)}', space=vmem, size = 0x12000, scoped, tag = 'internal scratch']
  #allocation2 [shape = 'f32[128,128]{1,0:T(8,128)}', space=vmem, size = 0x10000, scoped, tag = 'scratch operand']
  %s0 = inlined_call_operand.vmem [shape: bf16[128,128], index: 0, kind: input, shape index: {}]
  %s1 = inlined_call_operand.vmem [shape: bf16[128,128], index: 1, kind: input, shape index: {}]
  %s2 = inlined_call_operand.vmem [shape: f32[1,128], index: 2, kind: input, shape index: {}, may-alias: {2,3}]
  %s3 = inlined_call_operand.vmem [shape: f32[1,128], index: 3, kind: input, shape index: {}, may-alias: {2,3}]
  %s4 = inlined_call_operand.vmem [shape: f32[128,128], index: 4, kind: output, shape index: {}]
  %s5 = sld [smem:[#allocation0]]
  $region34: #{_lambda_.44} parent=0
    _
  %s7 = ssub.s32 1, %s5
  %s8 = scalar_select 0, %s7, %s5
  // Predicated region
  $region2: #{_lambda_.44} parent=0 // pred_check
    _
  $region3: #{_lambda_.44} parent=0 // pred_check_branch
    %10 = sbr.rel (0) target = $region5
  $region4: #{_lambda_.44} parent=0 // pred_region
    _
  $region5: #{_lambda_.44} parent=0 // pred_fallthru
    _
  // Predicated region
  $region6: #{_lambda_.44} parent=0 // pred_check
    _
  $region7: #{_lambda_.44} parent=0 // pred_check_branch
    %12 = sbr.rel (0) target = $region9
  $region8: #{_lambda_.44} parent=0 // pred_region
    _
  $region9: #{_lambda_.44} parent=0 // pred_fallthru
    _
  // Predicated region
  $region10: #{_lambda_.44} parent=0 // pred_check
    _
  $region11: #{_lambda_.44} parent=0 // pred_check_branch
    %14 = sbr.rel (0) target = $region13
  $region12: #{_lambda_.44} parent=0 // pred_region
    _
  $region13: #{_lambda_.44} parent=0 // pred_fallthru
    _
  // Predicated region
  $region14: #{_lambda_.44} parent=0 // pred_check
    _
  $region15: #{_lambda_.44} parent=0 // pred_check_branch
    %16 = sbr.rel (0) target = $region17
  $region16: #{_lambda_.44} parent=0 // pred_region
    _
  $region17: #{_lambda_.44} parent=0 // pred_fallthru
    _
  %p18 = scmp.eq.s32.totalorder 0, 0
  // Predicated region
  $region18: #{_lambda_.44} parent=0 // pred_check
    %p19 = pneg %p18
  $region19: #{_lambda_.44} parent=0 // pred_check_branch
    %21 = sbr.rel (%p19) target = $region21
  $region20: #{_lambda_.44} parent=0 // pred_region
    %22 = vst [vmem:[#allocation2] sm:$0xff] 0.0
    %23 = vst [vmem:[#allocation2 + $0x8] sm:$0xff] 0.0
    %24 = vst [vmem:[#allocation2 + $0x10] sm:$0xff] 0.0
    %25 = vst [vmem:[#allocation2 + $0x18] sm:$0xff] 0.0
    %26 = vst [vmem:[#allocation2 + $0x20] sm:$0xff] 0.0
    %27 = vst [vmem:[#allocation2 + $0x28] sm:$0xff] 0.0
    %28 = vst [vmem:[#allocation2 + $0x30] sm:$0xff] 0.0
    %29 = vst [vmem:[#allocation2 + $0x38] sm:$0xff] 0.0
    %30 = vst [vmem:[#allocation2 + $0x40] sm:$0xff] 0.0
    %31 = vst [vmem:[#allocation2 + $0x48] sm:$0xff] 0.0
    %32 = vst [vmem:[#allocation2 + $0x50] sm:$0xff] 0.0
    %33 = vst [vmem:[#allocation2 + $0x58] sm:$0xff] 0.0
    %34 = vst [vmem:[#allocation2 + $0x60] sm:$0xff] 0.0
    %35 = vst [vmem:[#allocation2 + $0x68] sm:$0xff] 0.0
    %36 = vst [vmem:[#allocation2 + $0x70] sm:$0xff] 0.0
    %37 = vst [vmem:[#allocation2 + $0x78] sm:$0xff] 0.0
  $region21: #{_lambda_.44} parent=0 // pred_fallthru
    _
  %v38 = vld [vmem:[#allocation2] sm:$0xff]
  %v39 = vld [vmem:[#allocation2 + $0x8] sm:$0xff]
  %v40 = vld [vmem:[#allocation2 + $0x10] sm:$0xff]
  %v41 = vld [vmem:[#allocation2 + $0x18] sm:$0xff]
  %v42 = vld [vmem:[#allocation2 + $0x20] sm:$0xff]
  %v43 = vld [vmem:[#allocation2 + $0x28] sm:$0xff]
  %v44 = vld [vmem:[#allocation2 + $0x30] sm:$0xff]
  %v45 = vld [vmem:[#allocation2 + $0x38] sm:$0xff]
  %v46 = vld [vmem:[#allocation2 + $0x40] sm:$0xff]
  %v47 = vld [vmem:[#allocation2 + $0x48] sm:$0xff]
  %v48 = vld [vmem:[#allocation2 + $0x50] sm:$0xff]
  %v49 = vld [vmem:[#allocation2 + $0x58] sm:$0xff]
  %v50 = vld [vmem:[#allocation2 + $0x60] sm:$0xff]
  %v51 = vld [vmem:[#allocation2 + $0x68] sm:$0xff]
  %v52 = vld [vmem:[#allocation2 + $0x70] sm:$0xff]
  %v53 = vld [vmem:[#allocation2 + $0x78] sm:$0xff]
  %v54 = vld [vmem:[%s0] sm:$0xf]
  %v55 = vld [vmem:[%s0 + $0x4] sm:$0xf]
  %v56 = vld [vmem:[%s0 + $0x8] sm:$0xf]
  %v57 = vld [vmem:[%s0 + $0xc] sm:$0xf]
  %v58 = vld [vmem:[%s0 + $0x10] sm:$0xf]
  %v59 = vld [vmem:[%s0 + $0x14] sm:$0xf]
  %v60 = vld [vmem:[%s0 + $0x18] sm:$0xf]
  %v61 = vld [vmem:[%s0 + $0x1c] sm:$0xf]
  %v62 = vld [vmem:[%s0 + $0x20] sm:$0xf]
  %v63 = vld [vmem:[%s0 + $0x24] sm:$0xf]
  %v64 = vld [vmem:[%s0 + $0x28] sm:$0xf]
  %v65 = vld [vmem:[%s0 + $0x2c] sm:$0xf]
  %v66 = vld [vmem:[%s0 + $0x30] sm:$0xf]
  %v67 = vld [vmem:[%s0 + $0x34] sm:$0xf]
  %v68 = vld [vmem:[%s0 + $0x38] sm:$0xf]
  %v69 = vld [vmem:[%s0 + $0x3c] sm:$0xf]
  %v70 = vld [vmem:[%s1] sm:$0xf]
  %v71 = vld [vmem:[%s1 + $0x4] sm:$0xf]
  %v72 = vld [vmem:[%s1 + $0x8] sm:$0xf]
  %v73 = vld [vmem:[%s1 + $0xc] sm:$0xf]
  %v74 = vld [vmem:[%s1 + $0x10] sm:$0xf]
  %v75 = vld [vmem:[%s1 + $0x14] sm:$0xf]
  %v76 = vld [vmem:[%s1 + $0x18] sm:$0xf]
  %v77 = vld [vmem:[%s1 + $0x1c] sm:$0xf]
  %v78 = vld [vmem:[%s1 + $0x20] sm:$0xf]
  %v79 = vld [vmem:[%s1 + $0x24] sm:$0xf]
  %v80 = vld [vmem:[%s1 + $0x28] sm:$0xf]
  %v81 = vld [vmem:[%s1 + $0x2c] sm:$0xf]
  %v82 = vld [vmem:[%s1 + $0x30] sm:$0xf]
  %v83 = vld [vmem:[%s1 + $0x34] sm:$0xf]
  %v84 = vld [vmem:[%s1 + $0x38] sm:$0xf]
  %v85 = vld [vmem:[%s1 + $0x3c] sm:$0xf]
  %v102 = vunpack.c.l.b16 %v54
  %v103 = vunpack.c.l.b16 %v55
  %v104 = vunpack.c.l.b16 %v56
  %v105 = vunpack.c.l.b16 %v57
  %v106 = vunpack.c.l.b16 %v58
  %v107 = vunpack.c.l.b16 %v59
  %v108 = vunpack.c.l.b16 %v60
  %v109 = vunpack.c.l.b16 %v61
  %v110 = vunpack.c.l.b16 %v62
  %v111 = vunpack.c.l.b16 %v63
  %v112 = vunpack.c.l.b16 %v64
  %v113 = vunpack.c.l.b16 %v65
  %v114 = vunpack.c.l.b16 %v66
  %v115 = vunpack.c.l.b16 %v67
  %v116 = vunpack.c.l.b16 %v68
  %v117 = vunpack.c.l.b16 %v69
  %v118 = vpack.c.b16 %v103, %v102
  %v119 = vpack.c.b16 %v105, %v104
  %v120 = vpack.c.b16 %v107, %v106
  %v121 = vpack.c.b16 %v109, %v108
  %v122 = vpack.c.b16 %v111, %v110
  %v123 = vpack.c.b16 %v113, %v112
  %v124 = vpack.c.b16 %v115, %v114
  %v125 = vpack.c.b16 %v117, %v116
  %v150 = vunpack.c.l.b16 %v70
  %v151 = vunpack.c.l.b16 %v71
  %v152 = vunpack.c.l.b16 %v72
  %v153 = vunpack.c.l.b16 %v73
  %v154 = vunpack.c.l.b16 %v74
  %v155 = vunpack.c.l.b16 %v75
  %v156 = vunpack.c.l.b16 %v76
  %v157 = vunpack.c.l.b16 %v77
  %v158 = vunpack.c.l.b16 %v78
  %v159 = vunpack.c.l.b16 %v79
  %v160 = vunpack.c.l.b16 %v80
  %v161 = vunpack.c.l.b16 %v81
  %v162 = vunpack.c.l.b16 %v82
  %v163 = vunpack.c.l.b16 %v83
  %v164 = vunpack.c.l.b16 %v84
  %v165 = vunpack.c.l.b16 %v85
  %v166 = vpack.c.b16 %v151, %v150
  %v167 = vpack.c.b16 %v153, %v152
  %v168 = vpack.c.b16 %v155, %v154
  %v169 = vpack.c.b16 %v157, %v156
  %v170 = vpack.c.b16 %v159, %v158
  %v171 = vpack.c.b16 %v161, %v160
  %v172 = vpack.c.b16 %v163, %v162
  %v173 = vpack.c.b16 %v165, %v164
  %182 = vmatprep.subr.bf16.mxu0 0
  %183 = vmatpush1.bf16.msra.mxu0 %v173
  %184 = vmatprep.subr.bf16.mxu0 0
  %185 = vmatpush1.bf16.msra.mxu0 %v172
  %186 = vmatprep.subr.bf16.mxu0 0
  %187 = vmatpush1.bf16.msra.mxu0 %v171
  %188 = vmatprep.subr.bf16.mxu0 0
  %189 = vmatpush1.bf16.msra.mxu0 %v170
  %190 = vmatprep.subr.bf16.mxu0 0
  %191 = vmatpush1.bf16.msra.mxu0 %v169
  %192 = vmatprep.subr.bf16.mxu0 0
  %193 = vmatpush1.bf16.msra.mxu0 %v168
  %194 = vmatprep.subr.bf16.mxu0 0
  %195 = vmatpush1.bf16.msra.mxu0 %v167
  %196 = vmatprep.subr.bf16.mxu0 0
  %197 = vmatpush1.bf16.msra.mxu0 %v166
  %198 = vmatprep.subr.bf16.mxu0 0
  %199 = vmatpush2.bf16.msra.mxu0 0
  %200 = vmatprep.subr.bf16.mxu0 0
  %201 = vmatpush2.bf16.msra.mxu0 0
  %202 = vmatprep.subr.bf16.mxu0 0
  %203 = vmatpush2.bf16.msra.mxu0 0
  %204 = vmatprep.subr.bf16.mxu0 0
  %205 = vmatpush2.bf16.msra.mxu0 0
  %206 = vmatprep.subr.bf16.mxu0 0
  %207 = vmatpush2.bf16.msra.mxu0 0
  %208 = vmatprep.subr.bf16.mxu0 0
  %209 = vmatpush2.bf16.msra.mxu0 0
  %210 = vmatprep.subr.bf16.mxu0 0
  %211 = vmatpush2.bf16.msra.mxu0 0
  %212 = vmatprep.subr.bf16.mxu0 0
  %213 = vmatpush2.bf16.msra.mxu0 0
  %214 = vmatprep.mubr.bf16.mxu0 0
  %215 = vmatmul.mubr.bf16.gmra.mxu0 %v118
  %v216 = vpop.f32.mrf.mxu0
  %v217 = vadd.f32 0.0, %v216
  %v218 = vpop.f32.mrf.mxu0
  %v219 = vpop.f32.mrf.mxu0
  %v220 = vadd.f32 0.0, %v219
  %v221 = vpop.f32.mrf.mxu0
  %222 = vmatprep.mubr.bf16.mxu0 0
  %223 = vmatmul.mubr.bf16.gmra.mxu0 %v119
  %v224 = vpop.f32.mrf.mxu0
  %v225 = vadd.f32 0.0, %v224
  %v226 = vpop.f32.mrf.mxu0
  %v227 = vpop.f32.mrf.mxu0
  %v228 = vadd.f32 0.0, %v227
  %v229 = vpop.f32.mrf.mxu0
  %230 = vmatprep.mubr.bf16.mxu0 0
  %231 = vmatmul.mubr.bf16.gmra.mxu0 %v120
  %v232 = vpop.f32.mrf.mxu0
  %v233 = vadd.f32 0.0, %v232
  %v234 = vpop.f32.mrf.mxu0
  %v235 = vpop.f32.mrf.mxu0
  %v236 = vadd.f32 0.0, %v235
  %v237 = vpop.f32.mrf.mxu0
  %238 = vmatprep.mubr.bf16.mxu0 0
  %239 = vmatmul.mubr.bf16.gmra.mxu0 %v121
  %v240 = vpop.f32.mrf.mxu0
  %v241 = vadd.f32 0.0, %v240
  %v242 = vpop.f32.mrf.mxu0
  %v243 = vpop.f32.mrf.mxu0
  %v244 = vadd.f32 0.0, %v243
  %v245 = vpop.f32.mrf.mxu0
  %246 = vmatprep.mubr.bf16.mxu0 0
  %247 = vmatmul.mubr.bf16.gmra.mxu0 %v122
  %v248 = vpop.f32.mrf.mxu0
  %v249 = vadd.f32 0.0, %v248
  %v250 = vpop.f32.mrf.mxu0
  %v251 = vpop.f32.mrf.mxu0
  %v252 = vadd.f32 0.0, %v251
  %v253 = vpop.f32.mrf.mxu0
  %254 = vmatprep.mubr.bf16.mxu0 0
  %255 = vmatmul.mubr.bf16.gmra.mxu0 %v123
  %v256 = vpop.f32.mrf.mxu0
  %v257 = vadd.f32 0.0, %v256
  %v258 = vpop.f32.mrf.mxu0
  %v259 = vpop.f32.mrf.mxu0
  %v260 = vadd.f32 0.0, %v259
  %v261 = vpop.f32.mrf.mxu0
  %262 = vmatprep.mubr.bf16.mxu0 0
  %263 = vmatmul.mubr.bf16.gmra.mxu0 %v124
  %v264 = vpop.f32.mrf.mxu0
  %v265 = vadd.f32 0.0, %v264
  %v266 = vpop.f32.mrf.mxu0
  %v267 = vpop.f32.mrf.mxu0
  %v268 = vadd.f32 0.0, %v267
  %v269 = vpop.f32.mrf.mxu0
  %270 = vmatprep.mubr.bf16.mxu0 0
  %271 = vmatmul.mubr.bf16.gmra.mxu0 %v125
  %v272 = vpop.f32.mrf.mxu0
  %v273 = vadd.f32 0.0, %v272
  %v274 = vpop.f32.mrf.mxu0
  %v275 = vpop.f32.mrf.mxu0
  %v276 = vadd.f32 0.0, %v275
  %v277 = vpop.f32.mrf.mxu0
  %278 = vdwg.mxu0
  %v279 = vadd.f32 %v38, %v217
  %v280 = vadd.f32 %v39, %v220
  %v281 = vadd.f32 %v40, %v225
  %v282 = vadd.f32 %v41, %v228
  %v283 = vadd.f32 %v42, %v233
  %v284 = vadd.f32 %v43, %v236
  %v285 = vadd.f32 %v44, %v241
  %v286 = vadd.f32 %v45, %v244
  %v287 = vadd.f32 %v46, %v249
  %v288 = vadd.f32 %v47, %v252
  %v289 = vadd.f32 %v48, %v257
  %v290 = vadd.f32 %v49, %v260
  %v291 = vadd.f32 %v50, %v265
  %v292 = vadd.f32 %v51, %v268
  %v293 = vadd.f32 %v52, %v273
  %v294 = vadd.f32 %v53, %v276
  %295 = vst [vmem:[#allocation2] sm:$0xff] %v279
  %296 = vst [vmem:[#allocation2 + $0x8] sm:$0xff] %v280
  %297 = vst [vmem:[#allocation2 + $0x10] sm:$0xff] %v281
  %298 = vst [vmem:[#allocation2 + $0x18] sm:$0xff] %v282
  %299 = vst [vmem:[#allocation2 + $0x20] sm:$0xff] %v283
  %300 = vst [vmem:[#allocation2 + $0x28] sm:$0xff] %v284
  %301 = vst [vmem:[#allocation2 + $0x30] sm:$0xff] %v285
  %302 = vst [vmem:[#allocation2 + $0x38] sm:$0xff] %v286
  %303 = vst [vmem:[#allocation2 + $0x40] sm:$0xff] %v287
  %304 = vst [vmem:[#allocation2 + $0x48] sm:$0xff] %v288
  %305 = vst [vmem:[#allocation2 + $0x50] sm:$0xff] %v289
  %306 = vst [vmem:[#allocation2 + $0x58] sm:$0xff] %v290
  %307 = vst [vmem:[#allocation2 + $0x60] sm:$0xff] %v291
  %308 = vst [vmem:[#allocation2 + $0x68] sm:$0xff] %v292
  %309 = vst [vmem:[#allocation2 + $0x70] sm:$0xff] %v293
  %310 = vst [vmem:[#allocation2 + $0x78] sm:$0xff] %v294
  // Predicated region
  $region22: #{_lambda_.44} parent=0 // pred_check
    %p311 = pneg %p18
  $region23: #{_lambda_.44} parent=0 // pred_check_branch
    %313 = sbr.rel (%p311) target = $region25
  $region24: #{_lambda_.44} parent=0 // pred_region
    %v314 = vld [vmem:[#allocation2] sm:$0xff]
    %v315 = vld [vmem:[#allocation2 + $0x8] sm:$0xff]
    %v316 = vld [vmem:[#allocation2 + $0x10] sm:$0xff]
    %v317 = vld [vmem:[#allocation2 + $0x18] sm:$0xff]
    %v318 = vld [vmem:[#allocation2 + $0x20] sm:$0xff]
    %v319 = vld [vmem:[#allocation2 + $0x28] sm:$0xff]
    %v320 = vld [vmem:[#allocation2 + $0x30] sm:$0xff]
    %v321 = vld [vmem:[#allocation2 + $0x38] sm:$0xff]
    %v322 = vld [vmem:[#allocation2 + $0x40] sm:$0xff]
    %v323 = vld [vmem:[#allocation2 + $0x48] sm:$0xff]
    %v324 = vld [vmem:[#allocation2 + $0x50] sm:$0xff]
    %v325 = vld [vmem:[#allocation2 + $0x58] sm:$0xff]
    %v326 = vld [vmem:[#allocation2 + $0x60] sm:$0xff]
    %v327 = vld [vmem:[#allocation2 + $0x68] sm:$0xff]
    %v328 = vld [vmem:[#allocation2 + $0x70] sm:$0xff]
    %v329 = vld [vmem:[#allocation2 + $0x78] sm:$0xff]
    %v330 = vld [vmem:[%s2] sm:$0x1]
    %v332 = vlaneseq
    %v333 = vshrl.u32 %v332, 7
    %v334 = vsub.s32 0, %v333
    %v335 = vrot.slane %v330, %v334
    %v337 = vadd.f32 %v314, %v335
    %v338 = vadd.f32 %v315, %v335
    %v339 = vadd.f32 %v316, %v335
    %v340 = vadd.f32 %v317, %v335
    %v341 = vadd.f32 %v318, %v335
    %v342 = vadd.f32 %v319, %v335
    %v343 = vadd.f32 %v320, %v335
    %v344 = vadd.f32 %v321, %v335
    %v345 = vadd.f32 %v322, %v335
    %v346 = vadd.f32 %v323, %v335
    %v347 = vadd.f32 %v324, %v335
    %v348 = vadd.f32 %v325, %v335
    %v349 = vadd.f32 %v326, %v335
    %v350 = vadd.f32 %v327, %v335
    %v351 = vadd.f32 %v328, %v335
    %v352 = vadd.f32 %v329, %v335
    %v353 = vmul.f32 %v337, 0.5
    %v354 = vmul.f32 %v338, 0.5
    %v355 = vmul.f32 %v339, 0.5
    %v356 = vmul.f32 %v340, 0.5
    %v357 = vmul.f32 %v341, 0.5
    %v358 = vmul.f32 %v342, 0.5
    %v359 = vmul.f32 %v343, 0.5
    %v360 = vmul.f32 %v344, 0.5
    %v361 = vmul.f32 %v345, 0.5
    %v362 = vmul.f32 %v346, 0.5
    %v363 = vmul.f32 %v347, 0.5
    %v364 = vmul.f32 %v348, 0.5
    %v365 = vmul.f32 %v349, 0.5
    %v366 = vmul.f32 %v350, 0.5
    %v367 = vmul.f32 %v351, 0.5
    %v368 = vmul.f32 %v352, 0.5
    %v369 = vmul.f32 %v337, 0.70710677
    %v370 = vmul.f32 %v338, 0.70710677
    %v371 = vmul.f32 %v339, 0.70710677
    %v372 = vmul.f32 %v340, 0.70710677
    %v373 = vmul.f32 %v341, 0.70710677
    %v374 = vmul.f32 %v342, 0.70710677
    %v375 = vmul.f32 %v343, 0.70710677
    %v376 = vmul.f32 %v344, 0.70710677
    %v377 = vmul.f32 %v345, 0.70710677
    %v378 = vmul.f32 %v346, 0.70710677
    %v379 = vmul.f32 %v347, 0.70710677
    %v380 = vmul.f32 %v348, 0.70710677
    %v381 = vmul.f32 %v349, 0.70710677
    %v382 = vmul.f32 %v350, 0.70710677
    %v383 = vmul.f32 %v351, 0.70710677
    %v384 = vmul.f32 %v352, 0.70710677
    %vm385 = vcmp.ge.f32.partialorder %v369, 0.0
    %vm386 = vcmp.ge.f32.partialorder %v370, 0.0
    %vm387 = vcmp.ge.f32.partialorder %v371, 0.0
    %vm388 = vcmp.ge.f32.partialorder %v372, 0.0
    %vm389 = vcmp.ge.f32.partialorder %v373, 0.0
    %vm390 = vcmp.ge.f32.partialorder %v374, 0.0
    %vm391 = vcmp.ge.f32.partialorder %v375, 0.0
    %vm392 = vcmp.ge.f32.partialorder %v376, 0.0
    %vm393 = vcmp.ge.f32.partialorder %v377, 0.0
    %vm394 = vcmp.ge.f32.partialorder %v378, 0.0
    %vm395 = vcmp.ge.f32.partialorder %v379, 0.0
    %vm396 = vcmp.ge.f32.partialorder %v380, 0.0
    %vm397 = vcmp.ge.f32.partialorder %v381, 0.0
    %vm398 = vcmp.ge.f32.partialorder %v382, 0.0
    %vm399 = vcmp.ge.f32.partialorder %v383, 0.0
    %vm400 = vcmp.ge.f32.partialorder %v384, 0.0
    %v401 = vsel %vm385, 1.0, -1.0
    %v402 = vsel %vm386, 1.0, -1.0
    %v403 = vsel %vm387, 1.0, -1.0
    %v404 = vsel %vm388, 1.0, -1.0
    %v405 = vsel %vm389, 1.0, -1.0
    %v406 = vsel %vm390, 1.0, -1.0
    %v407 = vsel %vm391, 1.0, -1.0
    %v408 = vsel %vm392, 1.0, -1.0
    %v409 = vsel %vm393, 1.0, -1.0
    %v410 = vsel %vm394, 1.0, -1.0
    %v411 = vsel %vm395, 1.0, -1.0
    %v412 = vsel %vm396, 1.0, -1.0
    %v413 = vsel %vm397, 1.0, -1.0
    %v414 = vsel %vm398, 1.0, -1.0
    %v415 = vsel %vm399, 1.0, -1.0
    %v416 = vsel %vm400, 1.0, -1.0
    %v417 = vand.u32 2147483647, %v369
    %v418 = vand.u32 2147483647, %v370
    %v419 = vand.u32 2147483647, %v371
    %v420 = vand.u32 2147483647, %v372
    %v421 = vand.u32 2147483647, %v373
    %v422 = vand.u32 2147483647, %v374
    %v423 = vand.u32 2147483647, %v375
    %v424 = vand.u32 2147483647, %v376
    %v425 = vand.u32 2147483647, %v377
    %v426 = vand.u32 2147483647, %v378
    %v427 = vand.u32 2147483647, %v379
    %v428 = vand.u32 2147483647, %v380
    %v429 = vand.u32 2147483647, %v381
    %v430 = vand.u32 2147483647, %v382
    %v431 = vand.u32 2147483647, %v383
    %v432 = vand.u32 2147483647, %v384
    %v433 = vmul.f32 %v417, 0.3275911
    %v434 = vmul.f32 %v418, 0.3275911
    %v435 = vmul.f32 %v419, 0.3275911
    %v436 = vmul.f32 %v420, 0.3275911
    %v437 = vmul.f32 %v421, 0.3275911
    %v438 = vmul.f32 %v422, 0.3275911
    %v439 = vmul.f32 %v423, 0.3275911
    %v440 = vmul.f32 %v424, 0.3275911
    %v441 = vmul.f32 %v425, 0.3275911
    %v442 = vmul.f32 %v426, 0.3275911
    %v443 = vmul.f32 %v427, 0.3275911
    %v444 = vmul.f32 %v428, 0.3275911
    %v445 = vmul.f32 %v429, 0.3275911
    %v446 = vmul.f32 %v430, 0.3275911
    %v447 = vmul.f32 %v431, 0.3275911
    %v448 = vmul.f32 %v432, 0.3275911
    %v449 = vadd.f32 %v433, 1.0
    %v450 = vadd.f32 %v434, 1.0
    %v451 = vadd.f32 %v435, 1.0
    %v452 = vadd.f32 %v436, 1.0
    %v453 = vadd.f32 %v437, 1.0
    %v454 = vadd.f32 %v438, 1.0
    %v455 = vadd.f32 %v439, 1.0
    %v456 = vadd.f32 %v440, 1.0
    %v457 = vadd.f32 %v441, 1.0
    %v458 = vadd.f32 %v442, 1.0
    %v459 = vadd.f32 %v443, 1.0
    %v460 = vadd.f32 %v444, 1.0
    %v461 = vadd.f32 %v445, 1.0
    %v462 = vadd.f32 %v446, 1.0
    %v463 = vadd.f32 %v447, 1.0
    %v464 = vadd.f32 %v448, 1.0
    %v465 = vrcp.pop %v449
    %v466 = vmul.f32 1.0, %v465
    %v467 = vrcp.pop %v450
    %v468 = vmul.f32 1.0, %v467
    %v469 = vrcp.pop %v451
    %v470 = vmul.f32 1.0, %v469
    %v471 = vrcp.pop %v452
    %v472 = vmul.f32 1.0, %v471
    %v473 = vrcp.pop %v453
    %v474 = vmul.f32 1.0, %v473
    %v475 = vrcp.pop %v454
    %v476 = vmul.f32 1.0, %v475
    %v477 = vrcp.pop %v455
    %v478 = vmul.f32 1.0, %v477
    %v479 = vrcp.pop %v456
    %v480 = vmul.f32 1.0, %v479
    %v481 = vrcp.pop %v457
    %v482 = vmul.f32 1.0, %v481
    %v483 = vrcp.pop %v458
    %v484 = vmul.f32 1.0, %v483
    %v485 = vrcp.pop %v459
    %v486 = vmul.f32 1.0, %v485
    %v487 = vrcp.pop %v460
    %v488 = vmul.f32 1.0, %v487
    %v489 = vrcp.pop %v461
    %v490 = vmul.f32 1.0, %v489
    %v491 = vrcp.pop %v462
    %v492 = vmul.f32 1.0, %v491
    %v493 = vrcp.pop %v463
    %v494 = vmul.f32 1.0, %v493
    %v495 = vrcp.pop %v464
    %v496 = vmul.f32 1.0, %v495
    %v497 = vmul.f32 %v466, 1.0614054
    %v498 = vmul.f32 %v468, 1.0614054
    %v499 = vmul.f32 %v470, 1.0614054
    %v500 = vmul.f32 %v472, 1.0614054
    %v501 = vmul.f32 %v474, 1.0614054
    %v502 = vmul.f32 %v476, 1.0614054
    %v503 = vmul.f32 %v478, 1.0614054
    %v504 = vmul.f32 %v480, 1.0614054
    %v505 = vmul.f32 %v482, 1.0614054
    %v506 = vmul.f32 %v484, 1.0614054
    %v507 = vmul.f32 %v486, 1.0614054
    %v508 = vmul.f32 %v488, 1.0614054
    %v509 = vmul.f32 %v490, 1.0614054
    %v510 = vmul.f32 %v492, 1.0614054
    %v511 = vmul.f32 %v494, 1.0614054
    %v512 = vmul.f32 %v496, 1.0614054
    %v513 = vadd.f32 %v497, -1.4531521
    %v514 = vadd.f32 %v498, -1.4531521
    %v515 = vadd.f32 %v499, -1.4531521
    %v516 = vadd.f32 %v500, -1.4531521
    %v517 = vadd.f32 %v501, -1.4531521
    %v518 = vadd.f32 %v502, -1.4531521
    %v519 = vadd.f32 %v503, -1.4531521
    %v520 = vadd.f32 %v504, -1.4531521
    %v521 = vadd.f32 %v505, -1.4531521
    %v522 = vadd.f32 %v506, -1.4531521
    %v523 = vadd.f32 %v507, -1.4531521
    %v524 = vadd.f32 %v508, -1.4531521
    %v525 = vadd.f32 %v509, -1.4531521
    %v526 = vadd.f32 %v510, -1.4531521
    %v527 = vadd.f32 %v511, -1.4531521
    %v528 = vadd.f32 %v512, -1.4531521
    %v529 = vmul.f32 %v513, %v466
    %v530 = vmul.f32 %v514, %v468
    %v531 = vmul.f32 %v515, %v470
    %v532 = vmul.f32 %v516, %v472
    %v533 = vmul.f32 %v517, %v474
    %v534 = vmul.f32 %v518, %v476
    %v535 = vmul.f32 %v519, %v478
    %v536 = vmul.f32 %v520, %v480
    %v537 = vmul.f32 %v521, %v482
    %v538 = vmul.f32 %v522, %v484
    %v539 = vmul.f32 %v523, %v486
    %v540 = vmul.f32 %v524, %v488
    %v541 = vmul.f32 %v525, %v490
    %v542 = vmul.f32 %v526, %v492
    %v543 = vmul.f32 %v527, %v494
    %v544 = vmul.f32 %v528, %v496
    %v545 = vadd.f32 %v529, 1.4214138
    %v546 = vadd.f32 %v530, 1.4214138
    %v547 = vadd.f32 %v531, 1.4214138
    %v548 = vadd.f32 %v532, 1.4214138
    %v549 = vadd.f32 %v533, 1.4214138
    %v550 = vadd.f32 %v534, 1.4214138
    %v551 = vadd.f32 %v535, 1.4214138
    %v552 = vadd.f32 %v536, 1.4214138
    %v553 = vadd.f32 %v537, 1.4214138
    %v554 = vadd.f32 %v538, 1.4214138
    %v555 = vadd.f32 %v539, 1.4214138
    %v556 = vadd.f32 %v540, 1.4214138
    %v557 = vadd.f32 %v541, 1.4214138
    %v558 = vadd.f32 %v542, 1.4214138
    %v559 = vadd.f32 %v543, 1.4214138
    %v560 = vadd.f32 %v544, 1.4214138
    %v561 = vmul.f32 %v545, %v466
    %v562 = vmul.f32 %v546, %v468
    %v563 = vmul.f32 %v547, %v470
    %v564 = vmul.f32 %v548, %v472
    %v565 = vmul.f32 %v549, %v474
    %v566 = vmul.f32 %v550, %v476
    %v567 = vmul.f32 %v551, %v478
    %v568 = vmul.f32 %v552, %v480
    %v569 = vmul.f32 %v553, %v482
    %v570 = vmul.f32 %v554, %v484
    %v571 = vmul.f32 %v555, %v486
    %v572 = vmul.f32 %v556, %v488
    %v573 = vmul.f32 %v557, %v490
    %v574 = vmul.f32 %v558, %v492
    %v575 = vmul.f32 %v559, %v494
    %v576 = vmul.f32 %v560, %v496
    %v577 = vadd.f32 %v561, -0.28449672
    %v578 = vadd.f32 %v562, -0.28449672
    %v579 = vadd.f32 %v563, -0.28449672
    %v580 = vadd.f32 %v564, -0.28449672
    %v581 = vadd.f32 %v565, -0.28449672
    %v582 = vadd.f32 %v566, -0.28449672
    %v583 = vadd.f32 %v567, -0.28449672
    %v584 = vadd.f32 %v568, -0.28449672
    %v585 = vadd.f32 %v569, -0.28449672
    %v586 = vadd.f32 %v570, -0.28449672
    %v587 = vadd.f32 %v571, -0.28449672
    %v588 = vadd.f32 %v572, -0.28449672
    %v589 = vadd.f32 %v573, -0.28449672
    %v590 = vadd.f32 %v574, -0.28449672
    %v591 = vadd.f32 %v575, -0.28449672
    %v592 = vadd.f32 %v576, -0.28449672
    %v593 = vmul.f32 %v577, %v466
    %v594 = vmul.f32 %v578, %v468
    %v595 = vmul.f32 %v579, %v470
    %v596 = vmul.f32 %v580, %v472
    %v597 = vmul.f32 %v581, %v474
    %v598 = vmul.f32 %v582, %v476
    %v599 = vmul.f32 %v583, %v478
    %v600 = vmul.f32 %v584, %v480
    %v601 = vmul.f32 %v585, %v482
    %v602 = vmul.f32 %v586, %v484
    %v603 = vmul.f32 %v587, %v486
    %v604 = vmul.f32 %v588, %v488
    %v605 = vmul.f32 %v589, %v490
    %v606 = vmul.f32 %v590, %v492
    %v607 = vmul.f32 %v591, %v494
    %v608 = vmul.f32 %v592, %v496
    %v609 = vadd.f32 %v593, 0.2548296
    %v610 = vadd.f32 %v594, 0.2548296
    %v611 = vadd.f32 %v595, 0.2548296
    %v612 = vadd.f32 %v596, 0.2548296
    %v613 = vadd.f32 %v597, 0.2548296
    %v614 = vadd.f32 %v598, 0.2548296
    %v615 = vadd.f32 %v599, 0.2548296
    %v616 = vadd.f32 %v600, 0.2548296
    %v617 = vadd.f32 %v601, 0.2548296
    %v618 = vadd.f32 %v602, 0.2548296
    %v619 = vadd.f32 %v603, 0.2548296
    %v620 = vadd.f32 %v604, 0.2548296
    %v621 = vadd.f32 %v605, 0.2548296
    %v622 = vadd.f32 %v606, 0.2548296
    %v623 = vadd.f32 %v607, 0.2548296
    %v624 = vadd.f32 %v608, 0.2548296
    %v625 = vmul.f32 %v609, %v466
    %v626 = vmul.f32 %v610, %v468
    %v627 = vmul.f32 %v611, %v470
    %v628 = vmul.f32 %v612, %v472
    %v629 = vmul.f32 %v613, %v474
    %v630 = vmul.f32 %v614, %v476
    %v631 = vmul.f32 %v615, %v478
    %v632 = vmul.f32 %v616, %v480
    %v633 = vmul.f32 %v617, %v482
    %v634 = vmul.f32 %v618, %v484
    %v635 = vmul.f32 %v619, %v486
    %v636 = vmul.f32 %v620, %v488
    %v637 = vmul.f32 %v621, %v490
    %v638 = vmul.f32 %v622, %v492
    %v639 = vmul.f32 %v623, %v494
    %v640 = vmul.f32 %v624, %v496
    %v641 = vsub.f32 0.0, %v417
    %v642 = vsub.f32 0.0, %v418
    %v643 = vsub.f32 0.0, %v419
    %v644 = vsub.f32 0.0, %v420
    %v645 = vsub.f32 0.0, %v421
    %v646 = vsub.f32 0.0, %v422
    %v647 = vsub.f32 0.0, %v423
    %v648 = vsub.f32 0.0, %v424
    %v649 = vsub.f32 0.0, %v425
    %v650 = vsub.f32 0.0, %v426
    %v651 = vsub.f32 0.0, %v427
    %v652 = vsub.f32 0.0, %v428
    %v653 = vsub.f32 0.0, %v429
    %v654 = vsub.f32 0.0, %v430
    %v655 = vsub.f32 0.0, %v431
    %v656 = vsub.f32 0.0, %v432
    %v657 = vmul.f32 %v641, %v417
    %v658 = vmul.f32 %v642, %v418
    %v659 = vmul.f32 %v643, %v419
    %v660 = vmul.f32 %v644, %v420
    %v661 = vmul.f32 %v645, %v421
    %v662 = vmul.f32 %v646, %v422
    %v663 = vmul.f32 %v647, %v423
    %v664 = vmul.f32 %v648, %v424
    %v665 = vmul.f32 %v649, %v425
    %v666 = vmul.f32 %v650, %v426
    %v667 = vmul.f32 %v651, %v427
    %v668 = vmul.f32 %v652, %v428
    %v669 = vmul.f32 %v653, %v429
    %v670 = vmul.f32 %v654, %v430
    %v671 = vmul.f32 %v655, %v431
    %v672 = vmul.f32 %v656, %v432
    %v673 = vmul.f32 %v657, 1.442695
    %v674 = vpow.pop %v673
    %v675 = vmul.f32 %v658, 1.442695
    %v676 = vpow.pop %v675
    %v677 = vmul.f32 %v659, 1.442695
    %v678 = vpow.pop %v677
    %v679 = vmul.f32 %v660, 1.442695
    %v680 = vpow.pop %v679
    %v681 = vmul.f32 %v661, 1.442695
    %v682 = vpow.pop %v681
    %v683 = vmul.f32 %v662, 1.442695
    %v684 = vpow.pop %v683
    %v685 = vmul.f32 %v663, 1.442695
    %v686 = vpow.pop %v685
    %v687 = vmul.f32 %v664, 1.442695
    %v688 = vpow.pop %v687
    %v689 = vmul.f32 %v665, 1.442695
    %v690 = vpow.pop %v689
    %v691 = vmul.f32 %v666, 1.442695
    %v692 = vpow.pop %v691
    %v693 = vmul.f32 %v667, 1.442695
    %v694 = vpow.pop %v693
    %v695 = vmul.f32 %v668, 1.442695
    %v696 = vpow.pop %v695
    %v697 = vmul.f32 %v669, 1.442695
    %v698 = vpow.pop %v697
    %v699 = vmul.f32 %v670, 1.442695
    %v700 = vpow.pop %v699
    %v701 = vmul.f32 %v671, 1.442695
    %v702 = vpow.pop %v701
    %v703 = vmul.f32 %v672, 1.442695
    %v704 = vpow.pop %v703
    %v705 = vmul.f32 %v625, %v674
    %v706 = vmul.f32 %v626, %v676
    %v707 = vmul.f32 %v627, %v678
    %v708 = vmul.f32 %v628, %v680
    %v709 = vmul.f32 %v629, %v682
    %v710 = vmul.f32 %v630, %v684
    %v711 = vmul.f32 %v631, %v686
    %v712 = vmul.f32 %v632, %v688
    %v713 = vmul.f32 %v633, %v690
    %v714 = vmul.f32 %v634, %v692
    %v715 = vmul.f32 %v635, %v694
    %v716 = vmul.f32 %v636, %v696
    %v717 = vmul.f32 %v637, %v698
    %v718 = vmul.f32 %v638, %v700
    %v719 = vmul.f32 %v639, %v702
    %v720 = vmul.f32 %v640, %v704
    %v721 = vsub.f32 1.0, %v705
    %v722 = vsub.f32 1.0, %v706
    %v723 = vsub.f32 1.0, %v707
    %v724 = vsub.f32 1.0, %v708
    %v725 = vsub.f32 1.0, %v709
    %v726 = vsub.f32 1.0, %v710
    %v727 = vsub.f32 1.0, %v711
    %v728 = vsub.f32 1.0, %v712
    %v729 = vsub.f32 1.0, %v713
    %v730 = vsub.f32 1.0, %v714
    %v731 = vsub.f32 1.0, %v715
    %v732 = vsub.f32 1.0, %v716
    %v733 = vsub.f32 1.0, %v717
    %v734 = vsub.f32 1.0, %v718
    %v735 = vsub.f32 1.0, %v719
    %v736 = vsub.f32 1.0, %v720
    %v737 = vmul.f32 %v401, %v721
    %v738 = vmul.f32 %v402, %v722
    %v739 = vmul.f32 %v403, %v723
    %v740 = vmul.f32 %v404, %v724
    %v741 = vmul.f32 %v405, %v725
    %v742 = vmul.f32 %v406, %v726
    %v743 = vmul.f32 %v407, %v727
    %v744 = vmul.f32 %v408, %v728
    %v745 = vmul.f32 %v409, %v729
    %v746 = vmul.f32 %v410, %v730
    %v747 = vmul.f32 %v411, %v731
    %v748 = vmul.f32 %v412, %v732
    %v749 = vmul.f32 %v413, %v733
    %v750 = vmul.f32 %v414, %v734
    %v751 = vmul.f32 %v415, %v735
    %v752 = vmul.f32 %v416, %v736
    %v753 = vadd.f32 %v737, 1.0
    %v754 = vadd.f32 %v738, 1.0
    %v755 = vadd.f32 %v739, 1.0
    %v756 = vadd.f32 %v740, 1.0
    %v757 = vadd.f32 %v741, 1.0
    %v758 = vadd.f32 %v742, 1.0
    %v759 = vadd.f32 %v743, 1.0
    %v760 = vadd.f32 %v744, 1.0
    %v761 = vadd.f32 %v745, 1.0
    %v762 = vadd.f32 %v746, 1.0
    %v763 = vadd.f32 %v747, 1.0
    %v764 = vadd.f32 %v748, 1.0
    %v765 = vadd.f32 %v749, 1.0
    %v766 = vadd.f32 %v750, 1.0
    %v767 = vadd.f32 %v751, 1.0
    %v768 = vadd.f32 %v752, 1.0
    %v769 = vmul.f32 %v353, %v753
    %v770 = vmul.f32 %v354, %v754
    %v771 = vmul.f32 %v355, %v755
    %v772 = vmul.f32 %v356, %v756
    %v773 = vmul.f32 %v357, %v757
    %v774 = vmul.f32 %v358, %v758
    %v775 = vmul.f32 %v359, %v759
    %v776 = vmul.f32 %v360, %v760
    %v777 = vmul.f32 %v361, %v761
    %v778 = vmul.f32 %v362, %v762
    %v779 = vmul.f32 %v363, %v763
    %v780 = vmul.f32 %v364, %v764
    %v781 = vmul.f32 %v365, %v765
    %v782 = vmul.f32 %v366, %v766
    %v783 = vmul.f32 %v367, %v767
    %v784 = vmul.f32 %v368, %v768
    %785 = vst [vmem:[%s4] sm:$0xff] %v769
    %786 = vst [vmem:[%s4 + $0x8] sm:$0xff] %v770
    %787 = vst [vmem:[%s4 + $0x10] sm:$0xff] %v771
    %788 = vst [vmem:[%s4 + $0x18] sm:$0xff] %v772
    %789 = vst [vmem:[%s4 + $0x20] sm:$0xff] %v773
    %790 = vst [vmem:[%s4 + $0x28] sm:$0xff] %v774
    %791 = vst [vmem:[%s4 + $0x30] sm:$0xff] %v775
    %792 = vst [vmem:[%s4 + $0x38] sm:$0xff] %v776
    %793 = vst [vmem:[%s4 + $0x40] sm:$0xff] %v777
    %794 = vst [vmem:[%s4 + $0x48] sm:$0xff] %v778
    %795 = vst [vmem:[%s4 + $0x50] sm:$0xff] %v779
    %796 = vst [vmem:[%s4 + $0x58] sm:$0xff] %v780
    %797 = vst [vmem:[%s4 + $0x60] sm:$0xff] %v781
    %798 = vst [vmem:[%s4 + $0x68] sm:$0xff] %v782
    %799 = vst [vmem:[%s4 + $0x70] sm:$0xff] %v783
    %800 = vst [vmem:[%s4 + $0x78] sm:$0xff] %v784
  $region25: #{_lambda_.44} parent=0 // pred_fallthru
    _
  // Predicated region
  $region26: #{_lambda_.44} parent=0 // pred_check
    _
  $region27: #{_lambda_.44} parent=0 // pred_check_branch
    %802 = sbr.rel (0) target = $region29
  $region28: #{_lambda_.44} parent=0 // pred_region
    _
  $region29: #{_lambda_.44} parent=0 // pred_fallthru
    _
  // Predicated region
  $region30: #{_lambda_.44} parent=0 // pred_check
    _
  $region31: #{_lambda_.44} parent=0 // pred_check_branch
    %804 = sbr.rel (0) target = $region33
  $region32: #{_lambda_.44} parent=0 // pred_region
    _
  $region33: #{_lambda_.44} parent=0 // pred_fallthru
    _

// kernel: _lambda_.55
$region0: #{_lambda_.55}
  #allocation0 [shape = 'u32[]', space=smem, size = 0x4, offset = 0x4, fixed_abs, tag = 'smem constant byte address 0x4 - core index']
  #allocation1 [shape = 'u32[144,128]{1,0:T(1,128)}', space=vmem, size = 0x12000, scoped, tag = 'internal scratch']
  #allocation2 [shape = 'f32[128,128]{1,0:T(8,128)}', space=vmem, size = 0x10000, scoped, tag = 'scratch operand']
  %s0 = inlined_call_operand.vmem [shape: bf16[128,640], index: 0, kind: input, shape index: {}]
  %s1 = inlined_call_operand.vmem [shape: bf16[640,128], index: 1, kind: input, shape index: {}]
  %s2 = inlined_call_operand.vmem [shape: f32[1,128], index: 2, kind: input, shape index: {}]
  %s3 = inlined_call_operand.vmem [shape: f32[1,128], index: 3, kind: input, shape index: {}]
  %s4 = inlined_call_operand.vmem [shape: f32[128,128], index: 4, kind: output, shape index: {}]
  %s5 = sld [smem:[#allocation0]]
  $region98: #{_lambda_.55} parent=0
    _
  %s7 = ssub.s32 1, %s5
  %s8 = scalar_select 0, %s7, %s5
  $region1: #{_lambda_.55} parent=0
    #allocation3 [shape = 'u8[65536]{0}', space=vmem, size = 0x10000, scoped, tag = 'input window, operand 0']
    loop: start=0, step=1, limit=7
    $region2: #{_lambda_.55} parent=1 // loop_pre_header
      _
    $region3: #{_lambda_.55} parent=1 // loop_header
      %s10 = sphi 0, %s14
      %p11 = scmp.ge.s32.totalorder %s10, 7
      %s17 = sphi 0, %s36
      %s18 = sphi 0, %s32
      %s19 = sphi 0, %s28
      %s20 = sphi 0, %s17
      %s21 = sphi 0, %s18
      %s22 = sphi 0, %s19
      %s23 = sphi 0, %s20
      %s24 = sphi 0, %s21
      %s25 = sphi 0, %s22
      %s41 = sphi 0, %s43
      %s44 = sphi 0, %s41
      %s45 = sphi 0, %s44
      %s61 = sphi 0, %s45
      %s69 = sphi 0, %s71
      %s72 = sphi 0, %s69
      %s73 = sphi 0, %s72
      %s89 = sphi 0, %s73
      %s95 = sphi 0, %s97
      %s98 = sphi 0, %s95
      %s99 = sphi 0, %s98
      %s115 = sphi 0, %s99
      %s121 = sphi 0, %s123
      %s124 = sphi 0, %s121
      %s125 = sphi 0, %s124
      %s141 = sphi 0, %s125
      %s149 = sphi 0, %s151
      %s152 = sphi 0, %s149
      %s153 = sphi 0, %s152
      %s169 = sphi 0, %s153
    $region4: #{_lambda_.55} parent=1 // loop_header_branch
      %13 = sbr.rel (%p11) target = $region8
    $region5: #{_lambda_.55} parent=1 // loop_body
      %s15 = ssub.s32 %s10, 1
      %s16 = ssub.s32 %s10, 2
      %s26 = sadd.s32 1, %s19
      %p27 = scmp.ge.s32.totalorder %s26, 5
      %s28 = scalar_select %p27, 0, %s26
      %s29 = sadd.s32 1, %s18
      %s30 = scalar_select %p27, %s29, %s18
      %p31 = scmp.ge.s32.totalorder %s30, 1
      %s32 = scalar_select %p31, 0, %s30
      %s33 = sadd.s32 1, %s17
      %s34 = scalar_select %p31, %s33, %s17
      %p35 = scmp.ge.s32.totalorder %s34, 1
      %s36 = scalar_select %p35, 0, %s34
      %s37 = ssub.s32 %s17, %s36
      %s38 = ssub.s32 %s19, %s28
      %s39 = sor.u32 %s37, %s38
      %p40 = scmp.eq.s32.totalorder %s39, 0
      %s42 = sadd.s32 %s41, 1
      %s43 = scalar_select %p40, %s41, %s42
      %p46 = pneg %p40
      %p47 = scmp.eq.s32.totalorder %s10, 4
      %p48 = por %p46, %p47
      %p49 = scmp.ne.s32.totalorder %s41, %s44
      %p50 = scmp.eq.s32.totalorder %s10, 0
      %p51 = por %p49, %p50
      %p52 = scmp.ne.s32.totalorder %s41, %s44
      %p53 = scmp.eq.s32.totalorder %s15, 4
      %p54 = por %p52, %p53
      %p55 = scmp.ne.s32.totalorder %s44, %s45
      %p56 = scmp.eq.s32.totalorder %s15, 0
      %p57 = por %p55, %p56
      %p58 = scmp.ne.s32.totalorder %s44, %s45
      %p59 = scmp.eq.s32.totalorder %s16, 4
      %p60 = por %p58, %p59
      %p62 = scmp.ne.s32.totalorder %s45, %s61
      %p63 = scmp.eq.s32.totalorder %s16, 0
      %p64 = por %p62, %p63
      %s65 = ssub.s32 %s19, %s28
      %s66 = ssub.s32 %s18, %s32
      %s67 = sor.u32 %s65, %s66
      %p68 = scmp.eq.s32.totalorder %s67, 0
      %s70 = sadd.s32 %s69, 1
      %s71 = scalar_select %p68, %s69, %s70
      %p74 = pneg %p68
      %p75 = scmp.eq.s32.totalorder %s10, 4
      %p76 = por %p74, %p75
      %p77 = scmp.ne.s32.totalorder %s69, %s72
      %p78 = scmp.eq.s32.totalorder %s10, 0
      %p79 = por %p77, %p78
      %p80 = scmp.ne.s32.totalorder %s69, %s72
      %p81 = scmp.eq.s32.totalorder %s15, 4
      %p82 = por %p80, %p81
      %p83 = scmp.ne.s32.totalorder %s72, %s73
      %p84 = scmp.eq.s32.totalorder %s15, 0
      %p85 = por %p83, %p84
      %p86 = scmp.ne.s32.totalorder %s72, %s73
      %p87 = scmp.eq.s32.totalorder %s16, 4
      %p88 = por %p86, %p87
      %p90 = scmp.ne.s32.totalorder %s73, %s89
      %p91 = scmp.eq.s32.totalorder %s16, 0
      %p92 = por %p90, %p91
      %s93 = ssub.s32 %s18, %s32
      %p94 = scmp.eq.s32.totalorder %s93, 0
      %s96 = sadd.s32 %s95, 1
      %s97 = scalar_select %p94, %s95, %s96
      %p100 = pneg %p94
      %p101 = scmp.eq.s32.totalorder %s10, 4
      %p102 = por %p100, %p101
      %p103 = scmp.ne.s32.totalorder %s95, %s98
      %p104 = scmp.eq.s32.totalorder %s10, 0
      %p105 = por %p103, %p104
      %p106 = scmp.ne.s32.totalorder %s95, %s98
      %p107 = scmp.eq.s32.totalorder %s15, 4
      %p108 = por %p106, %p107
      %p109 = scmp.ne.s32.totalorder %s98, %s99
      %p110 = scmp.eq.s32.totalorder %s15, 0
      %p111 = por %p109, %p110
      %p112 = scmp.ne.s32.totalorder %s98, %s99
      %p113 = scmp.eq.s32.totalorder %s16, 4
      %p114 = por %p112, %p113
      %p116 = scmp.ne.s32.totalorder %s99, %s115
      %p117 = scmp.eq.s32.totalorder %s16, 0
      %p118 = por %p116, %p117
      %s119 = ssub.s32 %s18, %s32
      %p120 = scmp.eq.s32.totalorder %s119, 0
      %s122 = sadd.s32 %s121, 1
      %s123 = scalar_select %p120, %s121, %s122
      %p126 = pneg %p120
      %p127 = scmp.eq.s32.totalorder %s10, 4
      %p128 = por %p126, %p127
      %p129 = scmp.ne.s32.totalorder %s121, %s124
      %p130 = scmp.eq.s32.totalorder %s10, 0
      %p131 = por %p129, %p130
      %p132 = scmp.ne.s32.totalorder %s121, %s124
      %p133 = scmp.eq.s32.totalorder %s15, 4
      %p134 = por %p132, %p133
      %p135 = scmp.ne.s32.totalorder %s124, %s125
      %p136 = scmp.eq.s32.totalorder %s15, 0
      %p137 = por %p135, %p136
      %p138 = scmp.ne.s32.totalorder %s124, %s125
      %p139 = scmp.eq.s32.totalorder %s16, 4
      %p140 = por %p138, %p139
      %p142 = scmp.ne.s32.totalorder %s125, %s141
      %p143 = scmp.eq.s32.totalorder %s16, 0
      %p144 = por %p142, %p143
      %s145 = ssub.s32 %s17, %s36
      %s146 = ssub.s32 %s18, %s32
      %s147 = sor.u32 %s145, %s146
      %p148 = scmp.eq.s32.totalorder %s147, 0
      %s150 = sadd.s32 %s149, 1
      %s151 = scalar_select %p148, %s149, %s150
      %p154 = pneg %p148
      %p155 = scmp.eq.s32.totalorder %s10, 4
      %p156 = por %p154, %p155
      %p157 = scmp.ne.s32.totalorder %s149, %s152
      %p158 = scmp.eq.s32.totalorder %s10, 0
      %p159 = por %p157, %p158
      %p160 = scmp.ne.s32.totalorder %s149, %s152
      %p161 = scmp.eq.s32.totalorder %s15, 4
      %p162 = por %p160, %p161
      %p163 = scmp.ne.s32.totalorder %s152, %s153
      %p164 = scmp.eq.s32.totalorder %s15, 0
      %p165 = por %p163, %p164
      %p166 = scmp.ne.s32.totalorder %s152, %s153
      %p167 = scmp.eq.s32.totalorder %s16, 4
      %p168 = por %p166, %p167
      %p170 = scmp.ne.s32.totalorder %s153, %s169
      %p171 = scmp.eq.s32.totalorder %s16, 0
      %p172 = por %p170, %p171
      %p173 = scmp.le.s32.totalorder 1, %s10
      %p174 = scmp.lt.s32.totalorder %s10, 6
      %p175 = pnand %p173, %p174
      %p176 = pneg %p175
      // Predicated region
      $region9: #{_lambda_.55} parent=5 // pred_check
        _
      $region10: #{_lambda_.55} parent=5 // pred_check_branch
        %178 = sbr.rel (%p175) target = $region12
      $region11: #{_lambda_.55} parent=5 // pred_region
        %s179 = ssub.s32 %s10, 1
        // Predicated region
        $region13: #{_lambda_.55} parent=11 // pred_check
          %p180 = pneg %p111
        $region14: #{_lambda_.55} parent=11 // pred_check_branch
          %182 = sbr.rel (%p180) target = $region16
        $region15: #{_lambda_.55} parent=11 // pred_region
          %p183 = scmp.lt.s32.totalorder %s21, 0
          %s184 = scalar_select %p183, %s21, 0
          %s185 = scalar_lea.vmem %s2, %s184
        $region16: #{_lambda_.55} parent=11 // pred_fallthru
          _
        // Predicated region
        $region17: #{_lambda_.55} parent=11 // pred_check
          %p186 = pneg %p137
        $region18: #{_lambda_.55} parent=11 // pred_check_branch
          %188 = sbr.rel (%p186) target = $region20
        $region19: #{_lambda_.55} parent=11 // pred_region
          %p189 = scmp.lt.s32.totalorder %s21, 0
          %s190 = scalar_select %p189, %s21, 0
          %s191 = scalar_lea.vmem %s3, %s190
        $region20: #{_lambda_.55} parent=11 // pred_fallthru
          _
      $region12: #{_lambda_.55} parent=5 // pred_fallthru
        _
      %p192 = scmp.lt.s32.totalorder %s10, 5
      // Predicated region
      $region21: #{_lambda_.55} parent=5 // pred_check
        %p193 = pneg %p192
      $region22: #{_lambda_.55} parent=5 // pred_check_branch
        %195 = sbr.rel (%p193) target = $region24
      $region23: #{_lambda_.55} parent=5 // pred_region
        // Predicated region
        $region25: #{_lambda_.55} parent=23 // pred_check
          %p196 = pneg %p51
        $region26: #{_lambda_.55} parent=23 // pred_check_branch
          %198 = sbr.rel (%p196) target = $region28
        $region27: #{_lambda_.55} parent=23 // pred_region
          %s199 = sand.u32 %s41, 1
          %s200 = sand.u32 %s41, 1
          %s201 = smul.addr %s200, 64
          %s202 = scalar_lea.vmem [#allocation3], %s201
          %s203 = smul.u32 16, %s17
          %s204 = smul.addr %s203, 5
          %s205 = sadd.s32 %s19, %s204
          %s206 = smul.addr %s205, 4
          %s207 = scalar_lea.vmem %s0, %s206
          // Predicated region
          $region29: #{_lambda_.55} parent=27 // pred_check
            _
          $region30: #{_lambda_.55} parent=27 // pred_check_branch
            %209 = sbr.rel (0) target = $region32
          $region31: #{_lambda_.55} parent=27 // pred_region
            // Predicated region
            $region33: #{_lambda_.55} parent=31 // pred_check
              _
            $region34: #{_lambda_.55} parent=31 // pred_check_branch
              %211 = sbr.rel target = $region36
            $region35: #{_lambda_.55} parent=31 // pred_region
              // Predicated region
              $region48: #{_lambda_.55} parent=35 // pred_check
                _
              $region49: #{_lambda_.55} parent=35 // pred_check_branch
                %257 = sbr.rel (0) target = $region51
              $region50: #{_lambda_.55} parent=35 // pred_region
                loop: start=0, step=1, limit=1
                $region52: #{_lambda_.55} parent=50 // loop_pre_header
                  _
                $region53: #{_lambda_.55} parent=50 // loop_header
                  %s259 = sphi 0, %s263
                  %p260 = scmp.ge.s32.totalorder %s259, 1
                  %s264 = sphi %s207, %s207
                  %s265 = sphi %s202, %s202
                $region54: #{_lambda_.55} parent=50 // loop_header_branch
                  %262 = sbr.rel (%p260) target = $region58
                $region55: #{_lambda_.55} parent=50 // loop_body
                  _
                $region56: #{_lambda_.55} parent=50 // loop_footer
                  %s263 = sadd.s32 1, %s259
                $region57: #{_lambda_.55} parent=50 // loop_footer_branch
                  %258 = sbr.rel target = $region53
                $region58: #{_lambda_.55} parent=50 // loop_exit
                  _
                %s267 = ssub.s32 16, 1
                loop: start=0, step=1, limit=1
                $region59: #{_lambda_.55} parent=50 // loop_pre_header
                  _
                $region60: #{_lambda_.55} parent=50 // loop_header
                  %s269 = sphi 0, %s273
                  %p270 = scmp.ge.s32.totalorder %s269, 1
                  %s274 = sphi %s207, %s207
                  %s275 = sphi %s202, %s202
                $region61: #{_lambda_.55} parent=50 // loop_header_branch
                  %272 = sbr.rel (%p270) target = $region65
                $region62: #{_lambda_.55} parent=50 // loop_body
                  %v276 = vld [vmem:[%s274] sm:%s267]
                  %277 = vst [vmem:[%s275] sm:%s267] %v276
                  %v278 = vld [vmem:[%s274 + $0x14] sm:%s267]
                  %279 = vst [vmem:[%s275 + $0x4] sm:%s267] %v278
                  %v280 = vld [vmem:[%s274 + $0x28] sm:%s267]
                  %281 = vst [vmem:[%s275 + $0x8] sm:%s267] %v280
                  %v282 = vld [vmem:[%s274 + $0x3c] sm:%s267]
                  %283 = vst [vmem:[%s275 + $0xc] sm:%s267] %v282
                  %v284 = vld [vmem:[%s274 + $0x50] sm:%s267]
                  %285 = vst [vmem:[%s275 + $0x10] sm:%s267] %v284
                  %v286 = vld [vmem:[%s274 + $0x64] sm:%s267]
                  %287 = vst [vmem:[%s275 + $0x14] sm:%s267] %v286
                  %v288 = vld [vmem:[%s274 + $0x78] sm:%s267]
                  %289 = vst [vmem:[%s275 + $0x18] sm:%s267] %v288
                  %v290 = vld [vmem:[%s274 + $0x8c] sm:%s267]
                  %291 = vst [vmem:[%s275 + $0x1c] sm:%s267] %v290
                  %v292 = vld [vmem:[%s274 + $0xa0] sm:%s267]
                  %293 = vst [vmem:[%s275 + $0x20] sm:%s267] %v292
                  %v294 = vld [vmem:[%s274 + $0xb4] sm:%s267]
                  %295 = vst [vmem:[%s275 + $0x24] sm:%s267] %v294
                  %v296 = vld [vmem:[%s274 + $0xc8] sm:%s267]
                  %297 = vst [vmem:[%s275 + $0x28] sm:%s267] %v296
                  %v298 = vld [vmem:[%s274 + $0xdc] sm:%s267]
                  %299 = vst [vmem:[%s275 + $0x2c] sm:%s267] %v298
                  %v300 = vld [vmem:[%s274 + $0xf0] sm:%s267]
                  %301 = vst [vmem:[%s275 + $0x30] sm:%s267] %v300
                  %v302 = vld [vmem:[%s274 + $0x104] sm:%s267]
                  %303 = vst [vmem:[%s275 + $0x34] sm:%s267] %v302
                  %v304 = vld [vmem:[%s274 + $0x118] sm:%s267]
                  %305 = vst [vmem:[%s275 + $0x38] sm:%s267] %v304
                  %v306 = vld [vmem:[%s274 + $0x12c] sm:%s267]
                  %307 = vst [vmem:[%s275 + $0x3c] sm:%s267] %v306
                $region63: #{_lambda_.55} parent=50 // loop_footer
                  %s273 = sadd.s32 1, %s269
                $region64: #{_lambda_.55} parent=50 // loop_footer_branch
                  %268 = sbr.rel target = $region60
                $region65: #{_lambda_.55} parent=50 // loop_exit
                  _
              $region51: #{_lambda_.55} parent=35 // pred_fallthru
                _
            $region36: #{_lambda_.55} parent=31 // pred_fallthru
              _
            // Predicated region
            $region37: #{_lambda_.55} parent=31 // pred_check
              _
            $region38: #{_lambda_.55} parent=31 // pred_check_branch
              %213 = sbr.rel (0) target = $region40
            $region39: #{_lambda_.55} parent=31 // pred_region
              %s215 = ssub.s32 16, 1
              loop: start=0, step=1, limit=1
              $region41: #{_lambda_.55} parent=39 // loop_pre_header
                _
              $region42: #{_lambda_.55} parent=39 // loop_header
                %s217 = sphi 0, %s221
                %p218 = scmp.ge.s32.totalorder %s217, 1
                %s222 = sphi %s207, %s207
                %s223 = sphi %s202, %s202
              $region43: #{_lambda_.55} parent=39 // loop_header_branch
                %220 = sbr.rel (%p218) target = $region47
              $region44: #{_lambda_.55} parent=39 // loop_body
                %v224 = vld [vmem:[%s222] sm:%s215]
                %225 = vst [vmem:[%s223] sm:%s215] %v224
                %v226 = vld [vmem:[%s222 + $0x14] sm:%s215]
                %227 = vst [vmem:[%s223 + $0x4] sm:%s215] %v226
                %v228 = vld [vmem:[%s222 + $0x28] sm:%s215]
                %229 = vst [vmem:[%s223 + $0x8] sm:%s215] %v228
                %v230 = vld [vmem:[%s222 + $0x3c] sm:%s215]
                %231 = vst [vmem:[%s223 + $0xc] sm:%s215] %v230
                %v232 = vld [vmem:[%s222 + $0x50] sm:%s215]
                %233 = vst [vmem:[%s223 + $0x10] sm:%s215] %v232
                %v234 = vld [vmem:[%s222 + $0x64] sm:%s215]
                %235 = vst [vmem:[%s223 + $0x14] sm:%s215] %v234
                %v236 = vld [vmem:[%s222 + $0x78] sm:%s215]
                %237 = vst [vmem:[%s223 + $0x18] sm:%s215] %v236
                %v238 = vld [vmem:[%s222 + $0x8c] sm:%s215]
                %239 = vst [vmem:[%s223 + $0x1c] sm:%s215] %v238
                %v240 = vld [vmem:[%s222 + $0xa0] sm:%s215]
                %241 = vst [vmem:[%s223 + $0x20] sm:%s215] %v240
                %v242 = vld [vmem:[%s222 + $0xb4] sm:%s215]
                %243 = vst [vmem:[%s223 + $0x24] sm:%s215] %v242
                %v244 = vld [vmem:[%s222 + $0xc8] sm:%s215]
                %245 = vst [vmem:[%s223 + $0x28] sm:%s215] %v244
                %v246 = vld [vmem:[%s222 + $0xdc] sm:%s215]
                %247 = vst [vmem:[%s223 + $0x2c] sm:%s215] %v246
                %v248 = vld [vmem:[%s222 + $0xf0] sm:%s215]
                %249 = vst [vmem:[%s223 + $0x30] sm:%s215] %v248
                %v250 = vld [vmem:[%s222 + $0x104] sm:%s215]
                %251 = vst [vmem:[%s223 + $0x34] sm:%s215] %v250
                %v252 = vld [vmem:[%s222 + $0x118] sm:%s215]
                %253 = vst [vmem:[%s223 + $0x38] sm:%s215] %v252
                %v254 = vld [vmem:[%s222 + $0x12c] sm:%s215]
                %255 = vst [vmem:[%s223 + $0x3c] sm:%s215] %v254
              $region45: #{_lambda_.55} parent=39 // loop_footer
                %s221 = sadd.s32 1, %s217
              $region46: #{_lambda_.55} parent=39 // loop_footer_branch
                %216 = sbr.rel target = $region42
              $region47: #{_lambda_.55} parent=39 // loop_exit
                _
            $region40: #{_lambda_.55} parent=31 // pred_fallthru
              _
          $region32: #{_lambda_.55} parent=27 // pred_fallthru
            _
          %308 = vnop
        $region28: #{_lambda_.55} parent=23 // pred_fallthru
          _
        // Predicated region
        $region66: #{_lambda_.55} parent=23 // pred_check
          %p309 = pneg %p79
        $region67: #{_lambda_.55} parent=23 // pred_check_branch
          %311 = sbr.rel (%p309) target = $region69
        $region68: #{_lambda_.55} parent=23 // pred_region
          %s312 = smul.u32 16, %s19
          %p313 = scmp.lt.s32.totalorder %s312, 79
          %s314 = scalar_select %p313, %s312, 79
          %p315 = scmp.lt.s32.totalorder %s18, 0
          %s316 = scalar_select %p315, %s18, 0
          %s317 = sadd.s32 %s316, %s314
          %s318 = smul.addr %s317, 4
          %s319 = scalar_lea.vmem %s1, %s318
          %s320 = smul.u32 16, %s19
        $region69: #{_lambda_.55} parent=23 // pred_fallthru
          _
      $region24: #{_lambda_.55} parent=5 // pred_fallthru
        _
      %p321 = scmp.le.s32.totalorder 1, %s10
      %p322 = scmp.lt.s32.totalorder %s10, 6
      %p323 = pnand %p321, %p322
      %p324 = pneg %p323
      // Predicated region
      $region70: #{_lambda_.55} parent=5 // pred_check
        _
      $region71: #{_lambda_.55} parent=5 // pred_check_branch
        %326 = sbr.rel (%p323) target = $region73
      $region72: #{_lambda_.55} parent=5 // pred_region
        %s327 = ssub.s32 %s10, 1
        %s328 = sand.u32 %s44, 1
        %s329 = sand.u32 %s44, 1
        %s330 = smul.addr %s329, 64
        %s331 = scalar_lea.vmem [#allocation3], %s330
        // Predicated region
        $region74: #{_lambda_.55} parent=72 // pred_check
          %p332 = pneg %p57
        $region75: #{_lambda_.55} parent=72 // pred_check_branch
          %334 = sbr.rel (%p332) target = $region77
        $region76: #{_lambda_.55} parent=72 // pred_region
          _
        $region77: #{_lambda_.55} parent=72 // pred_fallthru
          _
        %s335 = sand.u32 %s44, 1
        %s336 = sand.u32 %s44, 1
        %s337 = smul.addr %s336, 64
        %s338 = scalar_lea.vmem [#allocation3], %s337
        %p339 = pneg %p57
        %p340 = pneg %p54
        %s341 = smul.u32 16, %s22
        %p342 = scmp.lt.s32.totalorder %s341, 79
        %s343 = scalar_select %p342, %s341, 79
        %p344 = scmp.lt.s32.totalorder %s21, 0
        %s345 = scalar_select %p344, %s21, 0
        %s346 = sadd.s32 %s345, %s343
        %s347 = smul.addr %s346, 4
        %s348 = scalar_lea.vmem %s1, %s347
        %p349 = pneg %p85
        %p350 = pneg %p82
        %p351 = scmp.lt.s32.totalorder %s21, 0
        %s352 = scalar_select %p351, %s21, 0
        %s353 = scalar_lea.vmem %s2, %s352
        %p354 = pneg %p111
        %p355 = pneg %p108
        %p356 = scmp.lt.s32.totalorder %s21, 0
        %s357 = scalar_select %p356, %s21, 0
        %s358 = scalar_lea.vmem %s3, %s357
        %p359 = pneg %p137
        %p360 = pneg %p134
        %p361 = pneg %p165
        %p362 = pneg %p162
        %s363 = smul.u32 16, %s20
        %p364 = scmp.lt.s32.totalorder %s363, 15
        %s365 = scalar_select %p364, %s363, 15
        %p366 = scmp.lt.s32.totalorder %s21, 0
        %s367 = scalar_select %p366, %s21, 0
        %s368 = sadd.s32 %s367, %s365
        %s369 = smul.addr %s368, 8
        %s370 = scalar_lea.vmem %s4, %s369
        %s371 = smul.u32 16, %s20
        %s372 = smul.u32 16, %s22
        %p373 = scmp.lt.s32.totalorder %s372, 79
        %s374 = scalar_select %p373, %s372, 79
        %p375 = scmp.lt.s32.totalorder %s21, 0
        %s376 = scalar_select %p375, %s21, 0
        %s377 = sadd.s32 %s376, %s374
        %s378 = smul.addr %s377, 4
        %s379 = scalar_lea.vmem %s1, %s378
        %s380 = smul.u32 16, %s22
        %p381 = scmp.lt.s32.totalorder %s21, 0
        %s382 = scalar_select %p381, %s21, 0
        %s383 = scalar_lea.vmem %s2, %s382
        %p384 = scmp.lt.s32.totalorder %s21, 0
        %s385 = scalar_select %p384, %s21, 0
        %s386 = scalar_lea.vmem %s3, %s385
        %s387 = smul.u32 16, %s20
        %p388 = scmp.lt.s32.totalorder %s387, 15
        %s389 = scalar_select %p388, %s387, 15
        %p390 = scmp.lt.s32.totalorder %s21, 0
        %s391 = scalar_select %p390, %s21, 0
        %s392 = sadd.s32 %s391, %s389
        %s393 = smul.addr %s392, 8
        %s394 = scalar_lea.vmem %s4, %s393
        %s395 = smul.u32 16, %s20
        %p397 = scmp.eq.s32.totalorder %s22, 0
        // Predicated region
        $region78: #{_lambda_.55} parent=72 // pred_check
          %p398 = pneg %p397
        $region79: #{_lambda_.55} parent=72 // pred_check_branch
          %400 = sbr.rel (%p398) target = $region81
        $region80: #{_lambda_.55} parent=72 // pred_region
          %401 = vst [vmem:[#allocation2] sm:$0xff] 0.0
          %402 = vst [vmem:[#allocation2 + $0x8] sm:$0xff] 0.0
          %403 = vst [vmem:[#allocation2 + $0x10] sm:$0xff] 0.0
          %404 = vst [vmem:[#allocation2 + $0x18] sm:$0xff] 0.0
          %405 = vst [vmem:[#allocation2 + $0x20] sm:$0xff] 0.0
          %406 = vst [vmem:[#allocation2 + $0x28] sm:$0xff] 0.0
          %407 = vst [vmem:[#allocation2 + $0x30] sm:$0xff] 0.0
          %408 = vst [vmem:[#allocation2 + $0x38] sm:$0xff] 0.0
          %409 = vst [vmem:[#allocation2 + $0x40] sm:$0xff] 0.0
          %410 = vst [vmem:[#allocation2 + $0x48] sm:$0xff] 0.0
          %411 = vst [vmem:[#allocation2 + $0x50] sm:$0xff] 0.0
          %412 = vst [vmem:[#allocation2 + $0x58] sm:$0xff] 0.0
          %413 = vst [vmem:[#allocation2 + $0x60] sm:$0xff] 0.0
          %414 = vst [vmem:[#allocation2 + $0x68] sm:$0xff] 0.0
          %415 = vst [vmem:[#allocation2 + $0x70] sm:$0xff] 0.0
          %416 = vst [vmem:[#allocation2 + $0x78] sm:$0xff] 0.0
        $region81: #{_lambda_.55} parent=72 // pred_fallthru
          _
        %v417 = vld [vmem:[#allocation2] sm:$0xff]
        %v418 = vld [vmem:[#allocation2 + $0x8] sm:$0xff]
        %v419 = vld [vmem:[#allocation2 + $0x10] sm:$0xff]
        %v420 = vld [vmem:[#allocation2 + $0x18] sm:$0xff]
        %v421 = vld [vmem:[#allocation2 + $0x20] sm:$0xff]
        %v422 = vld [vmem:[#allocation2 + $0x28] sm:$0xff]
        %v423 = vld [vmem:[#allocation2 + $0x30] sm:$0xff]
        %v424 = vld [vmem:[#allocation2 + $0x38] sm:$0xff]
        %v425 = vld [vmem:[#allocation2 + $0x40] sm:$0xff]
        %v426 = vld [vmem:[#allocation2 + $0x48] sm:$0xff]
        %v427 = vld [vmem:[#allocation2 + $0x50] sm:$0xff]
        %v428 = vld [vmem:[#allocation2 + $0x58] sm:$0xff]
        %v429 = vld [vmem:[#allocation2 + $0x60] sm:$0xff]
        %v430 = vld [vmem:[#allocation2 + $0x68] sm:$0xff]
        %v431 = vld [vmem:[#allocation2 + $0x70] sm:$0xff]
        %v432 = vld [vmem:[#allocation2 + $0x78] sm:$0xff]
        %v433 = vld [vmem:[%s331] sm:$0xf]
        %v434 = vld [vmem:[%s331 + $0x4] sm:$0xf]
        %v435 = vld [vmem:[%s331 + $0x8] sm:$0xf]
        %v436 = vld [vmem:[%s331 + $0xc] sm:$0xf]
        %v437 = vld [vmem:[%s331 + $0x10] sm:$0xf]
        %v438 = vld [vmem:[%s331 + $0x14] sm:$0xf]
        %v439 = vld [vmem:[%s331 + $0x18] sm:$0xf]
        %v440 = vld [vmem:[%s331 + $0x1c] sm:$0xf]
        %v441 = vld [vmem:[%s331 + $0x20] sm:$0xf]
        %v442 = vld [vmem:[%s331 + $0x24] sm:$0xf]
        %v443 = vld [vmem:[%s331 + $0x28] sm:$0xf]
        %v444 = vld [vmem:[%s331 + $0x2c] sm:$0xf]
        %v445 = vld [vmem:[%s331 + $0x30] sm:$0xf]
        %v446 = vld [vmem:[%s331 + $0x34] sm:$0xf]
        %v447 = vld [vmem:[%s331 + $0x38] sm:$0xf]
        %v448 = vld [vmem:[%s331 + $0x3c] sm:$0xf]
        %v449 = vld [vmem:[%s379] sm:$0xf]
        %v450 = vld [vmem:[%s379 + $0x4] sm:$0xf]
        %v451 = vld [vmem:[%s379 + $0x8] sm:$0xf]
        %v452 = vld [vmem:[%s379 + $0xc] sm:$0xf]
        %v453 = vld [vmem:[%s379 + $0x10] sm:$0xf]
        %v454 = vld [vmem:[%s379 + $0x14] sm:$0xf]
        %v455 = vld [vmem:[%s379 + $0x18] sm:$0xf]
        %v456 = vld [vmem:[%s379 + $0x1c] sm:$0xf]
        %v457 = vld [vmem:[%s379 + $0x20] sm:$0xf]
        %v458 = vld [vmem:[%s379 + $0x24] sm:$0xf]
        %v459 = vld [vmem:[%s379 + $0x28] sm:$0xf]
        %v460 = vld [vmem:[%s379 + $0x2c] sm:$0xf]
        %v461 = vld [vmem:[%s379 + $0x30] sm:$0xf]
        %v462 = vld [vmem:[%s379 + $0x34] sm:$0xf]
        %v463 = vld [vmem:[%s379 + $0x38] sm:$0xf]
        %v464 = vld [vmem:[%s379 + $0x3c] sm:$0xf]
        %v481 = vunpack.c.l.b16 %v433
        %v482 = vunpack.c.l.b16 %v434
        %v483 = vunpack.c.l.b16 %v435
        %v484 = vunpack.c.l.b16 %v436
        %v485 = vunpack.c.l.b16 %v437
        %v486 = vunpack.c.l.b16 %v438
        %v487 = vunpack.c.l.b16 %v439
        %v488 = vunpack.c.l.b16 %v440
        %v489 = vunpack.c.l.b16 %v441
        %v490 = vunpack.c.l.b16 %v442
        %v491 = vunpack.c.l.b16 %v443
        %v492 = vunpack.c.l.b16 %v444
        %v493 = vunpack.c.l.b16 %v445
        %v494 = vunpack.c.l.b16 %v446
        %v495 = vunpack.c.l.b16 %v447
        %v496 = vunpack.c.l.b16 %v448
        %v497 = vpack.c.b16 %v482, %v481
        %v498 = vpack.c.b16 %v484, %v483
        %v499 = vpack.c.b16 %v486, %v485
        %v500 = vpack.c.b16 %v488, %v487
        %v501 = vpack.c.b16 %v490, %v489
        %v502 = vpack.c.b16 %v492, %v491
        %v503 = vpack.c.b16 %v494, %v493
        %v504 = vpack.c.b16 %v496, %v495
        %v529 = vunpack.c.l.b16 %v449
        %v530 = vunpack.c.l.b16 %v450
        %v531 = vunpack.c.l.b16 %v451
        %v532 = vunpack.c.l.b16 %v452
        %v533 = vunpack.c.l.b16 %v453
        %v534 = vunpack.c.l.b16 %v454
        %v535 = vunpack.c.l.b16 %v455
        %v536 = vunpack.c.l.b16 %v456
        %v537 = vunpack.c.l.b16 %v457
        %v538 = vunpack.c.l.b16 %v458
        %v539 = vunpack.c.l.b16 %v459
        %v540 = vunpack.c.l.b16 %v460
        %v541 = vunpack.c.l.b16 %v461
        %v542 = vunpack.c.l.b16 %v462
        %v543 = vunpack.c.l.b16 %v463
        %v544 = vunpack.c.l.b16 %v464
        %v545 = vpack.c.b16 %v530, %v529
        %v546 = vpack.c.b16 %v532, %v531
        %v547 = vpack.c.b16 %v534, %v533
        %v548 = vpack.c.b16 %v536, %v535
        %v549 = vpack.c.b16 %v538, %v537
        %v550 = vpack.c.b16 %v540, %v539
        %v551 = vpack.c.b16 %v542, %v541
        %v552 = vpack.c.b16 %v544, %v543
        %561 = vmatprep.subr.bf16.mxu0 0
        %562 = vmatpush1.bf16.msra.mxu0 %v552
        %563 = vmatprep.subr.bf16.mxu0 0
        %564 = vmatpush1.bf16.msra.mxu0 %v551
        %565 = vmatprep.subr.bf16.mxu0 0
        %566 = vmatpush1.bf16.msra.mxu0 %v550
        %567 = vmatprep.subr.bf16.mxu0 0
        %568 = vmatpush1.bf16.msra.mxu0 %v549
        %569 = vmatprep.subr.bf16.mxu0 0
        %570 = vmatpush1.bf16.msra.mxu0 %v548
        %571 = vmatprep.subr.bf16.mxu0 0
        %572 = vmatpush1.bf16.msra.mxu0 %v547
        %573 = vmatprep.subr.bf16.mxu0 0
        %574 = vmatpush1.bf16.msra.mxu0 %v546
        %575 = vmatprep.subr.bf16.mxu0 0
        %576 = vmatpush1.bf16.msra.mxu0 %v545
        %577 = vmatprep.subr.bf16.mxu0 0
        %578 = vmatpush2.bf16.msra.mxu0 0
        %579 = vmatprep.subr.bf16.mxu0 0
        %580 = vmatpush2.bf16.msra.mxu0 0
        %581 = vmatprep.subr.bf16.mxu0 0
        %582 = vmatpush2.bf16.msra.mxu0 0
        %583 = vmatprep.subr.bf16.mxu0 0
        %584 = vmatpush2.bf16.msra.mxu0 0
        %585 = vmatprep.subr.bf16.mxu0 0
        %586 = vmatpush2.bf16.msra.mxu0 0
        %587 = vmatprep.subr.bf16.mxu0 0
        %588 = vmatpush2.bf16.msra.mxu0 0
        %589 = vmatprep.subr.bf16.mxu0 0
        %590 = vmatpush2.bf16.msra.mxu0 0
        %591 = vmatprep.subr.bf16.mxu0 0
        %592 = vmatpush2.bf16.msra.mxu0 0
        %593 = vmatprep.mubr.bf16.mxu0 0
        %594 = vmatmul.mubr.bf16.gmra.mxu0 %v497
        %v595 = vpop.f32.mrf.mxu0
        %v596 = vadd.f32 0.0, %v595
        %v597 = vpop.f32.mrf.mxu0
        %v598 = vpop.f32.mrf.mxu0
        %v599 = vadd.f32 0.0, %v598
        %v600 = vpop.f32.mrf.mxu0
        %601 = vmatprep.mubr.bf16.mxu0 0
        %602 = vmatmul.mubr.bf16.gmra.mxu0 %v498
        %v603 = vpop.f32.mrf.mxu0
        %v604 = vadd.f32 0.0, %v603
        %v605 = vpop.f32.mrf.mxu0
        %v606 = vpop.f32.mrf.mxu0
        %v607 = vadd.f32 0.0, %v606
        %v608 = vpop.f32.mrf.mxu0
        %609 = vmatprep.mubr.bf16.mxu0 0
        %610 = vmatmul.mubr.bf16.gmra.mxu0 %v499
        %v611 = vpop.f32.mrf.mxu0
        %v612 = vadd.f32 0.0, %v611
        %v613 = vpop.f32.mrf.mxu0
        %v614 = vpop.f32.mrf.mxu0
        %v615 = vadd.f32 0.0, %v614
        %v616 = vpop.f32.mrf.mxu0
        %617 = vmatprep.mubr.bf16.mxu0 0
        %618 = vmatmul.mubr.bf16.gmra.mxu0 %v500
        %v619 = vpop.f32.mrf.mxu0
        %v620 = vadd.f32 0.0, %v619
        %v621 = vpop.f32.mrf.mxu0
        %v622 = vpop.f32.mrf.mxu0
        %v623 = vadd.f32 0.0, %v622
        %v624 = vpop.f32.mrf.mxu0
        %625 = vmatprep.mubr.bf16.mxu0 0
        %626 = vmatmul.mubr.bf16.gmra.mxu0 %v501
        %v627 = vpop.f32.mrf.mxu0
        %v628 = vadd.f32 0.0, %v627
        %v629 = vpop.f32.mrf.mxu0
        %v630 = vpop.f32.mrf.mxu0
        %v631 = vadd.f32 0.0, %v630
        %v632 = vpop.f32.mrf.mxu0
        %633 = vmatprep.mubr.bf16.mxu0 0
        %634 = vmatmul.mubr.bf16.gmra.mxu0 %v502
        %v635 = vpop.f32.mrf.mxu0
        %v636 = vadd.f32 0.0, %v635
        %v637 = vpop.f32.mrf.mxu0
        %v638 = vpop.f32.mrf.mxu0
        %v639 = vadd.f32 0.0, %v638
        %v640 = vpop.f32.mrf.mxu0
        %641 = vmatprep.mubr.bf16.mxu0 0
        %642 = vmatmul.mubr.bf16.gmra.mxu0 %v503
        %v643 = vpop.f32.mrf.mxu0
        %v644 = vadd.f32 0.0, %v643
        %v645 = vpop.f32.mrf.mxu0
        %v646 = vpop.f32.mrf.mxu0
        %v647 = vadd.f32 0.0, %v646
        %v648 = vpop.f32.mrf.mxu0
        %649 = vmatprep.mubr.bf16.mxu0 0
        %650 = vmatmul.mubr.bf16.gmra.mxu0 %v504
        %v651 = vpop.f32.mrf.mxu0
        %v652 = vadd.f32 0.0, %v651
        %v653 = vpop.f32.mrf.mxu0
        %v654 = vpop.f32.mrf.mxu0
        %v655 = vadd.f32 0.0, %v654
        %v656 = vpop.f32.mrf.mxu0
        %657 = vdwg.mxu0
        %v658 = vadd.f32 %v417, %v596
        %v659 = vadd.f32 %v418, %v599
        %v660 = vadd.f32 %v419, %v604
        %v661 = vadd.f32 %v420, %v607
        %v662 = vadd.f32 %v421, %v612
        %v663 = vadd.f32 %v422, %v615
        %v664 = vadd.f32 %v423, %v620
        %v665 = vadd.f32 %v424, %v623
        %v666 = vadd.f32 %v425, %v628
        %v667 = vadd.f32 %v426, %v631
        %v668 = vadd.f32 %v427, %v636
        %v669 = vadd.f32 %v428, %v639
        %v670 = vadd.f32 %v429, %v644
        %v671 = vadd.f32 %v430, %v647
        %v672 = vadd.f32 %v431, %v652
        %v673 = vadd.f32 %v432, %v655
        %674 = vst [vmem:[#allocation2] sm:$0xff] %v658
        %675 = vst [vmem:[#allocation2 + $0x8] sm:$0xff] %v659
        %676 = vst [vmem:[#allocation2 + $0x10] sm:$0xff] %v660
        %677 = vst [vmem:[#allocation2 + $0x18] sm:$0xff] %v661
        %678 = vst [vmem:[#allocation2 + $0x20] sm:$0xff] %v662
        %679 = vst [vmem:[#allocation2 + $0x28] sm:$0xff] %v663
        %680 = vst [vmem:[#allocation2 + $0x30] sm:$0xff] %v664
        %681 = vst [vmem:[#allocation2 + $0x38] sm:$0xff] %v665
        %682 = vst [vmem:[#allocation2 + $0x40] sm:$0xff] %v666
        %683 = vst [vmem:[#allocation2 + $0x48] sm:$0xff] %v667
        %684 = vst [vmem:[#allocation2 + $0x50] sm:$0xff] %v668
        %685 = vst [vmem:[#allocation2 + $0x58] sm:$0xff] %v669
        %686 = vst [vmem:[#allocation2 + $0x60] sm:$0xff] %v670
        %687 = vst [vmem:[#allocation2 + $0x68] sm:$0xff] %v671
        %688 = vst [vmem:[#allocation2 + $0x70] sm:$0xff] %v672
        %689 = vst [vmem:[#allocation2 + $0x78] sm:$0xff] %v673
        %p690 = scmp.eq.s32.totalorder %s22, 4
        // Predicated region
        $region82: #{_lambda_.55} parent=72 // pred_check
          %p691 = pneg %p690
        $region83: #{_lambda_.55} parent=72 // pred_check_branch
          %693 = sbr.rel (%p691) target = $region85
        $region84: #{_lambda_.55} parent=72 // pred_region
          %v694 = vld [vmem:[#allocation2] sm:$0xff]
          %v695 = vld [vmem:[#allocation2 + $0x8] sm:$0xff]
          %v696 = vld [vmem:[#allocation2 + $0x10] sm:$0xff]
          %v697 = vld [vmem:[#allocation2 + $0x18] sm:$0xff]
          %v698 = vld [vmem:[#allocation2 + $0x20] sm:$0xff]
          %v699 = vld [vmem:[#allocation2 + $0x28] sm:$0xff]
          %v700 = vld [vmem:[#allocation2 + $0x30] sm:$0xff]
          %v701 = vld [vmem:[#allocation2 + $0x38] sm:$0xff]
          %v702 = vld [vmem:[#allocation2 + $0x40] sm:$0xff]
          %v703 = vld [vmem:[#allocation2 + $0x48] sm:$0xff]
          %v704 = vld [vmem:[#allocation2 + $0x50] sm:$0xff]
          %v705 = vld [vmem:[#allocation2 + $0x58] sm:$0xff]
          %v706 = vld [vmem:[#allocation2 + $0x60] sm:$0xff]
          %v707 = vld [vmem:[#allocation2 + $0x68] sm:$0xff]
          %v708 = vld [vmem:[#allocation2 + $0x70] sm:$0xff]
          %v709 = vld [vmem:[#allocation2 + $0x78] sm:$0xff]
          %v710 = vld [vmem:[%s383] sm:$0x1]
          %v712 = vlaneseq
          %v713 = vshrl.u32 %v712, 7
          %v714 = vsub.s32 0, %v713
          %v715 = vrot.slane %v710, %v714
          %v717 = vadd.f32 %v694, %v715
          %v718 = vadd.f32 %v695, %v715
          %v719 = vadd.f32 %v696, %v715
          %v720 = vadd.f32 %v697, %v715
          %v721 = vadd.f32 %v698, %v715
          %v722 = vadd.f32 %v699, %v715
          %v723 = vadd.f32 %v700, %v715
          %v724 = vadd.f32 %v701, %v715
          %v725 = vadd.f32 %v702, %v715
          %v726 = vadd.f32 %v703, %v715
          %v727 = vadd.f32 %v704, %v715
          %v728 = vadd.f32 %v705, %v715
          %v729 = vadd.f32 %v706, %v715
          %v730 = vadd.f32 %v707, %v715
          %v731 = vadd.f32 %v708, %v715
          %v732 = vadd.f32 %v709, %v715
          %vm733 = vcmp.ge.f32.partialorder %v717, 0.0
          %vm734 = vcmp.ge.f32.partialorder %v718, 0.0
          %vm735 = vcmp.ge.f32.partialorder %v719, 0.0
          %vm736 = vcmp.ge.f32.partialorder %v720, 0.0
          %vm737 = vcmp.ge.f32.partialorder %v721, 0.0
          %vm738 = vcmp.ge.f32.partialorder %v722, 0.0
          %vm739 = vcmp.ge.f32.partialorder %v723, 0.0
          %vm740 = vcmp.ge.f32.partialorder %v724, 0.0
          %vm741 = vcmp.ge.f32.partialorder %v725, 0.0
          %vm742 = vcmp.ge.f32.partialorder %v726, 0.0
          %vm743 = vcmp.ge.f32.partialorder %v727, 0.0
          %vm744 = vcmp.ge.f32.partialorder %v728, 0.0
          %vm745 = vcmp.ge.f32.partialorder %v729, 0.0
          %vm746 = vcmp.ge.f32.partialorder %v730, 0.0
          %vm747 = vcmp.ge.f32.partialorder %v731, 0.0
          %vm748 = vcmp.ge.f32.partialorder %v732, 0.0
          %v749 = vld [vmem:[%s386] sm:$0x1]
          %v751 = vlaneseq
          %v752 = vshrl.u32 %v751, 7
          %v753 = vsub.s32 0, %v752
          %v754 = vrot.slane %v749, %v753
          %v756 = vmul.f32 %v754, %v717
          %v757 = vmul.f32 %v754, %v718
          %v758 = vmul.f32 %v754, %v719
          %v759 = vmul.f32 %v754, %v720
          %v760 = vmul.f32 %v754, %v721
          %v761 = vmul.f32 %v754, %v722
          %v762 = vmul.f32 %v754, %v723
          %v763 = vmul.f32 %v754, %v724
          %v764 = vmul.f32 %v754, %v725
          %v765 = vmul.f32 %v754, %v726
          %v766 = vmul.f32 %v754, %v727
          %v767 = vmul.f32 %v754, %v728
          %v768 = vmul.f32 %v754, %v729
          %v769 = vmul.f32 %v754, %v730
          %v770 = vmul.f32 %v754, %v731
          %v771 = vmul.f32 %v754, %v732
          %v772 = vsel %vm733, %v717, %v756
          %v773 = vsel %vm734, %v718, %v757
          %v774 = vsel %vm735, %v719, %v758
          %v775 = vsel %vm736, %v720, %v759
          %v776 = vsel %vm737, %v721, %v760
          %v777 = vsel %vm738, %v722, %v761
          %v778 = vsel %vm739, %v723, %v762
          %v779 = vsel %vm740, %v724, %v763
          %v780 = vsel %vm741, %v725, %v764
          %v781 = vsel %vm742, %v726, %v765
          %v782 = vsel %vm743, %v727, %v766
          %v783 = vsel %vm744, %v728, %v767
          %v784 = vsel %vm745, %v729, %v768
          %v785 = vsel %vm746, %v730, %v769
          %v786 = vsel %vm747, %v731, %v770
          %v787 = vsel %vm748, %v732, %v771
          %788 = vst [vmem:[%s394] sm:$0xff] %v772
          %789 = vst [vmem:[%s394 + $0x8] sm:$0xff] %v773
          %790 = vst [vmem:[%s394 + $0x10] sm:$0xff] %v774
          %791 = vst [vmem:[%s394 + $0x18] sm:$0xff] %v775
          %792 = vst [vmem:[%s394 + $0x20] sm:$0xff] %v776
          %793 = vst [vmem:[%s394 + $0x28] sm:$0xff] %v777
          %794 = vst [vmem:[%s394 + $0x30] sm:$0xff] %v778
          %795 = vst [vmem:[%s394 + $0x38] sm:$0xff] %v779
          %796 = vst [vmem:[%s394 + $0x40] sm:$0xff] %v780
          %797 = vst [vmem:[%s394 + $0x48] sm:$0xff] %v781
          %798 = vst [vmem:[%s394 + $0x50] sm:$0xff] %v782
          %799 = vst [vmem:[%s394 + $0x58] sm:$0xff] %v783
          %800 = vst [vmem:[%s394 + $0x60] sm:$0xff] %v784
          %801 = vst [vmem:[%s394 + $0x68] sm:$0xff] %v785
          %802 = vst [vmem:[%s394 + $0x70] sm:$0xff] %v786
          %803 = vst [vmem:[%s394 + $0x78] sm:$0xff] %v787
        $region85: #{_lambda_.55} parent=72 // pred_fallthru
          _
        %s804 = smul.u32 16, %s20
        %p805 = scmp.lt.s32.totalorder %s804, 15
        %s806 = scalar_select %p805, %s804, 15
        %p807 = scmp.lt.s32.totalorder %s21, 0
        %s808 = scalar_select %p807, %s21, 0
        %s809 = sadd.s32 %s808, %s806
        %s810 = smul.addr %s809, 8
        %s811 = scalar_lea.vmem %s4, %s810
        // Predicated region
        $region86: #{_lambda_.55} parent=72 // pred_check
          %p812 = pneg %p162
        $region87: #{_lambda_.55} parent=72 // pred_check_branch
          %814 = sbr.rel (%p812) target = $region89
        $region88: #{_lambda_.55} parent=72 // pred_region
          %s815 = smul.u32 16, %s20
        $region89: #{_lambda_.55} parent=72 // pred_fallthru
          _
        // Predicated region
        $region90: #{_lambda_.55} parent=72 // pred_check
          %p816 = pneg %p162
        $region91: #{_lambda_.55} parent=72 // pred_check_branch
          %818 = sbr.rel (%p816) target = $region93
        $region92: #{_lambda_.55} parent=72 // pred_region
          %s819 = smul.u32 16, %s20
          %p820 = scmp.lt.s32.totalorder %s819, 15
          %s821 = scalar_select %p820, %s819, 15
          %p822 = scmp.lt.s32.totalorder %s21, 0
          %s823 = scalar_select %p822, %s21, 0
          %s824 = sadd.s32 %s823, %s821
          %s825 = smul.addr %s824, 8
          %s826 = scalar_lea.vmem %s4, %s825
        $region93: #{_lambda_.55} parent=72 // pred_fallthru
          _
      $region73: #{_lambda_.55} parent=5 // pred_fallthru
        _
      %p827 = scmp.le.s32.totalorder 2, %s10
      // Predicated region
      $region94: #{_lambda_.55} parent=5 // pred_check
        %p828 = pneg %p827
      $region95: #{_lambda_.55} parent=5 // pred_check_branch
        %830 = sbr.rel (%p828) target = $region97
      $region96: #{_lambda_.55} parent=5 // pred_region
        %s831 = ssub.s32 %s10, 2
      $region97: #{_lambda_.55} parent=5 // pred_fallthru
        _
    $region6: #{_lambda_.55} parent=1 // loop_footer
      %s14 = sadd.s32 1, %s10
    $region7: #{_lambda_.55} parent=1 // loop_footer_branch
      %9 = sbr.rel target = $region3
    $region8: #{_lambda_.55} parent=1 // loop_exit
      _

// kernel: _lambda_.73
$region0: #{_lambda_.73}
  #allocation0 [shape = 'u32[]', space=smem, size = 0x4, offset = 0x4, fixed_abs, tag = 'smem constant byte address 0x4 - core index']
  #allocation1 [shape = 'u32[144,128]{1,0:T(1,128)}', space=vmem, size = 0x12000, scoped, tag = 'internal scratch']
  #allocation2 [shape = 'f32[128,128]{1,0:T(8,128)}', space=vmem, size = 0x10000, scoped, tag = 'scratch operand']
  %s0 = inlined_call_operand.vmem [shape: bf16[128,640], index: 0, kind: input, shape index: {}]
  %s1 = inlined_call_operand.vmem [shape: bf16[640,128], index: 1, kind: input, shape index: {}]
  %s2 = inlined_call_operand.vmem [shape: f32[1,128], index: 2, kind: input, shape index: {}]
  %s3 = inlined_call_operand.vmem [shape: f32[1,128], index: 3, kind: input, shape index: {}]
  %s4 = inlined_call_operand.hbm [shape: f32[128,128], index: 4, kind: output, shape index: {}]
  %s5 = sld [smem:[#allocation0]]
  $region98: #{_lambda_.73} parent=0
    _
  %s7 = ssub.s32 1, %s5
  %s8 = scalar_select 0, %s7, %s5
  $region1: #{_lambda_.73} parent=0
    #allocation3 [shape = 'u8[65536]{0}', space=vmem, size = 0x10000, scoped, tag = 'input window, operand 0']
    #allocation4 [shape = 'u8[65536]{0}', space=vmem, size = 0x10000, scoped, tag = 'output window, operand 0, single buffered']
    #allocation5 [shape = 's32[2]{0}', space=sflag, size = 0x8, scoped, tag = 'scoped memory for _lambda_.73']
    %9 = vsyncpa [#allocation5], 0
    loop: start=0, step=1, limit=7
    $region2: #{_lambda_.73} parent=1 // loop_pre_header
      _
    $region3: #{_lambda_.73} parent=1 // loop_header
      %s11 = sphi 0, %s15
      %p12 = scmp.ge.s32.totalorder %s11, 7
      %s18 = sphi 0, %s37
      %s19 = sphi 0, %s33
      %s20 = sphi 0, %s29
      %s21 = sphi 0, %s18
      %s22 = sphi 0, %s19
      %s23 = sphi 0, %s20
      %s24 = sphi 0, %s21
      %s25 = sphi 0, %s22
      %s26 = sphi 0, %s23
      %s42 = sphi 0, %s44
      %s45 = sphi 0, %s42
      %s46 = sphi 0, %s45
      %s62 = sphi 0, %s46
      %s70 = sphi 0, %s72
      %s73 = sphi 0, %s70
      %s74 = sphi 0, %s73
      %s90 = sphi 0, %s74
      %s96 = sphi 0, %s98
      %s99 = sphi 0, %s96
      %s100 = sphi 0, %s99
      %s116 = sphi 0, %s100
      %s122 = sphi 0, %s124
      %s125 = sphi 0, %s122
      %s126 = sphi 0, %s125
      %s142 = sphi 0, %s126
      %s150 = sphi 0, %s152
      %s153 = sphi 0, %s150
      %s154 = sphi 0, %s153
      %s170 = sphi 0, %s154
    $region4: #{_lambda_.73} parent=1 // loop_header_branch
      %14 = sbr.rel (%p12) target = $region8
    $region5: #{_lambda_.73} parent=1 // loop_body
      %s16 = ssub.s32 %s11, 1
      %s17 = ssub.s32 %s11, 2
      %s27 = sadd.s32 1, %s20
      %p28 = scmp.ge.s32.totalorder %s27, 5
      %s29 = scalar_select %p28, 0, %s27
      %s30 = sadd.s32 1, %s19
      %s31 = scalar_select %p28, %s30, %s19
      %p32 = scmp.ge.s32.totalorder %s31, 1
      %s33 = scalar_select %p32, 0, %s31
      %s34 = sadd.s32 1, %s18
      %s35 = scalar_select %p32, %s34, %s18
      %p36 = scmp.ge.s32.totalorder %s35, 1
      %s37 = scalar_select %p36, 0, %s35
      %s38 = ssub.s32 %s18, %s37
      %s39 = ssub.s32 %s20, %s29
      %s40 = sor.u32 %s38, %s39
      %p41 = scmp.eq.s32.totalorder %s40, 0
      %s43 = sadd.s32 %s42, 1
      %s44 = scalar_select %p41, %s42, %s43
      %p47 = pneg %p41
      %p48 = scmp.eq.s32.totalorder %s11, 4
      %p49 = por %p47, %p48
      %p50 = scmp.ne.s32.totalorder %s42, %s45
      %p51 = scmp.eq.s32.totalorder %s11, 0
      %p52 = por %p50, %p51
      %p53 = scmp.ne.s32.totalorder %s42, %s45
      %p54 = scmp.eq.s32.totalorder %s16, 4
      %p55 = por %p53, %p54
      %p56 = scmp.ne.s32.totalorder %s45, %s46
      %p57 = scmp.eq.s32.totalorder %s16, 0
      %p58 = por %p56, %p57
      %p59 = scmp.ne.s32.totalorder %s45, %s46
      %p60 = scmp.eq.s32.totalorder %s17, 4
      %p61 = por %p59, %p60
      %p63 = scmp.ne.s32.totalorder %s46, %s62
      %p64 = scmp.eq.s32.totalorder %s17, 0
      %p65 = por %p63, %p64
      %s66 = ssub.s32 %s20, %s29
      %s67 = ssub.s32 %s19, %s33
      %s68 = sor.u32 %s66, %s67
      %p69 = scmp.eq.s32.totalorder %s68, 0
      %s71 = sadd.s32 %s70, 1
      %s72 = scalar_select %p69, %s70, %s71
      %p75 = pneg %p69
      %p76 = scmp.eq.s32.totalorder %s11, 4
      %p77 = por %p75, %p76
      %p78 = scmp.ne.s32.totalorder %s70, %s73
      %p79 = scmp.eq.s32.totalorder %s11, 0
      %p80 = por %p78, %p79
      %p81 = scmp.ne.s32.totalorder %s70, %s73
      %p82 = scmp.eq.s32.totalorder %s16, 4
      %p83 = por %p81, %p82
      %p84 = scmp.ne.s32.totalorder %s73, %s74
      %p85 = scmp.eq.s32.totalorder %s16, 0
      %p86 = por %p84, %p85
      %p87 = scmp.ne.s32.totalorder %s73, %s74
      %p88 = scmp.eq.s32.totalorder %s17, 4
      %p89 = por %p87, %p88
      %p91 = scmp.ne.s32.totalorder %s74, %s90
      %p92 = scmp.eq.s32.totalorder %s17, 0
      %p93 = por %p91, %p92
      %s94 = ssub.s32 %s19, %s33
      %p95 = scmp.eq.s32.totalorder %s94, 0
      %s97 = sadd.s32 %s96, 1
      %s98 = scalar_select %p95, %s96, %s97
      %p101 = pneg %p95
      %p102 = scmp.eq.s32.totalorder %s11, 4
      %p103 = por %p101, %p102
      %p104 = scmp.ne.s32.totalorder %s96, %s99
      %p105 = scmp.eq.s32.totalorder %s11, 0
      %p106 = por %p104, %p105
      %p107 = scmp.ne.s32.totalorder %s96, %s99
      %p108 = scmp.eq.s32.totalorder %s16, 4
      %p109 = por %p107, %p108
      %p110 = scmp.ne.s32.totalorder %s99, %s100
      %p111 = scmp.eq.s32.totalorder %s16, 0
      %p112 = por %p110, %p111
      %p113 = scmp.ne.s32.totalorder %s99, %s100
      %p114 = scmp.eq.s32.totalorder %s17, 4
      %p115 = por %p113, %p114
      %p117 = scmp.ne.s32.totalorder %s100, %s116
      %p118 = scmp.eq.s32.totalorder %s17, 0
      %p119 = por %p117, %p118
      %s120 = ssub.s32 %s19, %s33
      %p121 = scmp.eq.s32.totalorder %s120, 0
      %s123 = sadd.s32 %s122, 1
      %s124 = scalar_select %p121, %s122, %s123
      %p127 = pneg %p121
      %p128 = scmp.eq.s32.totalorder %s11, 4
      %p129 = por %p127, %p128
      %p130 = scmp.ne.s32.totalorder %s122, %s125
      %p131 = scmp.eq.s32.totalorder %s11, 0
      %p132 = por %p130, %p131
      %p133 = scmp.ne.s32.totalorder %s122, %s125
      %p134 = scmp.eq.s32.totalorder %s16, 4
      %p135 = por %p133, %p134
      %p136 = scmp.ne.s32.totalorder %s125, %s126
      %p137 = scmp.eq.s32.totalorder %s16, 0
      %p138 = por %p136, %p137
      %p139 = scmp.ne.s32.totalorder %s125, %s126
      %p140 = scmp.eq.s32.totalorder %s17, 4
      %p141 = por %p139, %p140
      %p143 = scmp.ne.s32.totalorder %s126, %s142
      %p144 = scmp.eq.s32.totalorder %s17, 0
      %p145 = por %p143, %p144
      %s146 = ssub.s32 %s18, %s37
      %s147 = ssub.s32 %s19, %s33
      %s148 = sor.u32 %s146, %s147
      %p149 = scmp.eq.s32.totalorder %s148, 0
      %s151 = sadd.s32 %s150, 1
      %s152 = scalar_select %p149, %s150, %s151
      %p155 = pneg %p149
      %p156 = scmp.eq.s32.totalorder %s11, 4
      %p157 = por %p155, %p156
      %p158 = scmp.ne.s32.totalorder %s150, %s153
      %p159 = scmp.eq.s32.totalorder %s11, 0
      %p160 = por %p158, %p159
      %p161 = scmp.ne.s32.totalorder %s150, %s153
      %p162 = scmp.eq.s32.totalorder %s16, 4
      %p163 = por %p161, %p162
      %p164 = scmp.ne.s32.totalorder %s153, %s154
      %p165 = scmp.eq.s32.totalorder %s16, 0
      %p166 = por %p164, %p165
      %p167 = scmp.ne.s32.totalorder %s153, %s154
      %p168 = scmp.eq.s32.totalorder %s17, 4
      %p169 = por %p167, %p168
      %p171 = scmp.ne.s32.totalorder %s154, %s170
      %p172 = scmp.eq.s32.totalorder %s17, 0
      %p173 = por %p171, %p172
      %p174 = scmp.le.s32.totalorder 1, %s11
      %p175 = scmp.lt.s32.totalorder %s11, 6
      %p176 = pnand %p174, %p175
      %p177 = pneg %p176
      // Predicated region
      $region9: #{_lambda_.73} parent=5 // pred_check
        _
      $region10: #{_lambda_.73} parent=5 // pred_check_branch
        %179 = sbr.rel (%p176) target = $region12
      $region11: #{_lambda_.73} parent=5 // pred_region
        %s180 = ssub.s32 %s11, 1
        // Predicated region
        $region13: #{_lambda_.73} parent=11 // pred_check
          %p181 = pneg %p112
        $region14: #{_lambda_.73} parent=11 // pred_check_branch
          %183 = sbr.rel (%p181) target = $region16
        $region15: #{_lambda_.73} parent=11 // pred_region
          %p184 = scmp.lt.s32.totalorder %s22, 0
          %s185 = scalar_select %p184, %s22, 0
          %s186 = scalar_lea.vmem %s2, %s185
        $region16: #{_lambda_.73} parent=11 // pred_fallthru
          _
        // Predicated region
        $region17: #{_lambda_.73} parent=11 // pred_check
          %p187 = pneg %p138
        $region18: #{_lambda_.73} parent=11 // pred_check_branch
          %189 = sbr.rel (%p187) target = $region20
        $region19: #{_lambda_.73} parent=11 // pred_region
          %p190 = scmp.lt.s32.totalorder %s22, 0
          %s191 = scalar_select %p190, %s22, 0
          %s192 = scalar_lea.vmem %s3, %s191
        $region20: #{_lambda_.73} parent=11 // pred_fallthru
          _
      $region12: #{_lambda_.73} parent=5 // pred_fallthru
        _
      %p193 = scmp.lt.s32.totalorder %s11, 5
      // Predicated region
      $region21: #{_lambda_.73} parent=5 // pred_check
        %p194 = pneg %p193
      $region22: #{_lambda_.73} parent=5 // pred_check_branch
        %196 = sbr.rel (%p194) target = $region24
      $region23: #{_lambda_.73} parent=5 // pred_region
        // Predicated region
        $region25: #{_lambda_.73} parent=23 // pred_check
          %p197 = pneg %p52
        $region26: #{_lambda_.73} parent=23 // pred_check_branch
          %199 = sbr.rel (%p197) target = $region28
        $region27: #{_lambda_.73} parent=23 // pred_region
          %s200 = sand.u32 %s42, 1
          %s201 = sand.u32 %s42, 1
          %s202 = smul.addr %s201, 64
          %s203 = scalar_lea.vmem [#allocation3], %s202
          %s204 = smul.u32 16, %s18
          %s205 = smul.addr %s204, 5
          %s206 = sadd.s32 %s20, %s205
          %s207 = smul.addr %s206, 4
          %s208 = scalar_lea.vmem %s0, %s207
          // Predicated region
          $region29: #{_lambda_.73} parent=27 // pred_check
            _
          $region30: #{_lambda_.73} parent=27 // pred_check_branch
            %210 = sbr.rel (0) target = $region32
          $region31: #{_lambda_.73} parent=27 // pred_region
            // Predicated region
            $region33: #{_lambda_.73} parent=31 // pred_check
              _
            $region34: #{_lambda_.73} parent=31 // pred_check_branch
              %212 = sbr.rel target = $region36
            $region35: #{_lambda_.73} parent=31 // pred_region
              // Predicated region
              $region48: #{_lambda_.73} parent=35 // pred_check
                _
              $region49: #{_lambda_.73} parent=35 // pred_check_branch
                %258 = sbr.rel (0) target = $region51
              $region50: #{_lambda_.73} parent=35 // pred_region
                loop: start=0, step=1, limit=1
                $region52: #{_lambda_.73} parent=50 // loop_pre_header
                  _
                $region53: #{_lambda_.73} parent=50 // loop_header
                  %s260 = sphi 0, %s264
                  %p261 = scmp.ge.s32.totalorder %s260, 1
                  %s265 = sphi %s208, %s208
                  %s266 = sphi %s203, %s203
                $region54: #{_lambda_.73} parent=50 // loop_header_branch
                  %263 = sbr.rel (%p261) target = $region58
                $region55: #{_lambda_.73} parent=50 // loop_body
                  _
                $region56: #{_lambda_.73} parent=50 // loop_footer
                  %s264 = sadd.s32 1, %s260
                $region57: #{_lambda_.73} parent=50 // loop_footer_branch
                  %259 = sbr.rel target = $region53
                $region58: #{_lambda_.73} parent=50 // loop_exit
                  _
                %s268 = ssub.s32 16, 1
                loop: start=0, step=1, limit=1
                $region59: #{_lambda_.73} parent=50 // loop_pre_header
                  _
                $region60: #{_lambda_.73} parent=50 // loop_header
                  %s270 = sphi 0, %s274
                  %p271 = scmp.ge.s32.totalorder %s270, 1
                  %s275 = sphi %s208, %s208
                  %s276 = sphi %s203, %s203
                $region61: #{_lambda_.73} parent=50 // loop_header_branch
                  %273 = sbr.rel (%p271) target = $region65
                $region62: #{_lambda_.73} parent=50 // loop_body
                  %v277 = vld [vmem:[%s275] sm:%s268]
                  %278 = vst [vmem:[%s276] sm:%s268] %v277
                  %v279 = vld [vmem:[%s275 + $0x14] sm:%s268]
                  %280 = vst [vmem:[%s276 + $0x4] sm:%s268] %v279
                  %v281 = vld [vmem:[%s275 + $0x28] sm:%s268]
                  %282 = vst [vmem:[%s276 + $0x8] sm:%s268] %v281
                  %v283 = vld [vmem:[%s275 + $0x3c] sm:%s268]
                  %284 = vst [vmem:[%s276 + $0xc] sm:%s268] %v283
                  %v285 = vld [vmem:[%s275 + $0x50] sm:%s268]
                  %286 = vst [vmem:[%s276 + $0x10] sm:%s268] %v285
                  %v287 = vld [vmem:[%s275 + $0x64] sm:%s268]
                  %288 = vst [vmem:[%s276 + $0x14] sm:%s268] %v287
                  %v289 = vld [vmem:[%s275 + $0x78] sm:%s268]
                  %290 = vst [vmem:[%s276 + $0x18] sm:%s268] %v289
                  %v291 = vld [vmem:[%s275 + $0x8c] sm:%s268]
                  %292 = vst [vmem:[%s276 + $0x1c] sm:%s268] %v291
                  %v293 = vld [vmem:[%s275 + $0xa0] sm:%s268]
                  %294 = vst [vmem:[%s276 + $0x20] sm:%s268] %v293
                  %v295 = vld [vmem:[%s275 + $0xb4] sm:%s268]
                  %296 = vst [vmem:[%s276 + $0x24] sm:%s268] %v295
                  %v297 = vld [vmem:[%s275 + $0xc8] sm:%s268]
                  %298 = vst [vmem:[%s276 + $0x28] sm:%s268] %v297
                  %v299 = vld [vmem:[%s275 + $0xdc] sm:%s268]
                  %300 = vst [vmem:[%s276 + $0x2c] sm:%s268] %v299
                  %v301 = vld [vmem:[%s275 + $0xf0] sm:%s268]
                  %302 = vst [vmem:[%s276 + $0x30] sm:%s268] %v301
                  %v303 = vld [vmem:[%s275 + $0x104] sm:%s268]
                  %304 = vst [vmem:[%s276 + $0x34] sm:%s268] %v303
                  %v305 = vld [vmem:[%s275 + $0x118] sm:%s268]
                  %306 = vst [vmem:[%s276 + $0x38] sm:%s268] %v305
                  %v307 = vld [vmem:[%s275 + $0x12c] sm:%s268]
                  %308 = vst [vmem:[%s276 + $0x3c] sm:%s268] %v307
                $region63: #{_lambda_.73} parent=50 // loop_footer
                  %s274 = sadd.s32 1, %s270
                $region64: #{_lambda_.73} parent=50 // loop_footer_branch
                  %269 = sbr.rel target = $region60
                $region65: #{_lambda_.73} parent=50 // loop_exit
                  _
              $region51: #{_lambda_.73} parent=35 // pred_fallthru
                _
            $region36: #{_lambda_.73} parent=31 // pred_fallthru
              _
            // Predicated region
            $region37: #{_lambda_.73} parent=31 // pred_check
              _
            $region38: #{_lambda_.73} parent=31 // pred_check_branch
              %214 = sbr.rel (0) target = $region40
            $region39: #{_lambda_.73} parent=31 // pred_region
              %s216 = ssub.s32 16, 1
              loop: start=0, step=1, limit=1
              $region41: #{_lambda_.73} parent=39 // loop_pre_header
                _
              $region42: #{_lambda_.73} parent=39 // loop_header
                %s218 = sphi 0, %s222
                %p219 = scmp.ge.s32.totalorder %s218, 1
                %s223 = sphi %s208, %s208
                %s224 = sphi %s203, %s203
              $region43: #{_lambda_.73} parent=39 // loop_header_branch
                %221 = sbr.rel (%p219) target = $region47
              $region44: #{_lambda_.73} parent=39 // loop_body
                %v225 = vld [vmem:[%s223] sm:%s216]
                %226 = vst [vmem:[%s224] sm:%s216] %v225
                %v227 = vld [vmem:[%s223 + $0x14] sm:%s216]
                %228 = vst [vmem:[%s224 + $0x4] sm:%s216] %v227
                %v229 = vld [vmem:[%s223 + $0x28] sm:%s216]
                %230 = vst [vmem:[%s224 + $0x8] sm:%s216] %v229
                %v231 = vld [vmem:[%s223 + $0x3c] sm:%s216]
                %232 = vst [vmem:[%s224 + $0xc] sm:%s216] %v231
                %v233 = vld [vmem:[%s223 + $0x50] sm:%s216]
                %234 = vst [vmem:[%s224 + $0x10] sm:%s216] %v233
                %v235 = vld [vmem:[%s223 + $0x64] sm:%s216]
                %236 = vst [vmem:[%s224 + $0x14] sm:%s216] %v235
                %v237 = vld [vmem:[%s223 + $0x78] sm:%s216]
                %238 = vst [vmem:[%s224 + $0x18] sm:%s216] %v237
                %v239 = vld [vmem:[%s223 + $0x8c] sm:%s216]
                %240 = vst [vmem:[%s224 + $0x1c] sm:%s216] %v239
                %v241 = vld [vmem:[%s223 + $0xa0] sm:%s216]
                %242 = vst [vmem:[%s224 + $0x20] sm:%s216] %v241
                %v243 = vld [vmem:[%s223 + $0xb4] sm:%s216]
                %244 = vst [vmem:[%s224 + $0x24] sm:%s216] %v243
                %v245 = vld [vmem:[%s223 + $0xc8] sm:%s216]
                %246 = vst [vmem:[%s224 + $0x28] sm:%s216] %v245
                %v247 = vld [vmem:[%s223 + $0xdc] sm:%s216]
                %248 = vst [vmem:[%s224 + $0x2c] sm:%s216] %v247
                %v249 = vld [vmem:[%s223 + $0xf0] sm:%s216]
                %250 = vst [vmem:[%s224 + $0x30] sm:%s216] %v249
                %v251 = vld [vmem:[%s223 + $0x104] sm:%s216]
                %252 = vst [vmem:[%s224 + $0x34] sm:%s216] %v251
                %v253 = vld [vmem:[%s223 + $0x118] sm:%s216]
                %254 = vst [vmem:[%s224 + $0x38] sm:%s216] %v253
                %v255 = vld [vmem:[%s223 + $0x12c] sm:%s216]
                %256 = vst [vmem:[%s224 + $0x3c] sm:%s216] %v255
              $region45: #{_lambda_.73} parent=39 // loop_footer
                %s222 = sadd.s32 1, %s218
              $region46: #{_lambda_.73} parent=39 // loop_footer_branch
                %217 = sbr.rel target = $region42
              $region47: #{_lambda_.73} parent=39 // loop_exit
                _
            $region40: #{_lambda_.73} parent=31 // pred_fallthru
              _
          $region32: #{_lambda_.73} parent=27 // pred_fallthru
            _
          %309 = vnop
        $region28: #{_lambda_.73} parent=23 // pred_fallthru
          _
        // Predicated region
        $region66: #{_lambda_.73} parent=23 // pred_check
          %p310 = pneg %p80
        $region67: #{_lambda_.73} parent=23 // pred_check_branch
          %312 = sbr.rel (%p310) target = $region69
        $region68: #{_lambda_.73} parent=23 // pred_region
          %s313 = smul.u32 16, %s20
          %p314 = scmp.lt.s32.totalorder %s313, 79
          %s315 = scalar_select %p314, %s313, 79
          %p316 = scmp.lt.s32.totalorder %s19, 0
          %s317 = scalar_select %p316, %s19, 0
          %s318 = sadd.s32 %s317, %s315
          %s319 = smul.addr %s318, 4
          %s320 = scalar_lea.vmem %s1, %s319
          %s321 = smul.u32 16, %s20
        $region69: #{_lambda_.73} parent=23 // pred_fallthru
          _
      $region24: #{_lambda_.73} parent=5 // pred_fallthru
        _
      %p322 = scmp.le.s32.totalorder 1, %s11
      %p323 = scmp.lt.s32.totalorder %s11, 6
      %p324 = pnand %p322, %p323
      %p325 = pneg %p324
      // Predicated region
      $region70: #{_lambda_.73} parent=5 // pred_check
        _
      $region71: #{_lambda_.73} parent=5 // pred_check_branch
        %327 = sbr.rel (%p324) target = $region73
      $region72: #{_lambda_.73} parent=5 // pred_region
        %s328 = ssub.s32 %s11, 1
        %s329 = sand.u32 %s45, 1
        %s330 = sand.u32 %s45, 1
        %s331 = smul.addr %s330, 64
        %s332 = scalar_lea.vmem [#allocation3], %s331
        // Predicated region
        $region74: #{_lambda_.73} parent=72 // pred_check
          %p333 = pneg %p58
        $region75: #{_lambda_.73} parent=72 // pred_check_branch
          %335 = sbr.rel (%p333) target = $region77
        $region76: #{_lambda_.73} parent=72 // pred_region
          _
        $region77: #{_lambda_.73} parent=72 // pred_fallthru
          _
        %s336 = sand.u32 %s45, 1
        %s337 = sand.u32 %s45, 1
        %s338 = smul.addr %s337, 64
        %s339 = scalar_lea.vmem [#allocation3], %s338
        %p340 = pneg %p58
        %p341 = pneg %p55
        %s342 = smul.u32 16, %s23
        %p343 = scmp.lt.s32.totalorder %s342, 79
        %s344 = scalar_select %p343, %s342, 79
        %p345 = scmp.lt.s32.totalorder %s22, 0
        %s346 = scalar_select %p345, %s22, 0
        %s347 = sadd.s32 %s346, %s344
        %s348 = smul.addr %s347, 4
        %s349 = scalar_lea.vmem %s1, %s348
        %p350 = pneg %p86
        %p351 = pneg %p83
        %p352 = scmp.lt.s32.totalorder %s22, 0
        %s353 = scalar_select %p352, %s22, 0
        %s354 = scalar_lea.vmem %s2, %s353
        %p355 = pneg %p112
        %p356 = pneg %p109
        %p357 = scmp.lt.s32.totalorder %s22, 0
        %s358 = scalar_select %p357, %s22, 0
        %s359 = scalar_lea.vmem %s3, %s358
        %p360 = pneg %p138
        %p361 = pneg %p135
        %p362 = pneg %p166
        %p363 = pneg %p163
        %s364 = smul.u32 16, %s21
        %s365 = smul.u32 16, %s23
        %p366 = scmp.lt.s32.totalorder %s365, 79
        %s367 = scalar_select %p366, %s365, 79
        %p368 = scmp.lt.s32.totalorder %s22, 0
        %s369 = scalar_select %p368, %s22, 0
        %s370 = sadd.s32 %s369, %s367
        %s371 = smul.addr %s370, 4
        %s372 = scalar_lea.vmem %s1, %s371
        %s373 = smul.u32 16, %s23
        %p374 = scmp.lt.s32.totalorder %s22, 0
        %s375 = scalar_select %p374, %s22, 0
        %s376 = scalar_lea.vmem %s2, %s375
        %p377 = scmp.lt.s32.totalorder %s22, 0
        %s378 = scalar_select %p377, %s22, 0
        %s379 = scalar_lea.vmem %s3, %s378
        %s380 = smul.u32 16, %s21
        %p382 = scmp.eq.s32.totalorder %s23, 0
        // Predicated region
        $region78: #{_lambda_.73} parent=72 // pred_check
          %p383 = pneg %p382
        $region79: #{_lambda_.73} parent=72 // pred_check_branch
          %385 = sbr.rel (%p383) target = $region81
        $region80: #{_lambda_.73} parent=72 // pred_region
          %386 = vst [vmem:[#allocation2] sm:$0xff] 0.0
          %387 = vst [vmem:[#allocation2 + $0x8] sm:$0xff] 0.0
          %388 = vst [vmem:[#allocation2 + $0x10] sm:$0xff] 0.0
          %389 = vst [vmem:[#allocation2 + $0x18] sm:$0xff] 0.0
          %390 = vst [vmem:[#allocation2 + $0x20] sm:$0xff] 0.0
          %391 = vst [vmem:[#allocation2 + $0x28] sm:$0xff] 0.0
          %392 = vst [vmem:[#allocation2 + $0x30] sm:$0xff] 0.0
          %393 = vst [vmem:[#allocation2 + $0x38] sm:$0xff] 0.0
          %394 = vst [vmem:[#allocation2 + $0x40] sm:$0xff] 0.0
          %395 = vst [vmem:[#allocation2 + $0x48] sm:$0xff] 0.0
          %396 = vst [vmem:[#allocation2 + $0x50] sm:$0xff] 0.0
          %397 = vst [vmem:[#allocation2 + $0x58] sm:$0xff] 0.0
          %398 = vst [vmem:[#allocation2 + $0x60] sm:$0xff] 0.0
          %399 = vst [vmem:[#allocation2 + $0x68] sm:$0xff] 0.0
          %400 = vst [vmem:[#allocation2 + $0x70] sm:$0xff] 0.0
          %401 = vst [vmem:[#allocation2 + $0x78] sm:$0xff] 0.0
        $region81: #{_lambda_.73} parent=72 // pred_fallthru
          _
        %v402 = vld [vmem:[#allocation2] sm:$0xff]
        %v403 = vld [vmem:[#allocation2 + $0x8] sm:$0xff]
        %v404 = vld [vmem:[#allocation2 + $0x10] sm:$0xff]
        %v405 = vld [vmem:[#allocation2 + $0x18] sm:$0xff]
        %v406 = vld [vmem:[#allocation2 + $0x20] sm:$0xff]
        %v407 = vld [vmem:[#allocation2 + $0x28] sm:$0xff]
        %v408 = vld [vmem:[#allocation2 + $0x30] sm:$0xff]
        %v409 = vld [vmem:[#allocation2 + $0x38] sm:$0xff]
        %v410 = vld [vmem:[#allocation2 + $0x40] sm:$0xff]
        %v411 = vld [vmem:[#allocation2 + $0x48] sm:$0xff]
        %v412 = vld [vmem:[#allocation2 + $0x50] sm:$0xff]
        %v413 = vld [vmem:[#allocation2 + $0x58] sm:$0xff]
        %v414 = vld [vmem:[#allocation2 + $0x60] sm:$0xff]
        %v415 = vld [vmem:[#allocation2 + $0x68] sm:$0xff]
        %v416 = vld [vmem:[#allocation2 + $0x70] sm:$0xff]
        %v417 = vld [vmem:[#allocation2 + $0x78] sm:$0xff]
        %v418 = vld [vmem:[%s332] sm:$0xf]
        %v419 = vld [vmem:[%s332 + $0x4] sm:$0xf]
        %v420 = vld [vmem:[%s332 + $0x8] sm:$0xf]
        %v421 = vld [vmem:[%s332 + $0xc] sm:$0xf]
        %v422 = vld [vmem:[%s332 + $0x10] sm:$0xf]
        %v423 = vld [vmem:[%s332 + $0x14] sm:$0xf]
        %v424 = vld [vmem:[%s332 + $0x18] sm:$0xf]
        %v425 = vld [vmem:[%s332 + $0x1c] sm:$0xf]
        %v426 = vld [vmem:[%s332 + $0x20] sm:$0xf]
        %v427 = vld [vmem:[%s332 + $0x24] sm:$0xf]
        %v428 = vld [vmem:[%s332 + $0x28] sm:$0xf]
        %v429 = vld [vmem:[%s332 + $0x2c] sm:$0xf]
        %v430 = vld [vmem:[%s332 + $0x30] sm:$0xf]
        %v431 = vld [vmem:[%s332 + $0x34] sm:$0xf]
        %v432 = vld [vmem:[%s332 + $0x38] sm:$0xf]
        %v433 = vld [vmem:[%s332 + $0x3c] sm:$0xf]
        %v434 = vld [vmem:[%s372] sm:$0xf]
        %v435 = vld [vmem:[%s372 + $0x4] sm:$0xf]
        %v436 = vld [vmem:[%s372 + $0x8] sm:$0xf]
        %v437 = vld [vmem:[%s372 + $0xc] sm:$0xf]
        %v438 = vld [vmem:[%s372 + $0x10] sm:$0xf]
        %v439 = vld [vmem:[%s372 + $0x14] sm:$0xf]
        %v440 = vld [vmem:[%s372 + $0x18] sm:$0xf]
        %v441 = vld [vmem:[%s372 + $0x1c] sm:$0xf]
        %v442 = vld [vmem:[%s372 + $0x20] sm:$0xf]
        %v443 = vld [vmem:[%s372 + $0x24] sm:$0xf]
        %v444 = vld [vmem:[%s372 + $0x28] sm:$0xf]
        %v445 = vld [vmem:[%s372 + $0x2c] sm:$0xf]
        %v446 = vld [vmem:[%s372 + $0x30] sm:$0xf]
        %v447 = vld [vmem:[%s372 + $0x34] sm:$0xf]
        %v448 = vld [vmem:[%s372 + $0x38] sm:$0xf]
        %v449 = vld [vmem:[%s372 + $0x3c] sm:$0xf]
        %v466 = vunpack.c.l.b16 %v418
        %v467 = vunpack.c.l.b16 %v419
        %v468 = vunpack.c.l.b16 %v420
        %v469 = vunpack.c.l.b16 %v421
        %v470 = vunpack.c.l.b16 %v422
        %v471 = vunpack.c.l.b16 %v423
        %v472 = vunpack.c.l.b16 %v424
        %v473 = vunpack.c.l.b16 %v425
        %v474 = vunpack.c.l.b16 %v426
        %v475 = vunpack.c.l.b16 %v427
        %v476 = vunpack.c.l.b16 %v428
        %v477 = vunpack.c.l.b16 %v429
        %v478 = vunpack.c.l.b16 %v430
        %v479 = vunpack.c.l.b16 %v431
        %v480 = vunpack.c.l.b16 %v432
        %v481 = vunpack.c.l.b16 %v433
        %v482 = vpack.c.b16 %v467, %v466
        %v483 = vpack.c.b16 %v469, %v468
        %v484 = vpack.c.b16 %v471, %v470
        %v485 = vpack.c.b16 %v473, %v472
        %v486 = vpack.c.b16 %v475, %v474
        %v487 = vpack.c.b16 %v477, %v476
        %v488 = vpack.c.b16 %v479, %v478
        %v489 = vpack.c.b16 %v481, %v480
        %v514 = vunpack.c.l.b16 %v434
        %v515 = vunpack.c.l.b16 %v435
        %v516 = vunpack.c.l.b16 %v436
        %v517 = vunpack.c.l.b16 %v437
        %v518 = vunpack.c.l.b16 %v438
        %v519 = vunpack.c.l.b16 %v439
        %v520 = vunpack.c.l.b16 %v440
        %v521 = vunpack.c.l.b16 %v441
        %v522 = vunpack.c.l.b16 %v442
        %v523 = vunpack.c.l.b16 %v443
        %v524 = vunpack.c.l.b16 %v444
        %v525 = vunpack.c.l.b16 %v445
        %v526 = vunpack.c.l.b16 %v446
        %v527 = vunpack.c.l.b16 %v447
        %v528 = vunpack.c.l.b16 %v448
        %v529 = vunpack.c.l.b16 %v449
        %v530 = vpack.c.b16 %v515, %v514
        %v531 = vpack.c.b16 %v517, %v516
        %v532 = vpack.c.b16 %v519, %v518
        %v533 = vpack.c.b16 %v521, %v520
        %v534 = vpack.c.b16 %v523, %v522
        %v535 = vpack.c.b16 %v525, %v524
        %v536 = vpack.c.b16 %v527, %v526
        %v537 = vpack.c.b16 %v529, %v528
        %546 = vmatprep.subr.bf16.mxu0 0
        %547 = vmatpush1.bf16.msra.mxu0 %v537
        %548 = vmatprep.subr.bf16.mxu0 0
        %549 = vmatpush1.bf16.msra.mxu0 %v536
        %550 = vmatprep.subr.bf16.mxu0 0
        %551 = vmatpush1.bf16.msra.mxu0 %v535
        %552 = vmatprep.subr.bf16.mxu0 0
        %553 = vmatpush1.bf16.msra.mxu0 %v534
        %554 = vmatprep.subr.bf16.mxu0 0
        %555 = vmatpush1.bf16.msra.mxu0 %v533
        %556 = vmatprep.subr.bf16.mxu0 0
        %557 = vmatpush1.bf16.msra.mxu0 %v532
        %558 = vmatprep.subr.bf16.mxu0 0
        %559 = vmatpush1.bf16.msra.mxu0 %v531
        %560 = vmatprep.subr.bf16.mxu0 0
        %561 = vmatpush1.bf16.msra.mxu0 %v530
        %562 = vmatprep.subr.bf16.mxu0 0
        %563 = vmatpush2.bf16.msra.mxu0 0
        %564 = vmatprep.subr.bf16.mxu0 0
        %565 = vmatpush2.bf16.msra.mxu0 0
        %566 = vmatprep.subr.bf16.mxu0 0
        %567 = vmatpush2.bf16.msra.mxu0 0
        %568 = vmatprep.subr.bf16.mxu0 0
        %569 = vmatpush2.bf16.msra.mxu0 0
        %570 = vmatprep.subr.bf16.mxu0 0
        %571 = vmatpush2.bf16.msra.mxu0 0
        %572 = vmatprep.subr.bf16.mxu0 0
        %573 = vmatpush2.bf16.msra.mxu0 0
        %574 = vmatprep.subr.bf16.mxu0 0
        %575 = vmatpush2.bf16.msra.mxu0 0
        %576 = vmatprep.subr.bf16.mxu0 0
        %577 = vmatpush2.bf16.msra.mxu0 0
        %578 = vmatprep.mubr.bf16.mxu0 0
        %579 = vmatmul.mubr.bf16.gmra.mxu0 %v482
        %v580 = vpop.f32.mrf.mxu0
        %v581 = vadd.f32 0.0, %v580
        %v582 = vpop.f32.mrf.mxu0
        %v583 = vpop.f32.mrf.mxu0
        %v584 = vadd.f32 0.0, %v583
        %v585 = vpop.f32.mrf.mxu0
        %586 = vmatprep.mubr.bf16.mxu0 0
        %587 = vmatmul.mubr.bf16.gmra.mxu0 %v483
        %v588 = vpop.f32.mrf.mxu0
        %v589 = vadd.f32 0.0, %v588
        %v590 = vpop.f32.mrf.mxu0
        %v591 = vpop.f32.mrf.mxu0
        %v592 = vadd.f32 0.0, %v591
        %v593 = vpop.f32.mrf.mxu0
        %594 = vmatprep.mubr.bf16.mxu0 0
        %595 = vmatmul.mubr.bf16.gmra.mxu0 %v484
        %v596 = vpop.f32.mrf.mxu0
        %v597 = vadd.f32 0.0, %v596
        %v598 = vpop.f32.mrf.mxu0
        %v599 = vpop.f32.mrf.mxu0
        %v600 = vadd.f32 0.0, %v599
        %v601 = vpop.f32.mrf.mxu0
        %602 = vmatprep.mubr.bf16.mxu0 0
        %603 = vmatmul.mubr.bf16.gmra.mxu0 %v485
        %v604 = vpop.f32.mrf.mxu0
        %v605 = vadd.f32 0.0, %v604
        %v606 = vpop.f32.mrf.mxu0
        %v607 = vpop.f32.mrf.mxu0
        %v608 = vadd.f32 0.0, %v607
        %v609 = vpop.f32.mrf.mxu0
        %610 = vmatprep.mubr.bf16.mxu0 0
        %611 = vmatmul.mubr.bf16.gmra.mxu0 %v486
        %v612 = vpop.f32.mrf.mxu0
        %v613 = vadd.f32 0.0, %v612
        %v614 = vpop.f32.mrf.mxu0
        %v615 = vpop.f32.mrf.mxu0
        %v616 = vadd.f32 0.0, %v615
        %v617 = vpop.f32.mrf.mxu0
        %618 = vmatprep.mubr.bf16.mxu0 0
        %619 = vmatmul.mubr.bf16.gmra.mxu0 %v487
        %v620 = vpop.f32.mrf.mxu0
        %v621 = vadd.f32 0.0, %v620
        %v622 = vpop.f32.mrf.mxu0
        %v623 = vpop.f32.mrf.mxu0
        %v624 = vadd.f32 0.0, %v623
        %v625 = vpop.f32.mrf.mxu0
        %626 = vmatprep.mubr.bf16.mxu0 0
        %627 = vmatmul.mubr.bf16.gmra.mxu0 %v488
        %v628 = vpop.f32.mrf.mxu0
        %v629 = vadd.f32 0.0, %v628
        %v630 = vpop.f32.mrf.mxu0
        %v631 = vpop.f32.mrf.mxu0
        %v632 = vadd.f32 0.0, %v631
        %v633 = vpop.f32.mrf.mxu0
        %634 = vmatprep.mubr.bf16.mxu0 0
        %635 = vmatmul.mubr.bf16.gmra.mxu0 %v489
        %v636 = vpop.f32.mrf.mxu0
        %v637 = vadd.f32 0.0, %v636
        %v638 = vpop.f32.mrf.mxu0
        %v639 = vpop.f32.mrf.mxu0
        %v640 = vadd.f32 0.0, %v639
        %v641 = vpop.f32.mrf.mxu0
        %642 = vdwg.mxu0
        %v643 = vadd.f32 %v402, %v581
        %v644 = vadd.f32 %v403, %v584
        %v645 = vadd.f32 %v404, %v589
        %v646 = vadd.f32 %v405, %v592
        %v647 = vadd.f32 %v406, %v597
        %v648 = vadd.f32 %v407, %v600
        %v649 = vadd.f32 %v408, %v605
        %v650 = vadd.f32 %v409, %v608
        %v651 = vadd.f32 %v410, %v613
        %v652 = vadd.f32 %v411, %v616
        %v653 = vadd.f32 %v412, %v621
        %v654 = vadd.f32 %v413, %v624
        %v655 = vadd.f32 %v414, %v629
        %v656 = vadd.f32 %v415, %v632
        %v657 = vadd.f32 %v416, %v637
        %v658 = vadd.f32 %v417, %v640
        %659 = vst [vmem:[#allocation2] sm:$0xff] %v643
        %660 = vst [vmem:[#allocation2 + $0x8] sm:$0xff] %v644
        %661 = vst [vmem:[#allocation2 + $0x10] sm:$0xff] %v645
        %662 = vst [vmem:[#allocation2 + $0x18] sm:$0xff] %v646
        %663 = vst [vmem:[#allocation2 + $0x20] sm:$0xff] %v647
        %664 = vst [vmem:[#allocation2 + $0x28] sm:$0xff] %v648
        %665 = vst [vmem:[#allocation2 + $0x30] sm:$0xff] %v649
        %666 = vst [vmem:[#allocation2 + $0x38] sm:$0xff] %v650
        %667 = vst [vmem:[#allocation2 + $0x40] sm:$0xff] %v651
        %668 = vst [vmem:[#allocation2 + $0x48] sm:$0xff] %v652
        %669 = vst [vmem:[#allocation2 + $0x50] sm:$0xff] %v653
        %670 = vst [vmem:[#allocation2 + $0x58] sm:$0xff] %v654
        %671 = vst [vmem:[#allocation2 + $0x60] sm:$0xff] %v655
        %672 = vst [vmem:[#allocation2 + $0x68] sm:$0xff] %v656
        %673 = vst [vmem:[#allocation2 + $0x70] sm:$0xff] %v657
        %674 = vst [vmem:[#allocation2 + $0x78] sm:$0xff] %v658
        %p675 = scmp.eq.s32.totalorder %s23, 4
        // Predicated region
        $region82: #{_lambda_.73} parent=72 // pred_check
          %p676 = pneg %p675
        $region83: #{_lambda_.73} parent=72 // pred_check_branch
          %678 = sbr.rel (%p676) target = $region85
        $region84: #{_lambda_.73} parent=72 // pred_region
          %v679 = vld [vmem:[#allocation2] sm:$0xff]
          %v680 = vld [vmem:[#allocation2 + $0x8] sm:$0xff]
          %v681 = vld [vmem:[#allocation2 + $0x10] sm:$0xff]
          %v682 = vld [vmem:[#allocation2 + $0x18] sm:$0xff]
          %v683 = vld [vmem:[#allocation2 + $0x20] sm:$0xff]
          %v684 = vld [vmem:[#allocation2 + $0x28] sm:$0xff]
          %v685 = vld [vmem:[#allocation2 + $0x30] sm:$0xff]
          %v686 = vld [vmem:[#allocation2 + $0x38] sm:$0xff]
          %v687 = vld [vmem:[#allocation2 + $0x40] sm:$0xff]
          %v688 = vld [vmem:[#allocation2 + $0x48] sm:$0xff]
          %v689 = vld [vmem:[#allocation2 + $0x50] sm:$0xff]
          %v690 = vld [vmem:[#allocation2 + $0x58] sm:$0xff]
          %v691 = vld [vmem:[#allocation2 + $0x60] sm:$0xff]
          %v692 = vld [vmem:[#allocation2 + $0x68] sm:$0xff]
          %v693 = vld [vmem:[#allocation2 + $0x70] sm:$0xff]
          %v694 = vld [vmem:[#allocation2 + $0x78] sm:$0xff]
          %v695 = vld [vmem:[%s376] sm:$0x1]
          %v697 = vlaneseq
          %v698 = vshrl.u32 %v697, 7
          %v699 = vsub.s32 0, %v698
          %v700 = vrot.slane %v695, %v699
          %v702 = vadd.f32 %v679, %v700
          %v703 = vadd.f32 %v680, %v700
          %v704 = vadd.f32 %v681, %v700
          %v705 = vadd.f32 %v682, %v700
          %v706 = vadd.f32 %v683, %v700
          %v707 = vadd.f32 %v684, %v700
          %v708 = vadd.f32 %v685, %v700
          %v709 = vadd.f32 %v686, %v700
          %v710 = vadd.f32 %v687, %v700
          %v711 = vadd.f32 %v688, %v700
          %v712 = vadd.f32 %v689, %v700
          %v713 = vadd.f32 %v690, %v700
          %v714 = vadd.f32 %v691, %v700
          %v715 = vadd.f32 %v692, %v700
          %v716 = vadd.f32 %v693, %v700
          %v717 = vadd.f32 %v694, %v700
          %vm718 = vcmp.ge.f32.partialorder %v702, 0.0
          %vm719 = vcmp.ge.f32.partialorder %v703, 0.0
          %vm720 = vcmp.ge.f32.partialorder %v704, 0.0
          %vm721 = vcmp.ge.f32.partialorder %v705, 0.0
          %vm722 = vcmp.ge.f32.partialorder %v706, 0.0
          %vm723 = vcmp.ge.f32.partialorder %v707, 0.0
          %vm724 = vcmp.ge.f32.partialorder %v708, 0.0
          %vm725 = vcmp.ge.f32.partialorder %v709, 0.0
          %vm726 = vcmp.ge.f32.partialorder %v710, 0.0
          %vm727 = vcmp.ge.f32.partialorder %v711, 0.0
          %vm728 = vcmp.ge.f32.partialorder %v712, 0.0
          %vm729 = vcmp.ge.f32.partialorder %v713, 0.0
          %vm730 = vcmp.ge.f32.partialorder %v714, 0.0
          %vm731 = vcmp.ge.f32.partialorder %v715, 0.0
          %vm732 = vcmp.ge.f32.partialorder %v716, 0.0
          %vm733 = vcmp.ge.f32.partialorder %v717, 0.0
          %v734 = vld [vmem:[%s379] sm:$0x1]
          %v736 = vlaneseq
          %v737 = vshrl.u32 %v736, 7
          %v738 = vsub.s32 0, %v737
          %v739 = vrot.slane %v734, %v738
          %v741 = vmul.f32 %v739, %v702
          %v742 = vmul.f32 %v739, %v703
          %v743 = vmul.f32 %v739, %v704
          %v744 = vmul.f32 %v739, %v705
          %v745 = vmul.f32 %v739, %v706
          %v746 = vmul.f32 %v739, %v707
          %v747 = vmul.f32 %v739, %v708
          %v748 = vmul.f32 %v739, %v709
          %v749 = vmul.f32 %v739, %v710
          %v750 = vmul.f32 %v739, %v711
          %v751 = vmul.f32 %v739, %v712
          %v752 = vmul.f32 %v739, %v713
          %v753 = vmul.f32 %v739, %v714
          %v754 = vmul.f32 %v739, %v715
          %v755 = vmul.f32 %v739, %v716
          %v756 = vmul.f32 %v739, %v717
          %v757 = vsel %vm718, %v702, %v741
          %v758 = vsel %vm719, %v703, %v742
          %v759 = vsel %vm720, %v704, %v743
          %v760 = vsel %vm721, %v705, %v744
          %v761 = vsel %vm722, %v706, %v745
          %v762 = vsel %vm723, %v707, %v746
          %v763 = vsel %vm724, %v708, %v747
          %v764 = vsel %vm725, %v709, %v748
          %v765 = vsel %vm726, %v710, %v749
          %v766 = vsel %vm727, %v711, %v750
          %v767 = vsel %vm728, %v712, %v751
          %v768 = vsel %vm729, %v713, %v752
          %v769 = vsel %vm730, %v714, %v753
          %v770 = vsel %vm731, %v715, %v754
          %v771 = vsel %vm732, %v716, %v755
          %v772 = vsel %vm733, %v717, %v756
          %773 = vst [vmem:[#allocation4] sm:$0xff] %v757
          %774 = vst [vmem:[#allocation4 + $0x8] sm:$0xff] %v758
          %775 = vst [vmem:[#allocation4 + $0x10] sm:$0xff] %v759
          %776 = vst [vmem:[#allocation4 + $0x18] sm:$0xff] %v760
          %777 = vst [vmem:[#allocation4 + $0x20] sm:$0xff] %v761
          %778 = vst [vmem:[#allocation4 + $0x28] sm:$0xff] %v762
          %779 = vst [vmem:[#allocation4 + $0x30] sm:$0xff] %v763
          %780 = vst [vmem:[#allocation4 + $0x38] sm:$0xff] %v764
          %781 = vst [vmem:[#allocation4 + $0x40] sm:$0xff] %v765
          %782 = vst [vmem:[#allocation4 + $0x48] sm:$0xff] %v766
          %783 = vst [vmem:[#allocation4 + $0x50] sm:$0xff] %v767
          %784 = vst [vmem:[#allocation4 + $0x58] sm:$0xff] %v768
          %785 = vst [vmem:[#allocation4 + $0x60] sm:$0xff] %v769
          %786 = vst [vmem:[#allocation4 + $0x68] sm:$0xff] %v770
          %787 = vst [vmem:[#allocation4 + $0x70] sm:$0xff] %v771
          %788 = vst [vmem:[#allocation4 + $0x78] sm:$0xff] %v772
        $region85: #{_lambda_.73} parent=72 // pred_fallthru
          _
        // Predicated region
        $region86: #{_lambda_.73} parent=72 // pred_check
          %p789 = pneg %p163
        $region87: #{_lambda_.73} parent=72 // pred_check_branch
          %791 = sbr.rel (%p789) target = $region89
        $region88: #{_lambda_.73} parent=72 // pred_region
          %s792 = smul.u32 16, %s21
          %s794 = ssub.s32 2048, 2048
          %795 = vsyncadd [#allocation5], %s794
          %s796 = sadd.s32 %s22, %s792
          %s797 = smul.addr %s796, 128
          %s798 = scalar_lea.hbm %s4, %s797
          %s799 = sshll.u32 [#allocation4], 4
          %s800 = int_to_ptr.vmem [resolvable:$true] %s799
          %805 = dma.vmem_to_hbm [thread:$0]  %s800, 2048, %s798, [#allocation5], 128, 128, 8
        $region89: #{_lambda_.73} parent=72 // pred_fallthru
          _
        // Predicated region
        $region90: #{_lambda_.73} parent=72 // pred_check
          %p806 = pneg %p163
        $region91: #{_lambda_.73} parent=72 // pred_check_branch
          %808 = sbr.rel (%p806) target = $region93
        $region92: #{_lambda_.73} parent=72 // pred_region
          %809 = dma.done [#allocation5], 2048
        $region93: #{_lambda_.73} parent=72 // pred_fallthru
          _
      $region73: #{_lambda_.73} parent=5 // pred_fallthru
        _
      %p810 = scmp.le.s32.totalorder 2, %s11
      // Predicated region
      $region94: #{_lambda_.73} parent=5 // pred_check
        %p811 = pneg %p810
      $region95: #{_lambda_.73} parent=5 // pred_check_branch
        %813 = sbr.rel (%p811) target = $region97
      $region96: #{_lambda_.73} parent=5 // pred_region
        %s814 = ssub.s32 %s11, 2
      $region97: #{_lambda_.73} parent=5 // pred_fallthru
        _
    $region6: #{_lambda_.73} parent=1 // loop_footer
      %s15 = sadd.s32 1, %s11
    $region7: #{_lambda_.73} parent=1 // loop_footer_branch
      %10 = sbr.rel target = $region3
    $region8: #{_lambda_.73} parent=1 // loop_exit
      _
    %815 = vsyncpa [#allocation5], 1
    %s816 = scalar_lea.sflag [#allocation5], 1
    %817 = vsyncpa %s816, 1

</llo_original>
